<compile_context>
chip_gen: v5e
topology: v5e:2x2
jax: 0.10.0
libtpu: 0.0.40
codegen_flags: <defaults>
</compile_context>

<pallas_src>
import math
import functools

import numpy as np
import jax
import jax.numpy as jnp
from jax import lax
from jax.experimental import pallas as pl
from jax.experimental.pallas import tpu as pltpu

LN_EPS = 1e-5


# ----------------------------------------------------------------------------
# helpers usable inside the kernel
# ----------------------------------------------------------------------------
def _erf_f32(x, approx_recip):
    """float32 erf (Eigen/XLA rational approximation, ~1 ulp). The final divide is done as
    a * reciprocal(b) so it lands on the EUP slot instead of the vector ALU."""
    clamp = 3.832506856900711
    x = jnp.clip(x, -clamp, clamp)
    z = x * x
    a = -2.72614225801306e-10
    a = a * z + 2.77068142495902e-08
    a = a * z + -2.10102402082508e-06
    a = a * z + -5.69250639462346e-05
    a = a * z + -7.34990630326855e-04
    a = a * z + -2.95459980854025e-03
    a = a * z + -1.60960333262415e-02
    a = a * x
    b = -1.45660718464996e-05
    b = b * z + -2.13374055278905e-04
    b = b * z + -1.68282697438203e-03
    b = b * z + -7.37332916720468e-03
    b = b * z + -1.42647390514189e-02
    return a * pl.reciprocal(b, approx=approx_recip)


def _gelu_exact(x, approx_recip):
    # nn.GELU() default = exact (erf-based) GELU
    return 0.5 * x * (1.0 + _erf_f32(x * 0.7071067811865476, approx_recip))


def _layernorm(x, w, b):
    mu = jnp.mean(x, axis=-1, keepdims=True)
    var = jnp.mean((x - mu) ** 2, axis=-1, keepdims=True)
    return (x - mu) * lax.rsqrt(var + LN_EPS) * w + b


# ----------------------------------------------------------------------------
# ALiBi slopes (host-side glue; the bias matrix itself is built in-kernel)
# ----------------------------------------------------------------------------
def _get_alibi_slopes(heads):
    def power_of_2(n):
        start = 2 ** (-(2 ** (-(math.log2(n) - 3))))
        return [start * (start ** i) for i in range(n)]

    if math.log2(heads).is_integer():
        return power_of_2(heads)
    closest = 2 ** math.floor(math.log2(heads))
    return power_of_2(closest) + power_of_2(2 * closest)[0::2][: heads - closest]


def _alibi_bias(num_heads, seq_len):
    # Full (num_heads, S, S) bias — used only by the pure-JAX reference.
    alibi_heads = num_heads // 2 + (num_heads % 2 == 1)
    slopes = jnp.asarray(_get_alibi_slopes(alibi_heads), dtype=jnp.float32)[:, None, None]
    i_ar = jnp.arange(seq_len)
    j_ar = jnp.arange(seq_len)
    bias = -jnp.abs(j_ar[None, None, :] - i_ar[None, :, None]).astype(jnp.float32)
    bias = bias * slopes
    bias = jnp.pad(bias, ((0, num_heads - alibi_heads), (0, 0), (0, 0)))
    return bias


# ----------------------------------------------------------------------------
# The Pallas kernel: one grid step == one block of `bb` batch elements
# ----------------------------------------------------------------------------
def _encoder_layer_kernel(num_heads, head_size, bb, compute_dtype, approx_recip,
                          gamma_ref, slopes_ref,          # SMEM  (num_heads,) each
                          x_ref, adj_ref,                 # VMEM  per-batch-block slabs
                          ln1w_ref, ln1b_ref,
                          wqkv_ref, inb_ref,
                          outw_ref, outb_ref,
                          ln2w_ref, ln2b_ref,
                          w1_ref, b1_ref, w2_ref, b2_ref,
                          y_ref):
    S = x_ref.shape[1]
    H = x_ref.shape[2]
    M = bb * S
    cd = compute_dtype

    # Flatten the batch block into one (M, H) row slab so every big matmul feeds the MXU
    # with M = bb*S rows instead of S rows.
    x = x_ref[...].astype(jnp.float32).reshape(M, H)       # residual source, f32

    # --- pre-attention LayerNorm (in_norm), f32 statistics ---
    xn = _layernorm(x, ln1w_ref[...], ln1b_ref[...])

    # --- fused QKV projection over the whole slab ([Q|K|V] layout, scale folded into Q) ---
    qkv = jnp.dot(xn.astype(cd), wqkv_ref[...],
                  preferred_element_type=jnp.float32) + inb_ref[...]       # (M, 3H) f32

    # --- ALiBi distance matrix built in-kernel (cheap VPU work, no HBM traffic) ---
    rows = lax.broadcasted_iota(jnp.int32, (S, S), 0)
    cols = lax.broadcasted_iota(jnp.int32, (S, S), 1)
    neg_dist = -jnp.abs(cols - rows).astype(jnp.float32)                   # (S, S)

    # --- per-batch / per-head attention; head outputs stay in vregs (f32) ---
    # TODO(synk): flash-style KV/adj tiling + online softmax for long sequences.
    batch_outs = []
    for b in range(bb):
        r0, r1 = b * S, (b + 1) * S
        adj_b = adj_ref[b, 0].astype(jnp.float32)                          # (S, S)
        head_outs = []
        for h in range(num_heads):
            lo, hi = h * head_size, (h + 1) * head_size
            q = qkv[r0:r1, lo:hi].astype(cd)               # scale already folded in
            k = qkv[r0:r1, H + lo:H + hi].astype(cd)
            v = qkv[r0:r1, 2 * H + lo:2 * H + hi].astype(cd)

            # Q @ K^T via dot_general (contract last dims; no explicit transpose).
            att = lax.dot_general(q, k, (((1,), (1,)), ((), ())),
                                  preferred_element_type=jnp.float32)      # (S, S)
            att = att + slopes_ref[h] * neg_dist + gamma_ref[h] * adj_b    # alibi + gamma*adj

            att = att - jnp.max(att, axis=-1, keepdims=True)
            e = jnp.exp(att)
            p = e * pl.reciprocal(jnp.sum(e, axis=-1, keepdims=True), approx=approx_recip)

            head_outs.append(jnp.dot(p.astype(cd), v,
                                     preferred_element_type=jnp.float32))  # (S, hs) f32
        batch_outs.append(jnp.concatenate(head_outs, axis=-1))             # (S, H)  f32
    attn = jnp.concatenate(batch_outs, axis=0)                             # (M, H)  f32

    # --- single fused output projection over the whole slab ---
    proj = jnp.dot(attn.astype(cd), outw_ref[...],
                   preferred_element_type=jnp.float32) + outb_ref[...]

    # residual 1 (dropout == identity in eval mode)
    x1 = x + proj

    # --- FFN: LayerNorm -> Linear -> GELU(erf) -> Linear, full-slab matmuls ---
    xn2 = _layernorm(x1, ln2w_ref[...], ln2b_ref[...])
    h1 = jnp.dot(xn2.astype(cd), w1_ref[...],
                 preferred_element_type=jnp.float32) + b1_ref[...]
    h1 = _gelu_exact(h1, approx_recip)
    h2 = jnp.dot(h1.astype(cd), w2_ref[...],
                 preferred_element_type=jnp.float32) + b2_ref[...]

    # residual 2
    y_ref[...] = (x1 + h2).reshape(bb, S, H).astype(y_ref.dtype)


# ----------------------------------------------------------------------------
# Wrapper
# ----------------------------------------------------------------------------
def _choose_batch_block(B, S, min_rows=128):
    """Smallest divisor of B giving >= min_rows MXU rows per block (more grid steps ->
    megacore parallelism + pipelining); fall back to the whole batch if none qualifies."""
    for bb in range(1, B + 1):
        if B % bb == 0 and bb * S >= min_rows:
            return bb
    return B


def transformer_encoder_layer(x, adj, params, *, num_heads, temperature=1.0,
                              compute_dtype=jnp.bfloat16, batch_block=None):
    B, S, H = x.shape
    assert H % num_heads == 0
    hs = H // num_heads
    cd = compute_dtype
    approx_recip = (np.dtype(cd) != np.dtype(jnp.float32))

    bb = batch_block if batch_block is not None else _choose_batch_block(B, S)
    assert B % bb == 0
    num_blocks = B // bb

    scale = 1.0 / (temperature * (hs ** 0.5))

    # Host-side re-layout of the fused QKV weight into contiguous [Q | K | V] blocks,
    # with the softmax scale folded into the Q weights / bias.
    w = params["w_qkv"].reshape(H, num_heads, 3, hs)
    wq = (w[:, :, 0, :] * scale).reshape(H, H)
    wk = w[:, :, 1, :].reshape(H, H)
    wv = w[:, :, 2, :].reshape(H, H)
    w_qkv = jnp.concatenate([wq, wk, wv], axis=1).astype(cd)               # (H, 3H)

    b = params["in_bias"].reshape(num_heads, 3, hs)
    bq = (b[:, 0, :] * scale).reshape(H)
    bk = b[:, 1, :].reshape(H)
    bv = b[:, 2, :].reshape(H)
    in_bias = jnp.concatenate([bq, bk, bv]).reshape(1, 3 * H).astype(jnp.float32)

    # ALiBi slopes, zero-padded to num_heads (bias matrix itself built in-kernel).
    alibi_heads = num_heads // 2 + (num_heads % 2 == 1)
    slopes = jnp.zeros((num_heads,), jnp.float32).at[:alibi_heads].set(
        jnp.asarray(_get_alibi_slopes(alibi_heads), jnp.float32))

    # adj is the only S^2-scaling per-batch stream: DMA it in compute_dtype.
    adj_cd = adj.astype(cd)

    def row(v):                                            # 1-D param -> (1, N) f32
        return v.reshape(1, -1).astype(jnp.float32)

    kernel_inputs = (
        params["gamma"].astype(jnp.float32),               # SMEM (num_heads,)
        slopes,                                            # SMEM (num_heads,)
        x,                                                 # (B, S, H)
        adj_cd,                                            # (B, 1, S, S) in compute dtype
        row(params["ln1_w"]), row(params["ln1_b"]),        # (1, H)
        w_qkv, in_bias,                                    # (H, 3H), (1, 3H)
        params["out_w"].T.astype(cd), row(params["out_bias"]),   # (H, H), (1, H)
        row(params["ln2_w"]), row(params["ln2_b"]),        # (1, H)
        params["ffn_w1"].T.astype(cd), row(params["ffn_b1"]),    # (H, F), (1, F)
        params["ffn_w2"].T.astype(cd), row(params["ffn_b2"]),    # (F, H), (1, H)
    )

    smem_spec = pl.BlockSpec(memory_space=pltpu.MemorySpace.SMEM)

    def const_spec(a):
        # Grid-invariant weight/bias: full block, single-buffered (no wasted 2nd VMEM buffer).
        nd = a.ndim
        return pl.BlockSpec(a.shape, lambda i, nd=nd: (0,) * nd,
                            pipeline_mode=pl.Buffered(1))

    in_specs = [
        smem_spec,                                               # gamma
        smem_spec,                                               # alibi slopes
        pl.BlockSpec((bb, S, H), lambda i: (i, 0, 0)),           # x: one batch block
        pl.BlockSpec((bb, 1, S, S), lambda i: (i, 0, 0, 0)),     # adj: one batch block
    ] + [const_spec(a) for a in kernel_inputs[4:]]

    out_specs = pl.BlockSpec((bb, S, H), lambda i: (i, 0, 0))

    # Explicit VMEM budget: 2x only for the pipelined per-step blocks (x, adj, y),
    # 1x for single-buffered weights/biases, plus headroom, capped at 48 MiB so Mosaic
    # internal scratch still fits under v7x's 64 MiB physical VMEM.
    pipelined_bytes = (
        bb * S * H * x.dtype.itemsize                       # x block
        + bb * S * S * adj_cd.dtype.itemsize                # adj block
        + bb * S * H * x.dtype.itemsize                     # output block
    )
    weight_bytes = sum(int(a.size) * a.dtype.itemsize for a in kernel_inputs[4:])
    vmem_limit = int(min(max(2 * pipelined_bytes + weight_bytes + (6 << 20), 32 << 20),
                         48 << 20))

    kernel = functools.partial(_encoder_layer_kernel, num_heads, hs, bb, cd, approx_recip)

    return pl.pallas_call(
        kernel,
        out_shape=jax.ShapeDtypeStruct((B, S, H), x.dtype),
        grid=(num_blocks,),
        in_specs=in_specs,
        out_specs=out_specs,
        compiler_params=pltpu.CompilerParams(
            dimension_semantics=("parallel",),
            vmem_limit_bytes=vmem_limit,
        ),
    )(*kernel_inputs)


# ----------------------------------------------------------------------------
# Deterministic parameter initialization (shapes from the module's __init__)
# ----------------------------------------------------------------------------
def init_params(key, hidden_dim, num_heads, ffn_size):
    ks = jax.random.split(key, 12)

    def xavier_normal(k, shape):
        std = math.sqrt(2.0 / (shape[0] + shape[1]))
        return std * jax.random.normal(k, shape, jnp.float32)

    def linear_w(k, out_f, in_f):
        bound = 1.0 / math.sqrt(in_f)
        return jax.random.uniform(k, (out_f, in_f), jnp.float32, -bound, bound)

    return {
        "ln1_w": 1.0 + 0.05 * jax.random.normal(ks[0], (hidden_dim,), jnp.float32),
        "ln1_b": 0.05 * jax.random.normal(ks[1], (hidden_dim,), jnp.float32),
        "w_qkv": xavier_normal(ks[2], (hidden_dim, 3 * hidden_dim)),
        "in_bias": 0.02 * jax.random.normal(ks[3], (3 * hidden_dim,), jnp.float32),
        "out_w": xavier_normal(ks[4], (hidden_dim, hidden_dim)),
        "out_bias": 0.02 * jax.random.normal(ks[5], (hidden_dim,), jnp.float32),
        "gamma": 1.0 + 0.1 * jax.random.normal(ks[6], (num_heads,), jnp.float32),
        "ln2_w": 1.0 + 0.05 * jax.random.normal(ks[7], (hidden_dim,), jnp.float32),
        "ln2_b": 0.05 * jax.random.normal(ks[8], (hidden_dim,), jnp.float32),
        "ffn_w1": linear_w(ks[9], ffn_size, hidden_dim),
        "ffn_b1": 0.02 * jax.random.normal(ks[10], (ffn_size,), jnp.float32),
        "ffn_w2": linear_w(ks[11], hidden_dim, ffn_size),
        "ffn_b2": jnp.zeros((hidden_dim,), jnp.float32),
    }


# ----------------------------------------------------------------------------
# Pure-JAX reference (mirrors the PyTorch forward, eval mode)
# ----------------------------------------------------------------------------
def reference_forward(x, adj, params, *, num_heads, temperature=1.0):
    B, S, H = x.shape
    hs = H // num_heads

    def ln(v, w, b):
        mu = v.mean(-1, keepdims=True)
        var = ((v - mu) ** 2).mean(-1, keepdims=True)
        return (v - mu) / jnp.sqrt(var + LN_EPS) * w + b

    xn = ln(x, params["ln1_w"], params["ln1_b"])
    qkv = xn @ params["w_qkv"] + params["in_bias"]
    qkv = qkv.reshape(B, S, num_heads, 3 * hs).transpose(0, 2, 1, 3)
    q, k, v = qkv[..., :hs], qkv[..., hs:2 * hs], qkv[..., 2 * hs:]
    att = jnp.einsum("bhid,bhjd->bhij", q, k) / temperature / (hs ** 0.5)
    att = att + _alibi_bias(num_heads, S)[None]
    att = att + params["gamma"].reshape(1, num_heads, 1, 1) * adj
    att = jax.nn.softmax(att, axis=-1)
    out = jnp.einsum("bhij,bhjd->bhid", att, v)
    out = out.transpose(0, 2, 1, 3).reshape(B, S, H)
    out = out @ params["out_w"].T + params["out_bias"]
    x1 = x + out
    xn2 = ln(x1, params["ln2_w"], params["ln2_b"])
    h1 = xn2 @ params["ffn_w1"].T + params["ffn_b1"]
    h1 = 0.5 * h1 * (1.0 + jax.scipy.special.erf(h1 / jnp.sqrt(2.0)))
    h2 = h1 @ params["ffn_w2"].T + params["ffn_b2"]
    return x1 + h2


if __name__ == "__main__":
    # Small but lane-dense shapes: hidden = 128 keeps output stores full-lane.
    B, S, H, NH = 2, 16, 128, 4
    FFN = 4 * H  # ffn_size default = hidden_dim * 4

    key = jax.random.PRNGKey(0)
    kx, ka, kp = jax.random.split(key, 3)
    x = jax.random.normal(kx, (B, S, H), jnp.float32)
    adj = jax.random.normal(ka, (B, 1, S, S), jnp.float32)
    params = init_params(kp, H, NH, FFN)

    y_ref = reference_forward(x, adj, params, num_heads=NH, temperature=1.0)

    # f32 matmul path (exact reciprocals): tight tolerance against the f32 reference.
    y32 = transformer_encoder_layer(x, adj, params, num_heads=NH, temperature=1.0,
                                    compute_dtype=jnp.float32)
    y32 = jax.block_until_ready(y32)
    err32 = float(jnp.max(jnp.abs(y32 - y_ref)))
    assert y32.shape == (B, S, H)
    assert bool(jnp.isfinite(y32).all())
    assert err32 < 1e-2, f"f32 max abs err {err32}"

    # bf16 MXU path (f32 accumulation, f32 LN/softmax stats, approx EUP reciprocals).
    ybf = transformer_encoder_layer(x, adj, params, num_heads=NH, temperature=1.0,
                                    compute_dtype=jnp.bfloat16)
    ybf = jax.block_until_ready(ybf)
    errbf = float(jnp.max(jnp.abs(ybf - y_ref)))
    assert ybf.shape == (B, S, H)
    assert bool(jnp.isfinite(ybf).all())
    assert errbf < 5e-2, f"bf16 max abs err {errbf}"

    print("KERNEL_OK")
</pallas_src>

<mosaic_0001>
module attributes {stable_mosaic.version = 11 : i64} {
  func.func @_encoder_layer_kernel(%arg0: i32, %arg1: memref<4xf32, #tpu.memory_space<smem>>, %arg2: memref<4xf32, #tpu.memory_space<smem>>, %arg3: memref<2x16x128xf32, #tpu.memory_space<vmem>>, %arg4: memref<2x1x16x16xf32, #tpu.memory_space<vmem>>, %arg5: memref<1x128xf32, #tpu.memory_space<vmem>>, %arg6: memref<1x128xf32, #tpu.memory_space<vmem>>, %arg7: memref<128x384xf32, #tpu.memory_space<vmem>>, %arg8: memref<1x384xf32, #tpu.memory_space<vmem>>, %arg9: memref<128x128xf32, #tpu.memory_space<vmem>>, %arg10: memref<1x128xf32, #tpu.memory_space<vmem>>, %arg11: memref<1x128xf32, #tpu.memory_space<vmem>>, %arg12: memref<1x128xf32, #tpu.memory_space<vmem>>, %arg13: memref<128x512xf32, #tpu.memory_space<vmem>>, %arg14: memref<1x512xf32, #tpu.memory_space<vmem>>, %arg15: memref<512x128xf32, #tpu.memory_space<vmem>>, %arg16: memref<1x128xf32, #tpu.memory_space<vmem>>, %arg17: memref<2x16x128xf32, #tpu.memory_space<vmem>>) attributes {dimension_semantics = [#tpu.dimension_semantics<parallel>], iteration_bounds = array<i64: 1>, scalar_prefetch = 0 : i64, scratch_operands = 0 : i64, tpu.core_type = #tpu.core_type<tc>, window_params = [{transform_indices = @transform_0, window_bounds = array<i64: 4>}, {transform_indices = @transform_1, window_bounds = array<i64: 4>}, {transform_indices = @transform_2, window_bounds = array<i64: 2, 16, 128>}, {transform_indices = @transform_3, window_bounds = array<i64: 2, 1, 16, 16>}, {pipeline_mode = #tpu.pipeline_mode<synchronous>, transform_indices = @transform_4, window_bounds = array<i64: 1, 128>}, {pipeline_mode = #tpu.pipeline_mode<synchronous>, transform_indices = @transform_5, window_bounds = array<i64: 1, 128>}, {pipeline_mode = #tpu.pipeline_mode<synchronous>, transform_indices = @transform_6, window_bounds = array<i64: 128, 384>}, {pipeline_mode = #tpu.pipeline_mode<synchronous>, transform_indices = @transform_7, window_bounds = array<i64: 1, 384>}, {pipeline_mode = #tpu.pipeline_mode<synchronous>, transform_indices = @transform_8, window_bounds = array<i64: 128, 128>}, {pipeline_mode = #tpu.pipeline_mode<synchronous>, transform_indices = @transform_9, window_bounds = array<i64: 1, 128>}, {pipeline_mode = #tpu.pipeline_mode<synchronous>, transform_indices = @transform_10, window_bounds = array<i64: 1, 128>}, {pipeline_mode = #tpu.pipeline_mode<synchronous>, transform_indices = @transform_11, window_bounds = array<i64: 1, 128>}, {pipeline_mode = #tpu.pipeline_mode<synchronous>, transform_indices = @transform_12, window_bounds = array<i64: 128, 512>}, {pipeline_mode = #tpu.pipeline_mode<synchronous>, transform_indices = @transform_13, window_bounds = array<i64: 1, 512>}, {pipeline_mode = #tpu.pipeline_mode<synchronous>, transform_indices = @transform_14, window_bounds = array<i64: 512, 128>}, {pipeline_mode = #tpu.pipeline_mode<synchronous>, transform_indices = @transform_15, window_bounds = array<i64: 1, 128>}, {transform_indices = @transform_16, window_bounds = array<i64: 2, 16, 128>}]} {
    %c0 = arith.constant 0 : index
    %c0_0 = arith.constant 0 : index
    %c0_1 = arith.constant 0 : index
    %0 = vector.load %arg3[%c0, %c0_0, %c0_1] : memref<2x16x128xf32, #tpu.memory_space<vmem>>, vector<2x16x128xf32>
    %1 = vector.shape_cast %0 : vector<2x16x128xf32> to vector<32x128xf32>
    %c0_2 = arith.constant 0 : index
    %c0_3 = arith.constant 0 : index
    %2 = vector.load %arg5[%c0_2, %c0_3] : memref<1x128xf32, #tpu.memory_space<vmem>>, vector<1x128xf32>
    %c0_4 = arith.constant 0 : index
    %c0_5 = arith.constant 0 : index
    %3 = vector.load %arg6[%c0_4, %c0_5] : memref<1x128xf32, #tpu.memory_space<vmem>>, vector<1x128xf32>
    %cst = arith.constant dense<0.000000e+00> : vector<32xf32>
    %4 = vector.multi_reduction <add>, %1, %cst [1] : vector<32x128xf32> to vector<32xf32>
    %5 = vector.shape_cast %4 : vector<32xf32> to vector<32x1xf32>
    %cst_6 = arith.constant 1.280000e+02 : f32
    %6 = vector.broadcast %cst_6 : f32 to vector<32x1xf32>
    %7 = arith.divf %5, %6 : vector<32x1xf32>
    %8 = vector.broadcast %7 : vector<32x1xf32> to vector<32x128xf32>
    %9 = arith.subf %1, %8 : vector<32x128xf32>
    %10 = arith.mulf %9, %9 : vector<32x128xf32>
    %cst_7 = arith.constant dense<0.000000e+00> : vector<32xf32>
    %11 = vector.multi_reduction <add>, %10, %cst_7 [1] : vector<32x128xf32> to vector<32xf32>
    %12 = vector.shape_cast %11 : vector<32xf32> to vector<32x1xf32>
    %cst_8 = arith.constant 1.280000e+02 : f32
    %13 = vector.broadcast %cst_8 : f32 to vector<32x1xf32>
    %14 = arith.divf %12, %13 : vector<32x1xf32>
    %15 = vector.broadcast %7 : vector<32x1xf32> to vector<32x128xf32>
    %16 = arith.subf %1, %15 : vector<32x128xf32>
    %cst_9 = arith.constant 9.99999974E-6 : f32
    %17 = vector.broadcast %cst_9 : f32 to vector<32x1xf32>
    %18 = arith.addf %14, %17 : vector<32x1xf32>
    %19 = math.rsqrt %18 : vector<32x1xf32>
    %20 = vector.broadcast %19 : vector<32x1xf32> to vector<32x128xf32>
    %21 = arith.mulf %16, %20 : vector<32x128xf32>
    %22 = vector.broadcast %2 : vector<1x128xf32> to vector<32x128xf32>
    %23 = arith.mulf %21, %22 : vector<32x128xf32>
    %24 = vector.broadcast %3 : vector<1x128xf32> to vector<32x128xf32>
    %25 = arith.addf %23, %24 : vector<32x128xf32>
    %c0_10 = arith.constant 0 : index
    %c0_11 = arith.constant 0 : index
    %26 = vector.load %arg7[%c0_10, %c0_11] : memref<128x384xf32, #tpu.memory_space<vmem>>, vector<128x384xf32>
    %cst_12 = arith.constant dense<0.000000e+00> : vector<32x384xf32>
    %27 = tpu.matmul %25, %26, %cst_12 {dimension_numbers = #tpu.dot_dimension_numbers<[1], [0], [0], [1], [0, 0, 1, 1], [], []>} : vector<32x128xf32>, vector<128x384xf32>, vector<32x384xf32> -> vector<32x384xf32>
    %c0_13 = arith.constant 0 : index
    %c0_14 = arith.constant 0 : index
    %28 = vector.load %arg8[%c0_13, %c0_14] : memref<1x384xf32, #tpu.memory_space<vmem>>, vector<1x384xf32>
    %29 = vector.broadcast %28 : vector<1x384xf32> to vector<32x384xf32>
    %30 = arith.addf %27, %29 : vector<32x384xf32>
    %31 = tpu.iota {dimensions = array<i32: 0>} : vector<16x16xi32>
    %32 = tpu.iota {dimensions = array<i32: 1>} : vector<16x16xi32>
    %33 = arith.subi %32, %31 : vector<16x16xi32>
    %34 = math.absi %33 : vector<16x16xi32>
    %35 = arith.sitofp %34 : vector<16x16xi32> to vector<16x16xf32>
    %cst_15 = arith.constant 0.000000e+00 : f32
    %36 = vector.broadcast %cst_15 : f32 to vector<16x16xf32>
    %37 = arith.subf %36, %35 : vector<16x16xf32>
    %c0_16 = arith.constant 0 : index
    %c0_17 = arith.constant 0 : index
    %c0_18 = arith.constant 0 : index
    %c0_19 = arith.constant 0 : index
    %38 = vector.load %arg4[%c0_16, %c0_17, %c0_18, %c0_19] : memref<2x1x16x16xf32, #tpu.memory_space<vmem>>, vector<1x1x16x16xf32>
    %39 = vector.shape_cast %38 : vector<1x1x16x16xf32> to vector<16x16xf32>
    %40 = vector.extract_strided_slice %30 {offsets = [0, 0], sizes = [16, 32], strides = [1, 1]} : vector<32x384xf32> to vector<16x32xf32>
    %41 = vector.extract_strided_slice %30 {offsets = [0, 128], sizes = [16, 32], strides = [1, 1]} : vector<32x384xf32> to vector<16x32xf32>
    %42 = vector.extract_strided_slice %30 {offsets = [0, 256], sizes = [16, 32], strides = [1, 1]} : vector<32x384xf32> to vector<16x32xf32>
    %cst_20 = arith.constant dense<0.000000e+00> : vector<16x16xf32>
    %43 = tpu.matmul %40, %41, %cst_20 {dimension_numbers = #tpu.dot_dimension_numbers<[1], [1], [0], [0], [0, 0, 1, 0], [], []>} : vector<16x32xf32>, vector<16x32xf32>, vector<16x16xf32> -> vector<16x16xf32>
    %c0_21 = arith.constant 0 : index
    %44 = memref.load %arg2[%c0_21] : memref<4xf32, #tpu.memory_space<smem>>
    %45 = vector.broadcast %44 : f32 to vector<16x16xf32>
    %46 = arith.mulf %45, %37 : vector<16x16xf32>
    %47 = arith.addf %43, %46 : vector<16x16xf32>
    %c0_22 = arith.constant 0 : index
    %48 = memref.load %arg1[%c0_22] : memref<4xf32, #tpu.memory_space<smem>>
    %49 = vector.broadcast %48 : f32 to vector<16x16xf32>
    %50 = arith.mulf %49, %39 : vector<16x16xf32>
    %51 = arith.addf %47, %50 : vector<16x16xf32>
    %cst_23 = arith.constant dense<0xFF800000> : vector<16xf32>
    %52 = vector.multi_reduction <maximumf>, %51, %cst_23 [1] : vector<16x16xf32> to vector<16xf32>
    %53 = vector.shape_cast %52 : vector<16xf32> to vector<16x1xf32>
    %54 = vector.broadcast %53 : vector<16x1xf32> to vector<16x16xf32>
    %55 = arith.subf %51, %54 : vector<16x16xf32>
    %56 = math.exp %55 : vector<16x16xf32>
    %cst_24 = arith.constant dense<0.000000e+00> : vector<16xf32>
    %57 = vector.multi_reduction <add>, %56, %cst_24 [1] : vector<16x16xf32> to vector<16xf32>
    %58 = vector.shape_cast %57 : vector<16xf32> to vector<16x1xf32>
    %59 = tpu.reciprocal %58 : vector<16x1xf32> -> vector<16x1xf32>
    %60 = vector.broadcast %59 : vector<16x1xf32> to vector<16x16xf32>
    %61 = arith.mulf %56, %60 : vector<16x16xf32>
    %cst_25 = arith.constant dense<0.000000e+00> : vector<16x32xf32>
    %62 = tpu.matmul %61, %42, %cst_25 {dimension_numbers = #tpu.dot_dimension_numbers<[1], [0], [0], [1], [0, 0, 1, 1], [], []>} : vector<16x16xf32>, vector<16x32xf32>, vector<16x32xf32> -> vector<16x32xf32>
    %63 = vector.extract_strided_slice %30 {offsets = [0, 32], sizes = [16, 32], strides = [1, 1]} : vector<32x384xf32> to vector<16x32xf32>
    %64 = vector.extract_strided_slice %30 {offsets = [0, 160], sizes = [16, 32], strides = [1, 1]} : vector<32x384xf32> to vector<16x32xf32>
    %65 = vector.extract_strided_slice %30 {offsets = [0, 288], sizes = [16, 32], strides = [1, 1]} : vector<32x384xf32> to vector<16x32xf32>
    %cst_26 = arith.constant dense<0.000000e+00> : vector<16x16xf32>
    %66 = tpu.matmul %63, %64, %cst_26 {dimension_numbers = #tpu.dot_dimension_numbers<[1], [1], [0], [0], [0, 0, 1, 0], [], []>} : vector<16x32xf32>, vector<16x32xf32>, vector<16x16xf32> -> vector<16x16xf32>
    %c1 = arith.constant 1 : index
    %67 = memref.load %arg2[%c1] : memref<4xf32, #tpu.memory_space<smem>>
    %68 = vector.broadcast %67 : f32 to vector<16x16xf32>
    %69 = arith.mulf %68, %37 : vector<16x16xf32>
    %70 = arith.addf %66, %69 : vector<16x16xf32>
    %c1_27 = arith.constant 1 : index
    %71 = memref.load %arg1[%c1_27] : memref<4xf32, #tpu.memory_space<smem>>
    %72 = vector.broadcast %71 : f32 to vector<16x16xf32>
    %73 = arith.mulf %72, %39 : vector<16x16xf32>
    %74 = arith.addf %70, %73 : vector<16x16xf32>
    %cst_28 = arith.constant dense<0xFF800000> : vector<16xf32>
    %75 = vector.multi_reduction <maximumf>, %74, %cst_28 [1] : vector<16x16xf32> to vector<16xf32>
    %76 = vector.shape_cast %75 : vector<16xf32> to vector<16x1xf32>
    %77 = vector.broadcast %76 : vector<16x1xf32> to vector<16x16xf32>
    %78 = arith.subf %74, %77 : vector<16x16xf32>
    %79 = math.exp %78 : vector<16x16xf32>
    %cst_29 = arith.constant dense<0.000000e+00> : vector<16xf32>
    %80 = vector.multi_reduction <add>, %79, %cst_29 [1] : vector<16x16xf32> to vector<16xf32>
    %81 = vector.shape_cast %80 : vector<16xf32> to vector<16x1xf32>
    %82 = tpu.reciprocal %81 : vector<16x1xf32> -> vector<16x1xf32>
    %83 = vector.broadcast %82 : vector<16x1xf32> to vector<16x16xf32>
    %84 = arith.mulf %79, %83 : vector<16x16xf32>
    %cst_30 = arith.constant dense<0.000000e+00> : vector<16x32xf32>
    %85 = tpu.matmul %84, %65, %cst_30 {dimension_numbers = #tpu.dot_dimension_numbers<[1], [0], [0], [1], [0, 0, 1, 1], [], []>} : vector<16x16xf32>, vector<16x32xf32>, vector<16x32xf32> -> vector<16x32xf32>
    %86 = vector.extract_strided_slice %30 {offsets = [0, 64], sizes = [16, 32], strides = [1, 1]} : vector<32x384xf32> to vector<16x32xf32>
    %87 = vector.extract_strided_slice %30 {offsets = [0, 192], sizes = [16, 32], strides = [1, 1]} : vector<32x384xf32> to vector<16x32xf32>
    %88 = vector.extract_strided_slice %30 {offsets = [0, 320], sizes = [16, 32], strides = [1, 1]} : vector<32x384xf32> to vector<16x32xf32>
    %cst_31 = arith.constant dense<0.000000e+00> : vector<16x16xf32>
    %89 = tpu.matmul %86, %87, %cst_31 {dimension_numbers = #tpu.dot_dimension_numbers<[1], [1], [0], [0], [0, 0, 1, 0], [], []>} : vector<16x32xf32>, vector<16x32xf32>, vector<16x16xf32> -> vector<16x16xf32>
    %c2 = arith.constant 2 : index
    %90 = memref.load %arg2[%c2] : memref<4xf32, #tpu.memory_space<smem>>
    %91 = vector.broadcast %90 : f32 to vector<16x16xf32>
    %92 = arith.mulf %91, %37 : vector<16x16xf32>
    %93 = arith.addf %89, %92 : vector<16x16xf32>
    %c2_32 = arith.constant 2 : index
    %94 = memref.load %arg1[%c2_32] : memref<4xf32, #tpu.memory_space<smem>>
    %95 = vector.broadcast %94 : f32 to vector<16x16xf32>
    %96 = arith.mulf %95, %39 : vector<16x16xf32>
    %97 = arith.addf %93, %96 : vector<16x16xf32>
    %cst_33 = arith.constant dense<0xFF800000> : vector<16xf32>
    %98 = vector.multi_reduction <maximumf>, %97, %cst_33 [1] : vector<16x16xf32> to vector<16xf32>
    %99 = vector.shape_cast %98 : vector<16xf32> to vector<16x1xf32>
    %100 = vector.broadcast %99 : vector<16x1xf32> to vector<16x16xf32>
    %101 = arith.subf %97, %100 : vector<16x16xf32>
    %102 = math.exp %101 : vector<16x16xf32>
    %cst_34 = arith.constant dense<0.000000e+00> : vector<16xf32>
    %103 = vector.multi_reduction <add>, %102, %cst_34 [1] : vector<16x16xf32> to vector<16xf32>
    %104 = vector.shape_cast %103 : vector<16xf32> to vector<16x1xf32>
    %105 = tpu.reciprocal %104 : vector<16x1xf32> -> vector<16x1xf32>
    %106 = vector.broadcast %105 : vector<16x1xf32> to vector<16x16xf32>
    %107 = arith.mulf %102, %106 : vector<16x16xf32>
    %cst_35 = arith.constant dense<0.000000e+00> : vector<16x32xf32>
    %108 = tpu.matmul %107, %88, %cst_35 {dimension_numbers = #tpu.dot_dimension_numbers<[1], [0], [0], [1], [0, 0, 1, 1], [], []>} : vector<16x16xf32>, vector<16x32xf32>, vector<16x32xf32> -> vector<16x32xf32>
    %109 = vector.extract_strided_slice %30 {offsets = [0, 96], sizes = [16, 32], strides = [1, 1]} : vector<32x384xf32> to vector<16x32xf32>
    %110 = vector.extract_strided_slice %30 {offsets = [0, 224], sizes = [16, 32], strides = [1, 1]} : vector<32x384xf32> to vector<16x32xf32>
    %111 = vector.extract_strided_slice %30 {offsets = [0, 352], sizes = [16, 32], strides = [1, 1]} : vector<32x384xf32> to vector<16x32xf32>
    %cst_36 = arith.constant dense<0.000000e+00> : vector<16x16xf32>
    %112 = tpu.matmul %109, %110, %cst_36 {dimension_numbers = #tpu.dot_dimension_numbers<[1], [1], [0], [0], [0, 0, 1, 0], [], []>} : vector<16x32xf32>, vector<16x32xf32>, vector<16x16xf32> -> vector<16x16xf32>
    %c3 = arith.constant 3 : index
    %113 = memref.load %arg2[%c3] : memref<4xf32, #tpu.memory_space<smem>>
    %114 = vector.broadcast %113 : f32 to vector<16x16xf32>
    %115 = arith.mulf %114, %37 : vector<16x16xf32>
    %116 = arith.addf %112, %115 : vector<16x16xf32>
    %c3_37 = arith.constant 3 : index
    %117 = memref.load %arg1[%c3_37] : memref<4xf32, #tpu.memory_space<smem>>
    %118 = vector.broadcast %117 : f32 to vector<16x16xf32>
    %119 = arith.mulf %118, %39 : vector<16x16xf32>
    %120 = arith.addf %116, %119 : vector<16x16xf32>
    %cst_38 = arith.constant dense<0xFF800000> : vector<16xf32>
    %121 = vector.multi_reduction <maximumf>, %120, %cst_38 [1] : vector<16x16xf32> to vector<16xf32>
    %122 = vector.shape_cast %121 : vector<16xf32> to vector<16x1xf32>
    %123 = vector.broadcast %122 : vector<16x1xf32> to vector<16x16xf32>
    %124 = arith.subf %120, %123 : vector<16x16xf32>
    %125 = math.exp %124 : vector<16x16xf32>
    %cst_39 = arith.constant dense<0.000000e+00> : vector<16xf32>
    %126 = vector.multi_reduction <add>, %125, %cst_39 [1] : vector<16x16xf32> to vector<16xf32>
    %127 = vector.shape_cast %126 : vector<16xf32> to vector<16x1xf32>
    %128 = tpu.reciprocal %127 : vector<16x1xf32> -> vector<16x1xf32>
    %129 = vector.broadcast %128 : vector<16x1xf32> to vector<16x16xf32>
    %130 = arith.mulf %125, %129 : vector<16x16xf32>
    %cst_40 = arith.constant dense<0.000000e+00> : vector<16x32xf32>
    %131 = tpu.matmul %130, %111, %cst_40 {dimension_numbers = #tpu.dot_dimension_numbers<[1], [0], [0], [1], [0, 0, 1, 1], [], []>} : vector<16x16xf32>, vector<16x32xf32>, vector<16x32xf32> -> vector<16x32xf32>
    %132 = tpu.concatenate %62, %85, %108, %131 in 1 : vector<16x32xf32>, vector<16x32xf32>, vector<16x32xf32>, vector<16x32xf32> -> vector<16x128xf32>
    %c1_41 = arith.constant 1 : index
    %c0_42 = arith.constant 0 : index
    %c0_43 = arith.constant 0 : index
    %c0_44 = arith.constant 0 : index
    %133 = vector.load %arg4[%c1_41, %c0_42, %c0_43, %c0_44] : memref<2x1x16x16xf32, #tpu.memory_space<vmem>>, vector<1x1x16x16xf32>
    %134 = vector.shape_cast %133 : vector<1x1x16x16xf32> to vector<16x16xf32>
    %135 = vector.extract_strided_slice %30 {offsets = [16, 0], sizes = [16, 32], strides = [1, 1]} : vector<32x384xf32> to vector<16x32xf32>
    %136 = vector.extract_strided_slice %30 {offsets = [16, 128], sizes = [16, 32], strides = [1, 1]} : vector<32x384xf32> to vector<16x32xf32>
    %137 = vector.extract_strided_slice %30 {offsets = [16, 256], sizes = [16, 32], strides = [1, 1]} : vector<32x384xf32> to vector<16x32xf32>
    %cst_45 = arith.constant dense<0.000000e+00> : vector<16x16xf32>
    %138 = tpu.matmul %135, %136, %cst_45 {dimension_numbers = #tpu.dot_dimension_numbers<[1], [1], [0], [0], [0, 0, 1, 0], [], []>} : vector<16x32xf32>, vector<16x32xf32>, vector<16x16xf32> -> vector<16x16xf32>
    %c0_46 = arith.constant 0 : index
    %139 = memref.load %arg2[%c0_46] : memref<4xf32, #tpu.memory_space<smem>>
    %140 = vector.broadcast %139 : f32 to vector<16x16xf32>
    %141 = arith.mulf %140, %37 : vector<16x16xf32>
    %142 = arith.addf %138, %141 : vector<16x16xf32>
    %c0_47 = arith.constant 0 : index
    %143 = memref.load %arg1[%c0_47] : memref<4xf32, #tpu.memory_space<smem>>
    %144 = vector.broadcast %143 : f32 to vector<16x16xf32>
    %145 = arith.mulf %144, %134 : vector<16x16xf32>
    %146 = arith.addf %142, %145 : vector<16x16xf32>
    %cst_48 = arith.constant dense<0xFF800000> : vector<16xf32>
    %147 = vector.multi_reduction <maximumf>, %146, %cst_48 [1] : vector<16x16xf32> to vector<16xf32>
    %148 = vector.shape_cast %147 : vector<16xf32> to vector<16x1xf32>
    %149 = vector.broadcast %148 : vector<16x1xf32> to vector<16x16xf32>
    %150 = arith.subf %146, %149 : vector<16x16xf32>
    %151 = math.exp %150 : vector<16x16xf32>
    %cst_49 = arith.constant dense<0.000000e+00> : vector<16xf32>
    %152 = vector.multi_reduction <add>, %151, %cst_49 [1] : vector<16x16xf32> to vector<16xf32>
    %153 = vector.shape_cast %152 : vector<16xf32> to vector<16x1xf32>
    %154 = tpu.reciprocal %153 : vector<16x1xf32> -> vector<16x1xf32>
    %155 = vector.broadcast %154 : vector<16x1xf32> to vector<16x16xf32>
    %156 = arith.mulf %151, %155 : vector<16x16xf32>
    %cst_50 = arith.constant dense<0.000000e+00> : vector<16x32xf32>
    %157 = tpu.matmul %156, %137, %cst_50 {dimension_numbers = #tpu.dot_dimension_numbers<[1], [0], [0], [1], [0, 0, 1, 1], [], []>} : vector<16x16xf32>, vector<16x32xf32>, vector<16x32xf32> -> vector<16x32xf32>
    %158 = vector.extract_strided_slice %30 {offsets = [16, 32], sizes = [16, 32], strides = [1, 1]} : vector<32x384xf32> to vector<16x32xf32>
    %159 = vector.extract_strided_slice %30 {offsets = [16, 160], sizes = [16, 32], strides = [1, 1]} : vector<32x384xf32> to vector<16x32xf32>
    %160 = vector.extract_strided_slice %30 {offsets = [16, 288], sizes = [16, 32], strides = [1, 1]} : vector<32x384xf32> to vector<16x32xf32>
    %cst_51 = arith.constant dense<0.000000e+00> : vector<16x16xf32>
    %161 = tpu.matmul %158, %159, %cst_51 {dimension_numbers = #tpu.dot_dimension_numbers<[1], [1], [0], [0], [0, 0, 1, 0], [], []>} : vector<16x32xf32>, vector<16x32xf32>, vector<16x16xf32> -> vector<16x16xf32>
    %c1_52 = arith.constant 1 : index
    %162 = memref.load %arg2[%c1_52] : memref<4xf32, #tpu.memory_space<smem>>
    %163 = vector.broadcast %162 : f32 to vector<16x16xf32>
    %164 = arith.mulf %163, %37 : vector<16x16xf32>
    %165 = arith.addf %161, %164 : vector<16x16xf32>
    %c1_53 = arith.constant 1 : index
    %166 = memref.load %arg1[%c1_53] : memref<4xf32, #tpu.memory_space<smem>>
    %167 = vector.broadcast %166 : f32 to vector<16x16xf32>
    %168 = arith.mulf %167, %134 : vector<16x16xf32>
    %169 = arith.addf %165, %168 : vector<16x16xf32>
    %cst_54 = arith.constant dense<0xFF800000> : vector<16xf32>
    %170 = vector.multi_reduction <maximumf>, %169, %cst_54 [1] : vector<16x16xf32> to vector<16xf32>
    %171 = vector.shape_cast %170 : vector<16xf32> to vector<16x1xf32>
    %172 = vector.broadcast %171 : vector<16x1xf32> to vector<16x16xf32>
    %173 = arith.subf %169, %172 : vector<16x16xf32>
    %174 = math.exp %173 : vector<16x16xf32>
    %cst_55 = arith.constant dense<0.000000e+00> : vector<16xf32>
    %175 = vector.multi_reduction <add>, %174, %cst_55 [1] : vector<16x16xf32> to vector<16xf32>
    %176 = vector.shape_cast %175 : vector<16xf32> to vector<16x1xf32>
    %177 = tpu.reciprocal %176 : vector<16x1xf32> -> vector<16x1xf32>
    %178 = vector.broadcast %177 : vector<16x1xf32> to vector<16x16xf32>
    %179 = arith.mulf %174, %178 : vector<16x16xf32>
    %cst_56 = arith.constant dense<0.000000e+00> : vector<16x32xf32>
    %180 = tpu.matmul %179, %160, %cst_56 {dimension_numbers = #tpu.dot_dimension_numbers<[1], [0], [0], [1], [0, 0, 1, 1], [], []>} : vector<16x16xf32>, vector<16x32xf32>, vector<16x32xf32> -> vector<16x32xf32>
    %181 = vector.extract_strided_slice %30 {offsets = [16, 64], sizes = [16, 32], strides = [1, 1]} : vector<32x384xf32> to vector<16x32xf32>
    %182 = vector.extract_strided_slice %30 {offsets = [16, 192], sizes = [16, 32], strides = [1, 1]} : vector<32x384xf32> to vector<16x32xf32>
    %183 = vector.extract_strided_slice %30 {offsets = [16, 320], sizes = [16, 32], strides = [1, 1]} : vector<32x384xf32> to vector<16x32xf32>
    %cst_57 = arith.constant dense<0.000000e+00> : vector<16x16xf32>
    %184 = tpu.matmul %181, %182, %cst_57 {dimension_numbers = #tpu.dot_dimension_numbers<[1], [1], [0], [0], [0, 0, 1, 0], [], []>} : vector<16x32xf32>, vector<16x32xf32>, vector<16x16xf32> -> vector<16x16xf32>
    %c2_58 = arith.constant 2 : index
    %185 = memref.load %arg2[%c2_58] : memref<4xf32, #tpu.memory_space<smem>>
    %186 = vector.broadcast %185 : f32 to vector<16x16xf32>
    %187 = arith.mulf %186, %37 : vector<16x16xf32>
    %188 = arith.addf %184, %187 : vector<16x16xf32>
    %c2_59 = arith.constant 2 : index
    %189 = memref.load %arg1[%c2_59] : memref<4xf32, #tpu.memory_space<smem>>
    %190 = vector.broadcast %189 : f32 to vector<16x16xf32>
    %191 = arith.mulf %190, %134 : vector<16x16xf32>
    %192 = arith.addf %188, %191 : vector<16x16xf32>
    %cst_60 = arith.constant dense<0xFF800000> : vector<16xf32>
    %193 = vector.multi_reduction <maximumf>, %192, %cst_60 [1] : vector<16x16xf32> to vector<16xf32>
    %194 = vector.shape_cast %193 : vector<16xf32> to vector<16x1xf32>
    %195 = vector.broadcast %194 : vector<16x1xf32> to vector<16x16xf32>
    %196 = arith.subf %192, %195 : vector<16x16xf32>
    %197 = math.exp %196 : vector<16x16xf32>
    %cst_61 = arith.constant dense<0.000000e+00> : vector<16xf32>
    %198 = vector.multi_reduction <add>, %197, %cst_61 [1] : vector<16x16xf32> to vector<16xf32>
    %199 = vector.shape_cast %198 : vector<16xf32> to vector<16x1xf32>
    %200 = tpu.reciprocal %199 : vector<16x1xf32> -> vector<16x1xf32>
    %201 = vector.broadcast %200 : vector<16x1xf32> to vector<16x16xf32>
    %202 = arith.mulf %197, %201 : vector<16x16xf32>
    %cst_62 = arith.constant dense<0.000000e+00> : vector<16x32xf32>
    %203 = tpu.matmul %202, %183, %cst_62 {dimension_numbers = #tpu.dot_dimension_numbers<[1], [0], [0], [1], [0, 0, 1, 1], [], []>} : vector<16x16xf32>, vector<16x32xf32>, vector<16x32xf32> -> vector<16x32xf32>
    %204 = vector.extract_strided_slice %30 {offsets = [16, 96], sizes = [16, 32], strides = [1, 1]} : vector<32x384xf32> to vector<16x32xf32>
    %205 = vector.extract_strided_slice %30 {offsets = [16, 224], sizes = [16, 32], strides = [1, 1]} : vector<32x384xf32> to vector<16x32xf32>
    %206 = vector.extract_strided_slice %30 {offsets = [16, 352], sizes = [16, 32], strides = [1, 1]} : vector<32x384xf32> to vector<16x32xf32>
    %cst_63 = arith.constant dense<0.000000e+00> : vector<16x16xf32>
    %207 = tpu.matmul %204, %205, %cst_63 {dimension_numbers = #tpu.dot_dimension_numbers<[1], [1], [0], [0], [0, 0, 1, 0], [], []>} : vector<16x32xf32>, vector<16x32xf32>, vector<16x16xf32> -> vector<16x16xf32>
    %c3_64 = arith.constant 3 : index
    %208 = memref.load %arg2[%c3_64] : memref<4xf32, #tpu.memory_space<smem>>
    %209 = vector.broadcast %208 : f32 to vector<16x16xf32>
    %210 = arith.mulf %209, %37 : vector<16x16xf32>
    %211 = arith.addf %207, %210 : vector<16x16xf32>
    %c3_65 = arith.constant 3 : index
    %212 = memref.load %arg1[%c3_65] : memref<4xf32, #tpu.memory_space<smem>>
    %213 = vector.broadcast %212 : f32 to vector<16x16xf32>
    %214 = arith.mulf %213, %134 : vector<16x16xf32>
    %215 = arith.addf %211, %214 : vector<16x16xf32>
    %cst_66 = arith.constant dense<0xFF800000> : vector<16xf32>
    %216 = vector.multi_reduction <maximumf>, %215, %cst_66 [1] : vector<16x16xf32> to vector<16xf32>
    %217 = vector.shape_cast %216 : vector<16xf32> to vector<16x1xf32>
    %218 = vector.broadcast %217 : vector<16x1xf32> to vector<16x16xf32>
    %219 = arith.subf %215, %218 : vector<16x16xf32>
    %220 = math.exp %219 : vector<16x16xf32>
    %cst_67 = arith.constant dense<0.000000e+00> : vector<16xf32>
    %221 = vector.multi_reduction <add>, %220, %cst_67 [1] : vector<16x16xf32> to vector<16xf32>
    %222 = vector.shape_cast %221 : vector<16xf32> to vector<16x1xf32>
    %223 = tpu.reciprocal %222 : vector<16x1xf32> -> vector<16x1xf32>
    %224 = vector.broadcast %223 : vector<16x1xf32> to vector<16x16xf32>
    %225 = arith.mulf %220, %224 : vector<16x16xf32>
    %cst_68 = arith.constant dense<0.000000e+00> : vector<16x32xf32>
    %226 = tpu.matmul %225, %206, %cst_68 {dimension_numbers = #tpu.dot_dimension_numbers<[1], [0], [0], [1], [0, 0, 1, 1], [], []>} : vector<16x16xf32>, vector<16x32xf32>, vector<16x32xf32> -> vector<16x32xf32>
    %227 = tpu.concatenate %157, %180, %203, %226 in 1 : vector<16x32xf32>, vector<16x32xf32>, vector<16x32xf32>, vector<16x32xf32> -> vector<16x128xf32>
    %228 = tpu.concatenate %132, %227 in 0 : vector<16x128xf32>, vector<16x128xf32> -> vector<32x128xf32>
    %c0_69 = arith.constant 0 : index
    %c0_70 = arith.constant 0 : index
    %229 = vector.load %arg9[%c0_69, %c0_70] : memref<128x128xf32, #tpu.memory_space<vmem>>, vector<128x128xf32>
    %cst_71 = arith.constant dense<0.000000e+00> : vector<32x128xf32>
    %230 = tpu.matmul %228, %229, %cst_71 {dimension_numbers = #tpu.dot_dimension_numbers<[1], [0], [0], [1], [0, 0, 1, 1], [], []>} : vector<32x128xf32>, vector<128x128xf32>, vector<32x128xf32> -> vector<32x128xf32>
    %c0_72 = arith.constant 0 : index
    %c0_73 = arith.constant 0 : index
    %231 = vector.load %arg10[%c0_72, %c0_73] : memref<1x128xf32, #tpu.memory_space<vmem>>, vector<1x128xf32>
    %232 = vector.broadcast %231 : vector<1x128xf32> to vector<32x128xf32>
    %233 = arith.addf %230, %232 : vector<32x128xf32>
    %234 = arith.addf %1, %233 : vector<32x128xf32>
    %c0_74 = arith.constant 0 : index
    %c0_75 = arith.constant 0 : index
    %235 = vector.load %arg11[%c0_74, %c0_75] : memref<1x128xf32, #tpu.memory_space<vmem>>, vector<1x128xf32>
    %c0_76 = arith.constant 0 : index
    %c0_77 = arith.constant 0 : index
    %236 = vector.load %arg12[%c0_76, %c0_77] : memref<1x128xf32, #tpu.memory_space<vmem>>, vector<1x128xf32>
    %cst_78 = arith.constant dense<0.000000e+00> : vector<32xf32>
    %237 = vector.multi_reduction <add>, %234, %cst_78 [1] : vector<32x128xf32> to vector<32xf32>
    %238 = vector.shape_cast %237 : vector<32xf32> to vector<32x1xf32>
    %cst_79 = arith.constant 1.280000e+02 : f32
    %239 = vector.broadcast %cst_79 : f32 to vector<32x1xf32>
    %240 = arith.divf %238, %239 : vector<32x1xf32>
    %241 = vector.broadcast %240 : vector<32x1xf32> to vector<32x128xf32>
    %242 = arith.subf %234, %241 : vector<32x128xf32>
    %243 = arith.mulf %242, %242 : vector<32x128xf32>
    %cst_80 = arith.constant dense<0.000000e+00> : vector<32xf32>
    %244 = vector.multi_reduction <add>, %243, %cst_80 [1] : vector<32x128xf32> to vector<32xf32>
    %245 = vector.shape_cast %244 : vector<32xf32> to vector<32x1xf32>
    %cst_81 = arith.constant 1.280000e+02 : f32
    %246 = vector.broadcast %cst_81 : f32 to vector<32x1xf32>
    %247 = arith.divf %245, %246 : vector<32x1xf32>
    %248 = vector.broadcast %240 : vector<32x1xf32> to vector<32x128xf32>
    %249 = arith.subf %234, %248 : vector<32x128xf32>
    %cst_82 = arith.constant 9.99999974E-6 : f32
    %250 = vector.broadcast %cst_82 : f32 to vector<32x1xf32>
    %251 = arith.addf %247, %250 : vector<32x1xf32>
    %252 = math.rsqrt %251 : vector<32x1xf32>
    %253 = vector.broadcast %252 : vector<32x1xf32> to vector<32x128xf32>
    %254 = arith.mulf %249, %253 : vector<32x128xf32>
    %255 = vector.broadcast %235 : vector<1x128xf32> to vector<32x128xf32>
    %256 = arith.mulf %254, %255 : vector<32x128xf32>
    %257 = vector.broadcast %236 : vector<1x128xf32> to vector<32x128xf32>
    %258 = arith.addf %256, %257 : vector<32x128xf32>
    %c0_83 = arith.constant 0 : index
    %c0_84 = arith.constant 0 : index
    %259 = vector.load %arg13[%c0_83, %c0_84] : memref<128x512xf32, #tpu.memory_space<vmem>>, vector<128x512xf32>
    %cst_85 = arith.constant dense<0.000000e+00> : vector<32x512xf32>
    %260 = tpu.matmul %258, %259, %cst_85 {dimension_numbers = #tpu.dot_dimension_numbers<[1], [0], [0], [1], [0, 0, 1, 1], [], []>} : vector<32x128xf32>, vector<128x512xf32>, vector<32x512xf32> -> vector<32x512xf32>
    %c0_86 = arith.constant 0 : index
    %c0_87 = arith.constant 0 : index
    %261 = vector.load %arg14[%c0_86, %c0_87] : memref<1x512xf32, #tpu.memory_space<vmem>>, vector<1x512xf32>
    %262 = vector.broadcast %261 : vector<1x512xf32> to vector<32x512xf32>
    %263 = arith.addf %260, %262 : vector<32x512xf32>
    %cst_88 = arith.constant 5.000000e-01 : f32
    %264 = vector.broadcast %cst_88 : f32 to vector<32x512xf32>
    %265 = arith.mulf %264, %263 : vector<32x512xf32>
    %cst_89 = arith.constant 0.707106769 : f32
    %266 = vector.broadcast %cst_89 : f32 to vector<32x512xf32>
    %267 = arith.mulf %263, %266 : vector<32x512xf32>
    %cst_90 = arith.constant -3.8325069 : f32
    %cst_91 = arith.constant 3.8325069 : f32
    %268 = vector.broadcast %cst_90 : f32 to vector<32x512xf32>
    %269 = arith.maximumf %268, %267 : vector<32x512xf32>
    %270 = vector.broadcast %cst_91 : f32 to vector<32x512xf32>
    %271 = arith.minimumf %270, %269 : vector<32x512xf32>
    %272 = arith.mulf %271, %271 : vector<32x512xf32>
    %cst_92 = arith.constant -2.72614237E-10 : f32
    %273 = vector.broadcast %cst_92 : f32 to vector<32x512xf32>
    %274 = arith.mulf %273, %272 : vector<32x512xf32>
    %cst_93 = arith.constant 2.77068146E-8 : f32
    %275 = vector.broadcast %cst_93 : f32 to vector<32x512xf32>
    %276 = arith.addf %274, %275 : vector<32x512xf32>
    %277 = arith.mulf %276, %272 : vector<32x512xf32>
    %cst_94 = arith.constant -2.10102394E-6 : f32
    %278 = vector.broadcast %cst_94 : f32 to vector<32x512xf32>
    %279 = arith.addf %277, %278 : vector<32x512xf32>
    %280 = arith.mulf %279, %272 : vector<32x512xf32>
    %cst_95 = arith.constant -5.69250624E-5 : f32
    %281 = vector.broadcast %cst_95 : f32 to vector<32x512xf32>
    %282 = arith.addf %280, %281 : vector<32x512xf32>
    %283 = arith.mulf %282, %272 : vector<32x512xf32>
    %cst_96 = arith.constant -7.34990637E-4 : f32
    %284 = vector.broadcast %cst_96 : f32 to vector<32x512xf32>
    %285 = arith.addf %283, %284 : vector<32x512xf32>
    %286 = arith.mulf %285, %272 : vector<32x512xf32>
    %cst_97 = arith.constant -2.954600e-03 : f32
    %287 = vector.broadcast %cst_97 : f32 to vector<32x512xf32>
    %288 = arith.addf %286, %287 : vector<32x512xf32>
    %289 = arith.mulf %288, %272 : vector<32x512xf32>
    %cst_98 = arith.constant -0.0160960332 : f32
    %290 = vector.broadcast %cst_98 : f32 to vector<32x512xf32>
    %291 = arith.addf %289, %290 : vector<32x512xf32>
    %292 = arith.mulf %291, %271 : vector<32x512xf32>
    %cst_99 = arith.constant -1.45660715E-5 : f32
    %293 = vector.broadcast %cst_99 : f32 to vector<32x512xf32>
    %294 = arith.mulf %293, %272 : vector<32x512xf32>
    %cst_100 = arith.constant -2.13374049E-4 : f32
    %295 = vector.broadcast %cst_100 : f32 to vector<32x512xf32>
    %296 = arith.addf %294, %295 : vector<32x512xf32>
    %297 = arith.mulf %296, %272 : vector<32x512xf32>
    %cst_101 = arith.constant -0.00168282702 : f32
    %298 = vector.broadcast %cst_101 : f32 to vector<32x512xf32>
    %299 = arith.addf %297, %298 : vector<32x512xf32>
    %300 = arith.mulf %299, %272 : vector<32x512xf32>
    %cst_102 = arith.constant -0.00737332925 : f32
    %301 = vector.broadcast %cst_102 : f32 to vector<32x512xf32>
    %302 = arith.addf %300, %301 : vector<32x512xf32>
    %303 = arith.mulf %302, %272 : vector<32x512xf32>
    %cst_103 = arith.constant -0.0142647391 : f32
    %304 = vector.broadcast %cst_103 : f32 to vector<32x512xf32>
    %305 = arith.addf %303, %304 : vector<32x512xf32>
    %306 = tpu.reciprocal %305 : vector<32x512xf32> -> vector<32x512xf32>
    %307 = arith.mulf %292, %306 : vector<32x512xf32>
    %cst_104 = arith.constant 1.000000e+00 : f32
    %308 = vector.broadcast %cst_104 : f32 to vector<32x512xf32>
    %309 = arith.addf %308, %307 : vector<32x512xf32>
    %310 = arith.mulf %265, %309 : vector<32x512xf32>
    %c0_105 = arith.constant 0 : index
    %c0_106 = arith.constant 0 : index
    %311 = vector.load %arg15[%c0_105, %c0_106] : memref<512x128xf32, #tpu.memory_space<vmem>>, vector<512x128xf32>
    %cst_107 = arith.constant dense<0.000000e+00> : vector<32x128xf32>
    %312 = tpu.matmul %310, %311, %cst_107 {dimension_numbers = #tpu.dot_dimension_numbers<[1], [0], [0], [1], [0, 0, 1, 1], [], []>} : vector<32x512xf32>, vector<512x128xf32>, vector<32x128xf32> -> vector<32x128xf32>
    %c0_108 = arith.constant 0 : index
    %c0_109 = arith.constant 0 : index
    %313 = vector.load %arg16[%c0_108, %c0_109] : memref<1x128xf32, #tpu.memory_space<vmem>>, vector<1x128xf32>
    %314 = vector.broadcast %313 : vector<1x128xf32> to vector<32x128xf32>
    %315 = arith.addf %312, %314 : vector<32x128xf32>
    %316 = arith.addf %234, %315 : vector<32x128xf32>
    %317 = vector.shape_cast %316 : vector<32x128xf32> to vector<2x16x128xf32>
    %c0_110 = arith.constant 0 : index
    %c0_111 = arith.constant 0 : index
    %c0_112 = arith.constant 0 : index
    %318 = vector.load %arg17[%c0_110, %c0_111, %c0_112] : memref<2x16x128xf32, #tpu.memory_space<vmem>>, vector<2x16x128xf32>
    tpu.vector_store %arg17[%c0_110, %c0_111, %c0_112], %317 {strides = array<i32>} : memref<2x16x128xf32, #tpu.memory_space<vmem>>, vector<2x16x128xf32>,
    return
  }
  func.func @transform_0(%arg0: i32) -> i32 {
    %c0_i32 = arith.constant 0 : i32
    %c0_i32_0 = arith.constant 0 : i32
    return %c0_i32 : i32
  }
  func.func @transform_1(%arg0: i32) -> i32 {
    %c0_i32 = arith.constant 0 : i32
    %c0_i32_0 = arith.constant 0 : i32
    return %c0_i32 : i32
  }
  func.func @transform_2(%arg0: i32) -> (i32, i32, i32) {
    %c0_i32 = arith.constant 0 : i32
    %c0_i32_0 = arith.constant 0 : i32
    %c0_i32_1 = arith.constant 0 : i32
    return %arg0, %c0_i32, %c0_i32_0 : i32, i32, i32
  }
  func.func @transform_3(%arg0: i32) -> (i32, i32, i32, i32) {
    %c0_i32 = arith.constant 0 : i32
    %c0_i32_0 = arith.constant 0 : i32
    %c0_i32_1 = arith.constant 0 : i32
    %c0_i32_2 = arith.constant 0 : i32
    return %arg0, %c0_i32, %c0_i32_0, %c0_i32_1 : i32, i32, i32, i32
  }
  func.func @transform_4(%arg0: i32) -> (i32, i32) {
    %c0_i32 = arith.constant 0 : i32
    %c0_i32_0 = arith.constant 0 : i32
    %c0_i32_1 = arith.constant 0 : i32
    return %c0_i32, %c0_i32_0 : i32, i32
  }
  func.func @transform_5(%arg0: i32) -> (i32, i32) {
    %c0_i32 = arith.constant 0 : i32
    %c0_i32_0 = arith.constant 0 : i32
    %c0_i32_1 = arith.constant 0 : i32
    return %c0_i32, %c0_i32_0 : i32, i32
  }
  func.func @transform_6(%arg0: i32) -> (i32, i32) {
    %c0_i32 = arith.constant 0 : i32
    %c0_i32_0 = arith.constant 0 : i32
    %c0_i32_1 = arith.constant 0 : i32
    return %c0_i32, %c0_i32_0 : i32, i32
  }
  func.func @transform_7(%arg0: i32) -> (i32, i32) {
    %c0_i32 = arith.constant 0 : i32
    %c0_i32_0 = arith.constant 0 : i32
    %c0_i32_1 = arith.constant 0 : i32
    return %c0_i32, %c0_i32_0 : i32, i32
  }
  func.func @transform_8(%arg0: i32) -> (i32, i32) {
    %c0_i32 = arith.constant 0 : i32
    %c0_i32_0 = arith.constant 0 : i32
    %c0_i32_1 = arith.constant 0 : i32
    return %c0_i32, %c0_i32_0 : i32, i32
  }
  func.func @transform_9(%arg0: i32) -> (i32, i32) {
    %c0_i32 = arith.constant 0 : i32
    %c0_i32_0 = arith.constant 0 : i32
    %c0_i32_1 = arith.constant 0 : i32
    return %c0_i32, %c0_i32_0 : i32, i32
  }
  func.func @transform_10(%arg0: i32) -> (i32, i32) {
    %c0_i32 = arith.constant 0 : i32
    %c0_i32_0 = arith.constant 0 : i32
    %c0_i32_1 = arith.constant 0 : i32
    return %c0_i32, %c0_i32_0 : i32, i32
  }
  func.func @transform_11(%arg0: i32) -> (i32, i32) {
    %c0_i32 = arith.constant 0 : i32
    %c0_i32_0 = arith.constant 0 : i32
    %c0_i32_1 = arith.constant 0 : i32
    return %c0_i32, %c0_i32_0 : i32, i32
  }
  func.func @transform_12(%arg0: i32) -> (i32, i32) {
    %c0_i32 = arith.constant 0 : i32
    %c0_i32_0 = arith.constant 0 : i32
    %c0_i32_1 = arith.constant 0 : i32
    return %c0_i32, %c0_i32_0 : i32, i32
  }
  func.func @transform_13(%arg0: i32) -> (i32, i32) {
    %c0_i32 = arith.constant 0 : i32
    %c0_i32_0 = arith.constant 0 : i32
    %c0_i32_1 = arith.constant 0 : i32
    return %c0_i32, %c0_i32_0 : i32, i32
  }
  func.func @transform_14(%arg0: i32) -> (i32, i32) {
    %c0_i32 = arith.constant 0 : i32
    %c0_i32_0 = arith.constant 0 : i32
    %c0_i32_1 = arith.constant 0 : i32
    return %c0_i32, %c0_i32_0 : i32, i32
  }
  func.func @transform_15(%arg0: i32) -> (i32, i32) {
    %c0_i32 = arith.constant 0 : i32
    %c0_i32_0 = arith.constant 0 : i32
    %c0_i32_1 = arith.constant 0 : i32
    return %c0_i32, %c0_i32_0 : i32, i32
  }
  func.func @transform_16(%arg0: i32) -> (i32, i32, i32) {
    %c0_i32 = arith.constant 0 : i32
    %c0_i32_0 = arith.constant 0 : i32
    %c0_i32_1 = arith.constant 0 : i32
    return %arg0, %c0_i32, %c0_i32_0 : i32, i32, i32
  }
}

</mosaic_0001>

<llo_original>
// kernel: tpu_custom_call.1
$region0: #{tpu_custom_call.1}
  #allocation0 [shape = 'u32[]', space=smem, size = 0x4, offset = 0x4, fixed_abs, tag = 'smem constant byte address 0x4 - core index']
  #allocation1 [shape = 'u32[72,128]{1,0:T(1,128)}', space=vmem, size = 0x9000, scoped, tag = 'internal scratch']
  %s0 = inlined_call_operand.hbm [shape: f32[4], index: 0, kind: input, shape index: {}]
  %s1 = inlined_call_operand.hbm [shape: f32[4], index: 1, kind: input, shape index: {}]
  %s2 = inlined_call_operand.hbm [shape: f32[2,16,128], index: 2, kind: input, shape index: {}]
  %s3 = inlined_call_operand.hbm [shape: f32[2,1,16,16], index: 3, kind: input, shape index: {}]
  %s4 = inlined_call_operand.hbm [shape: f32[1,128], index: 4, kind: input, shape index: {}]
  %s5 = inlined_call_operand.hbm [shape: f32[1,128], index: 5, kind: input, shape index: {}]
  %s6 = inlined_call_operand.hbm [shape: f32[128,384], index: 6, kind: input, shape index: {}]
  %s7 = inlined_call_operand.vmem [shape: f32[1,384], index: 7, kind: input, shape index: {}]
  %s8 = inlined_call_operand.hbm [shape: f32[128,128], index: 8, kind: input, shape index: {}]
  %s9 = inlined_call_operand.vmem [shape: f32[1,128], index: 9, kind: input, shape index: {}]
  %s10 = inlined_call_operand.vmem [shape: f32[1,128], index: 10, kind: input, shape index: {}]
  %s11 = inlined_call_operand.vmem [shape: f32[1,128], index: 11, kind: input, shape index: {}]
  %s12 = inlined_call_operand.hbm [shape: f32[128,512], index: 12, kind: input, shape index: {}]
  %s13 = inlined_call_operand.vmem [shape: f32[1,512], index: 13, kind: input, shape index: {}]
  %s14 = inlined_call_operand.hbm [shape: f32[512,128], index: 14, kind: input, shape index: {}]
  %s15 = inlined_call_operand.vmem [shape: f32[1,128], index: 15, kind: input, shape index: {}]
  %s16 = inlined_call_operand.hbm [shape: f32[2,16,128], index: 16, kind: output, shape index: {}]
  %s17 = sld [smem:[#allocation0]]
  $region114: #{tpu_custom_call.1} parent=0
    _
  %s19 = ssub.s32 1, %s17
  %s20 = scalar_select 0, %s19, %s17
  $region1: #{tpu_custom_call.1} parent=0
    #allocation2 [shape = 'u8[512]{0}', space=smem, size = 0x200, scoped, tag = 'input window, operand 0, single buffered']
    #allocation3 [shape = 's32[1]{0}', space=sflag, size = 0x4, scoped, tag = 'scoped memory for tpu_custom_call.1']
    #allocation4 [shape = 's32[1]{0}', space=sflag, size = 0x4, scoped, tag = 'scoped memory for tpu_custom_call.1']
    #allocation5 [shape = 's32[1]{0}', space=sflag, size = 0x4, scoped, tag = 'scoped memory for tpu_custom_call.1']
    #allocation6 [shape = 'u8[512]{0}', space=smem, size = 0x200, scoped, tag = 'input window, operand 1, single buffered']
    #allocation7 [shape = 's32[1]{0}', space=sflag, size = 0x4, scoped, tag = 'scoped memory for tpu_custom_call.1']
    #allocation8 [shape = 'u8[16384]{0}', space=vmem, size = 0x4000, scoped, tag = 'input window, operand 2, single buffered']
    #allocation9 [shape = 'u8[16384]{0}', space=vmem, size = 0x4000, scoped, tag = 'input window, operand 3, single buffered']
    #allocation10 [shape = 's32[1]{0}', space=sflag, size = 0x4, scoped, tag = 'scoped memory for tpu_custom_call.1']
    #allocation11 [shape = 'u8[512]{0}', space=vmem, size = 0x400, scoped, tag = 'input window, operand 4, single buffered']
    #allocation12 [shape = 'u8[512]{0}', space=vmem, size = 0x400, scoped, tag = 'input window, operand 5, single buffered']
    #allocation13 [shape = 's32[1]{0}', space=sflag, size = 0x4, scoped, tag = 'scoped memory for tpu_custom_call.1']
    #allocation14 [shape = 'u8[196608]{0}', space=vmem, size = 0x30000, scoped, tag = 'input window, operand 6, single buffered']
    #allocation15 [shape = 'u8[65536]{0}', space=vmem, size = 0x10000, scoped, tag = 'input window, operand 8, single buffered']
    #allocation16 [shape = 's32[1]{0}', space=sflag, size = 0x4, scoped, tag = 'scoped memory for tpu_custom_call.1']
    #allocation17 [shape = 'u8[262144]{0}', space=vmem, size = 0x40000, scoped, tag = 'input window, operand 12, single buffered']
    #allocation18 [shape = 'u8[262144]{0}', space=vmem, size = 0x40000, scoped, tag = 'input window, operand 14, single buffered']
    #allocation19 [shape = 's32[1]{0}', space=sflag, size = 0x4, scoped, tag = 'scoped memory for tpu_custom_call.1']
    #allocation20 [shape = 'u8[16384]{0}', space=vmem, size = 0x4000, scoped, tag = 'output window, operand 0, single buffered']
    %21 = vsyncpa [#allocation5], 0
    %22 = vsyncpa [#allocation7], 0
    %23 = vsyncpa [#allocation3], 0
    %24 = vsyncpa [#allocation10], 0
    %25 = vsyncpa [#allocation13], 0
    %26 = vsyncpa [#allocation16], 0
    %27 = vsyncpa [#allocation19], 0
    %28 = vsyncpa [#allocation4], 0
    // Predicated region
    $region2: #{tpu_custom_call.1} parent=1 // pred_check
      _
    $region3: #{tpu_custom_call.1} parent=1 // pred_check_branch
      %30 = sbr.rel (0) target = $region5
    $region4: #{tpu_custom_call.1} parent=1 // pred_region
      %32 = vsyncadd [#allocation5], 0
      %s34 = sshll.u32 %s0, 4
      %s35 = int_to_ptr.hbm [resolvable:$true] %s34
      %37 = dma.hbm_to_smem %s35, 16, [#allocation2], [#allocation5]
    $region5: #{tpu_custom_call.1} parent=1 // pred_fallthru
      _
    // Predicated region
    $region6: #{tpu_custom_call.1} parent=1 // pred_check
      _
    $region7: #{tpu_custom_call.1} parent=1 // pred_check_branch
      %39 = sbr.rel (0) target = $region9
    $region8: #{tpu_custom_call.1} parent=1 // pred_region
      %41 = vsyncadd [#allocation7], 0
      %s43 = sshll.u32 %s1, 4
      %s44 = int_to_ptr.hbm [resolvable:$true] %s43
      %46 = dma.hbm_to_smem %s44, 16, [#allocation6], [#allocation7]
    $region9: #{tpu_custom_call.1} parent=1 // pred_fallthru
      _
    // Predicated region
    $region10: #{tpu_custom_call.1} parent=1 // pred_check
      _
    $region11: #{tpu_custom_call.1} parent=1 // pred_check_branch
      %48 = sbr.rel (0) target = $region13
    $region12: #{tpu_custom_call.1} parent=1 // pred_region
      %50 = vsyncadd [#allocation3], 0
      %s51 = sshll.u32 %s2, 4
      %s52 = int_to_ptr.hbm [resolvable:$true] %s51
      %s53 = sshll.u32 [#allocation8], 4
      %s54 = int_to_ptr.vmem [resolvable:$true] %s53
      %59 = dma.hbm_to_vmem [thread:$0]  %s52, 512, %s54, [#allocation3], 128, 128, 8
    $region13: #{tpu_custom_call.1} parent=1 // pred_fallthru
      _
    // Predicated region
    $region14: #{tpu_custom_call.1} parent=1 // pred_check
      _
    $region15: #{tpu_custom_call.1} parent=1 // pred_check_branch
      %61 = sbr.rel (0) target = $region17
    $region16: #{tpu_custom_call.1} parent=1 // pred_region
      %63 = vsyncadd [#allocation10], 0
      %s64 = sshll.u32 %s3, 4
      %s65 = int_to_ptr.hbm [resolvable:$true] %s64
      %s66 = sshll.u32 [#allocation9], 4
      %s67 = int_to_ptr.vmem [resolvable:$true] %s66
      %72 = dma.hbm_to_vmem [thread:$0]  %s65, 512, %s67, [#allocation10], 128, 128, 8
    $region17: #{tpu_custom_call.1} parent=1 // pred_fallthru
      _
    // Predicated region
    $region18: #{tpu_custom_call.1} parent=1 // pred_check
      _
    $region19: #{tpu_custom_call.1} parent=1 // pred_check_branch
      %74 = sbr.rel (0) target = $region21
    $region20: #{tpu_custom_call.1} parent=1 // pred_region
      %76 = vsyncadd [#allocation10], 0
      %s78 = sshll.u32 %s4, 4
      %s79 = int_to_ptr.hbm [resolvable:$true] %s78
      %s80 = sshll.u32 [#allocation11], 4
      %s81 = int_to_ptr.vmem [resolvable:$true] %s80
      %83 = dma.hbm_to_vmem [thread:$0]  %s79, 16, %s81, [#allocation10]
    $region21: #{tpu_custom_call.1} parent=1 // pred_fallthru
      _
    // Predicated region
    $region22: #{tpu_custom_call.1} parent=1 // pred_check
      _
    $region23: #{tpu_custom_call.1} parent=1 // pred_check_branch
      %85 = sbr.rel (0) target = $region25
    $region24: #{tpu_custom_call.1} parent=1 // pred_region
      %87 = vsyncadd [#allocation13], 0
      %s89 = sshll.u32 %s5, 4
      %s90 = int_to_ptr.hbm [resolvable:$true] %s89
      %s91 = sshll.u32 [#allocation12], 4
      %s92 = int_to_ptr.vmem [resolvable:$true] %s91
      %94 = dma.hbm_to_vmem [thread:$0]  %s90, 16, %s92, [#allocation13]
    $region25: #{tpu_custom_call.1} parent=1 // pred_fallthru
      _
    // Predicated region
    $region26: #{tpu_custom_call.1} parent=1 // pred_check
      _
    $region27: #{tpu_custom_call.1} parent=1 // pred_check_branch
      %96 = sbr.rel (0) target = $region29
    $region28: #{tpu_custom_call.1} parent=1 // pred_region
      %98 = vsyncadd [#allocation13], 0
      %s99 = sshll.u32 %s6, 4
      %s100 = int_to_ptr.hbm [resolvable:$true] %s99
      %s101 = sshll.u32 [#allocation14], 4
      %s102 = int_to_ptr.vmem [resolvable:$true] %s101
      %107 = dma.hbm_to_vmem [thread:$0]  %s100, 6144, %s102, [#allocation13], 384, 384, 24
    $region29: #{tpu_custom_call.1} parent=1 // pred_fallthru
      _
    // Predicated region
    $region30: #{tpu_custom_call.1} parent=1 // pred_check
      _
    $region31: #{tpu_custom_call.1} parent=1 // pred_check_branch
      %109 = sbr.rel (0) target = $region33
    $region32: #{tpu_custom_call.1} parent=1 // pred_region
      _
    $region33: #{tpu_custom_call.1} parent=1 // pred_fallthru
      _
    // Predicated region
    $region34: #{tpu_custom_call.1} parent=1 // pred_check
      _
    $region35: #{tpu_custom_call.1} parent=1 // pred_check_branch
      %111 = sbr.rel (0) target = $region37
    $region36: #{tpu_custom_call.1} parent=1 // pred_region
      %113 = vsyncadd [#allocation16], 0
      %s114 = sshll.u32 %s8, 4
      %s115 = int_to_ptr.hbm [resolvable:$true] %s114
      %s116 = sshll.u32 [#allocation15], 4
      %s117 = int_to_ptr.vmem [resolvable:$true] %s116
      %122 = dma.hbm_to_vmem [thread:$0]  %s115, 2048, %s117, [#allocation16], 128, 128, 8
    $region37: #{tpu_custom_call.1} parent=1 // pred_fallthru
      _
    // Predicated region
    $region38: #{tpu_custom_call.1} parent=1 // pred_check
      _
    $region39: #{tpu_custom_call.1} parent=1 // pred_check_branch
      %124 = sbr.rel (0) target = $region41
    $region40: #{tpu_custom_call.1} parent=1 // pred_region
      _
    $region41: #{tpu_custom_call.1} parent=1 // pred_fallthru
      _
    // Predicated region
    $region42: #{tpu_custom_call.1} parent=1 // pred_check
      _
    $region43: #{tpu_custom_call.1} parent=1 // pred_check_branch
      %126 = sbr.rel (0) target = $region45
    $region44: #{tpu_custom_call.1} parent=1 // pred_region
      _
    $region45: #{tpu_custom_call.1} parent=1 // pred_fallthru
      _
    // Predicated region
    $region46: #{tpu_custom_call.1} parent=1 // pred_check
      _
    $region47: #{tpu_custom_call.1} parent=1 // pred_check_branch
      %128 = sbr.rel (0) target = $region49
    $region48: #{tpu_custom_call.1} parent=1 // pred_region
      _
    $region49: #{tpu_custom_call.1} parent=1 // pred_fallthru
      _
    // Predicated region
    $region50: #{tpu_custom_call.1} parent=1 // pred_check
      _
    $region51: #{tpu_custom_call.1} parent=1 // pred_check_branch
      %130 = sbr.rel (0) target = $region53
    $region52: #{tpu_custom_call.1} parent=1 // pred_region
      %132 = vsyncadd [#allocation16], 0
      %s133 = sshll.u32 %s12, 4
      %s134 = int_to_ptr.hbm [resolvable:$true] %s133
      %s135 = sshll.u32 [#allocation17], 4
      %s136 = int_to_ptr.vmem [resolvable:$true] %s135
      %141 = dma.hbm_to_vmem [thread:$0]  %s134, 8192, %s136, [#allocation16], 512, 512, 32
    $region53: #{tpu_custom_call.1} parent=1 // pred_fallthru
      _
    // Predicated region
    $region54: #{tpu_custom_call.1} parent=1 // pred_check
      _
    $region55: #{tpu_custom_call.1} parent=1 // pred_check_branch
      %143 = sbr.rel (0) target = $region57
    $region56: #{tpu_custom_call.1} parent=1 // pred_region
      _
    $region57: #{tpu_custom_call.1} parent=1 // pred_fallthru
      _
    // Predicated region
    $region58: #{tpu_custom_call.1} parent=1 // pred_check
      _
    $region59: #{tpu_custom_call.1} parent=1 // pred_check_branch
      %145 = sbr.rel (0) target = $region61
    $region60: #{tpu_custom_call.1} parent=1 // pred_region
      %147 = vsyncadd [#allocation19], 0
      %s148 = sshll.u32 %s14, 4
      %s149 = int_to_ptr.hbm [resolvable:$true] %s148
      %s150 = sshll.u32 [#allocation18], 4
      %s151 = int_to_ptr.vmem [resolvable:$true] %s150
      %156 = dma.hbm_to_vmem [thread:$0]  %s149, 8192, %s151, [#allocation19], 128, 128, 8
    $region61: #{tpu_custom_call.1} parent=1 // pred_fallthru
      _
    // Predicated region
    $region62: #{tpu_custom_call.1} parent=1 // pred_check
      _
    $region63: #{tpu_custom_call.1} parent=1 // pred_check_branch
      %158 = sbr.rel (0) target = $region65
    $region64: #{tpu_custom_call.1} parent=1 // pred_region
      _
    $region65: #{tpu_custom_call.1} parent=1 // pred_fallthru
      _
    // Predicated region
    $region66: #{tpu_custom_call.1} parent=1 // pred_check
      _
    $region67: #{tpu_custom_call.1} parent=1 // pred_check_branch
      %160 = sbr.rel (0) target = $region69
    $region68: #{tpu_custom_call.1} parent=1 // pred_region
      %162 = dma.done [#allocation5], 16
    $region69: #{tpu_custom_call.1} parent=1 // pred_fallthru
      _
    // Predicated region
    $region70: #{tpu_custom_call.1} parent=1 // pred_check
      _
    $region71: #{tpu_custom_call.1} parent=1 // pred_check_branch
      %164 = sbr.rel (0) target = $region73
    $region72: #{tpu_custom_call.1} parent=1 // pred_region
      %166 = dma.done [#allocation7], 16
    $region73: #{tpu_custom_call.1} parent=1 // pred_fallthru
      _
    // Predicated region
    $region74: #{tpu_custom_call.1} parent=1 // pred_check
      _
    $region75: #{tpu_custom_call.1} parent=1 // pred_check_branch
      %168 = sbr.rel (0) target = $region77
    $region76: #{tpu_custom_call.1} parent=1 // pred_region
      %170 = dma.done [#allocation3], 512
    $region77: #{tpu_custom_call.1} parent=1 // pred_fallthru
      _
    // Predicated region
    $region78: #{tpu_custom_call.1} parent=1 // pred_check
      _
    $region79: #{tpu_custom_call.1} parent=1 // pred_check_branch
      %172 = sbr.rel (0) target = $region81
    $region80: #{tpu_custom_call.1} parent=1 // pred_region
      %174 = dma.done [#allocation10], 512
    $region81: #{tpu_custom_call.1} parent=1 // pred_fallthru
      _
    // Predicated region
    $region82: #{tpu_custom_call.1} parent=1 // pred_check
      _
    $region83: #{tpu_custom_call.1} parent=1 // pred_check_branch
      %176 = sbr.rel (0) target = $region85
    $region84: #{tpu_custom_call.1} parent=1 // pred_region
      %178 = dma.done [#allocation10], 16
    $region85: #{tpu_custom_call.1} parent=1 // pred_fallthru
      _
    // Predicated region
    $region86: #{tpu_custom_call.1} parent=1 // pred_check
      _
    $region87: #{tpu_custom_call.1} parent=1 // pred_check_branch
      %180 = sbr.rel (0) target = $region89
    $region88: #{tpu_custom_call.1} parent=1 // pred_region
      %182 = dma.done [#allocation13], 16
    $region89: #{tpu_custom_call.1} parent=1 // pred_fallthru
      _
    // Predicated region
    $region90: #{tpu_custom_call.1} parent=1 // pred_check
      _
    $region91: #{tpu_custom_call.1} parent=1 // pred_check_branch
      %184 = sbr.rel (0) target = $region93
    $region92: #{tpu_custom_call.1} parent=1 // pred_region
      %186 = dma.done [#allocation13], 6144
    $region93: #{tpu_custom_call.1} parent=1 // pred_fallthru
      _
    // Predicated region
    $region94: #{tpu_custom_call.1} parent=1 // pred_check
      _
    $region95: #{tpu_custom_call.1} parent=1 // pred_check_branch
      %188 = sbr.rel (0) target = $region97
    $region96: #{tpu_custom_call.1} parent=1 // pred_region
      %190 = dma.done [#allocation16], 2048
    $region97: #{tpu_custom_call.1} parent=1 // pred_fallthru
      _
    // Predicated region
    $region98: #{tpu_custom_call.1} parent=1 // pred_check
      _
    $region99: #{tpu_custom_call.1} parent=1 // pred_check_branch
      %192 = sbr.rel (0) target = $region101
    $region100: #{tpu_custom_call.1} parent=1 // pred_region
      %194 = dma.done [#allocation16], 8192
    $region101: #{tpu_custom_call.1} parent=1 // pred_fallthru
      _
    // Predicated region
    $region102: #{tpu_custom_call.1} parent=1 // pred_check
      _
    $region103: #{tpu_custom_call.1} parent=1 // pred_check_branch
      %196 = sbr.rel (0) target = $region105
    $region104: #{tpu_custom_call.1} parent=1 // pred_region
      %198 = dma.done [#allocation19], 8192
    $region105: #{tpu_custom_call.1} parent=1 // pred_fallthru
      _
    %199 = sfence
    %v200 = vld [vmem:[#allocation8] sm:$0xff]
    %v201 = vld [vmem:[#allocation8 + $0x8] sm:$0xff]
    %v202 = vld [vmem:[#allocation8 + $0x10] sm:$0xff]
    %v203 = vld [vmem:[#allocation8 + $0x18] sm:$0xff]
    %v204 = vld [vmem:[#allocation11] sm:$0x1]
    %v205 = vld [vmem:[#allocation12] sm:$0x1]
    %206 = vadd.xlane.f32.xlu0 %v200
    %v207 = vpop.xlane.xlu0 %206
    %208 = vadd.xlane.f32.xlu0 %v201
    %v209 = vpop.xlane.xlu0 %208
    %210 = vadd.xlane.f32.xlu0 %v202
    %v211 = vpop.xlane.xlu0 %210
    %212 = vadd.xlane.f32.xlu0 %v203
    %v213 = vpop.xlane.xlu0 %212
    %v214 = vrcp.pop 128.0
    %v215 = vmul.f32 128.0, %v214
    %v216 = vsub.f32 1.0, %v215
    %v217 = vmul.f32 %v214, %v216
    %v218 = vadd.f32 %v214, %v217
    %vm219 = vweird.f32 %v214
    %v220 = vsel %vm219, %v214, %v218
    %v221 = vmul.f32 %v207, %v220
    %v222 = vmul.f32 %v209, %v220
    %v223 = vmul.f32 %v211, %v220
    %v224 = vmul.f32 %v213, %v220
    %v225 = vsub.f32 %v200, %v221
    %v226 = vsub.f32 %v201, %v222
    %v227 = vsub.f32 %v202, %v223
    %v228 = vsub.f32 %v203, %v224
    %v229 = vmul.f32 %v225, %v225
    %v230 = vmul.f32 %v226, %v226
    %v231 = vmul.f32 %v227, %v227
    %v232 = vmul.f32 %v228, %v228
    %233 = vadd.xlane.f32.xlu0 %v229
    %v234 = vpop.xlane.xlu0 %233
    %235 = vadd.xlane.f32.xlu0 %v230
    %v236 = vpop.xlane.xlu0 %235
    %237 = vadd.xlane.f32.xlu0 %v231
    %v238 = vpop.xlane.xlu0 %237
    %239 = vadd.xlane.f32.xlu0 %v232
    %v240 = vpop.xlane.xlu0 %239
    %v241 = vmul.f32 %v234, %v220
    %v242 = vmul.f32 %v236, %v220
    %v243 = vmul.f32 %v238, %v220
    %v244 = vmul.f32 %v240, %v220
    %v245 = vadd.f32 %v241, 1e-05
    %v246 = vadd.f32 %v242, 1e-05
    %v247 = vadd.f32 %v243, 1e-05
    %v248 = vadd.f32 %v244, 1e-05
    %v249 = vrsqrt.pop %v245
    %v250 = vmul.f32 %v249, %v245
    %v251 = vmul.f32 %v250, %v249
    %v252 = vmul.f32 0.5, %v251
    %v253 = vsub.f32 1.5, %v252
    %v254 = vmul.f32 %v249, %v253
    %vm255 = vweird.f32 %v245
    %vm256 = vweird.f32 %v249
    %vm257 = vmor %vm255, %vm256
    %v258 = vsel %vm257, %v249, %v254
    %v259 = vrsqrt.pop %v246
    %v260 = vmul.f32 %v259, %v246
    %v261 = vmul.f32 %v260, %v259
    %v262 = vmul.f32 0.5, %v261
    %v263 = vsub.f32 1.5, %v262
    %v264 = vmul.f32 %v259, %v263
    %vm265 = vweird.f32 %v246
    %vm266 = vweird.f32 %v259
    %vm267 = vmor %vm265, %vm266
    %v268 = vsel %vm267, %v259, %v264
    %v269 = vrsqrt.pop %v247
    %v270 = vmul.f32 %v269, %v247
    %v271 = vmul.f32 %v270, %v269
    %v272 = vmul.f32 0.5, %v271
    %v273 = vsub.f32 1.5, %v272
    %v274 = vmul.f32 %v269, %v273
    %vm275 = vweird.f32 %v247
    %vm276 = vweird.f32 %v269
    %vm277 = vmor %vm275, %vm276
    %v278 = vsel %vm277, %v269, %v274
    %v279 = vrsqrt.pop %v248
    %v280 = vmul.f32 %v279, %v248
    %v281 = vmul.f32 %v280, %v279
    %v282 = vmul.f32 0.5, %v281
    %v283 = vsub.f32 1.5, %v282
    %v284 = vmul.f32 %v279, %v283
    %vm285 = vweird.f32 %v248
    %vm286 = vweird.f32 %v279
    %vm287 = vmor %vm285, %vm286
    %v288 = vsel %vm287, %v279, %v284
    %v289 = vmul.f32 %v225, %v258
    %v290 = vmul.f32 %v226, %v268
    %v291 = vmul.f32 %v227, %v278
    %v292 = vmul.f32 %v228, %v288
    %v294 = vperm.slane %v204, 0
    %v296 = vmul.f32 %v289, %v294
    %v297 = vmul.f32 %v290, %v294
    %v298 = vmul.f32 %v291, %v294
    %v299 = vmul.f32 %v292, %v294
    %v301 = vperm.slane %v205, 0
    %v303 = vadd.f32 %v296, %v301
    %v304 = vadd.f32 %v297, %v301
    %v305 = vadd.f32 %v298, %v301
    %v306 = vadd.f32 %v299, %v301
    %v307 = vld [vmem:[#allocation14] sm:$0xff]
    %v308 = vld [vmem:[#allocation14 + $0x8] sm:$0xff]
    %v309 = vld [vmem:[#allocation14 + $0x10] sm:$0xff]
    %v310 = vld [vmem:[#allocation14 + $0x18] sm:$0xff]
    %v311 = vld [vmem:[#allocation14 + $0x20] sm:$0xff]
    %v312 = vld [vmem:[#allocation14 + $0x28] sm:$0xff]
    %v313 = vld [vmem:[#allocation14 + $0x30] sm:$0xff]
    %v314 = vld [vmem:[#allocation14 + $0x38] sm:$0xff]
    %v315 = vld [vmem:[#allocation14 + $0x40] sm:$0xff]
    %v316 = vld [vmem:[#allocation14 + $0x48] sm:$0xff]
    %v317 = vld [vmem:[#allocation14 + $0x50] sm:$0xff]
    %v318 = vld [vmem:[#allocation14 + $0x58] sm:$0xff]
    %v319 = vld [vmem:[#allocation14 + $0x60] sm:$0xff]
    %v320 = vld [vmem:[#allocation14 + $0x68] sm:$0xff]
    %v321 = vld [vmem:[#allocation14 + $0x70] sm:$0xff]
    %v322 = vld [vmem:[#allocation14 + $0x78] sm:$0xff]
    %v323 = vld [vmem:[#allocation14 + $0x80] sm:$0xff]
    %v324 = vld [vmem:[#allocation14 + $0x88] sm:$0xff]
    %v325 = vld [vmem:[#allocation14 + $0x90] sm:$0xff]
    %v326 = vld [vmem:[#allocation14 + $0x98] sm:$0xff]
    %v327 = vld [vmem:[#allocation14 + $0xa0] sm:$0xff]
    %v328 = vld [vmem:[#allocation14 + $0xa8] sm:$0xff]
    %v329 = vld [vmem:[#allocation14 + $0xb0] sm:$0xff]
    %v330 = vld [vmem:[#allocation14 + $0xb8] sm:$0xff]
    %v331 = vld [vmem:[#allocation14 + $0xc0] sm:$0xff]
    %v332 = vld [vmem:[#allocation14 + $0xc8] sm:$0xff]
    %v333 = vld [vmem:[#allocation14 + $0xd0] sm:$0xff]
    %v334 = vld [vmem:[#allocation14 + $0xd8] sm:$0xff]
    %v335 = vld [vmem:[#allocation14 + $0xe0] sm:$0xff]
    %v336 = vld [vmem:[#allocation14 + $0xe8] sm:$0xff]
    %v337 = vld [vmem:[#allocation14 + $0xf0] sm:$0xff]
    %v338 = vld [vmem:[#allocation14 + $0xf8] sm:$0xff]
    %v339 = vld [vmem:[#allocation14 + $0x100] sm:$0xff]
    %v340 = vld [vmem:[#allocation14 + $0x108] sm:$0xff]
    %v341 = vld [vmem:[#allocation14 + $0x110] sm:$0xff]
    %v342 = vld [vmem:[#allocation14 + $0x118] sm:$0xff]
    %v343 = vld [vmem:[#allocation14 + $0x120] sm:$0xff]
    %v344 = vld [vmem:[#allocation14 + $0x128] sm:$0xff]
    %v345 = vld [vmem:[#allocation14 + $0x130] sm:$0xff]
    %v346 = vld [vmem:[#allocation14 + $0x138] sm:$0xff]
    %v347 = vld [vmem:[#allocation14 + $0x140] sm:$0xff]
    %v348 = vld [vmem:[#allocation14 + $0x148] sm:$0xff]
    %v349 = vld [vmem:[#allocation14 + $0x150] sm:$0xff]
    %v350 = vld [vmem:[#allocation14 + $0x158] sm:$0xff]
    %v351 = vld [vmem:[#allocation14 + $0x160] sm:$0xff]
    %v352 = vld [vmem:[#allocation14 + $0x168] sm:$0xff]
    %v353 = vld [vmem:[#allocation14 + $0x170] sm:$0xff]
    %v354 = vld [vmem:[#allocation14 + $0x178] sm:$0xff]
    %v355 = vld [vmem:[%s7] sm:$0x7]
    %v357 = vperm.slane %v355, 0
    %v358 = vperm.slane %v355, 1
    %v359 = vperm.slane %v355, 2
    %363 = vmatpush.msra.mxu0 %v352
    %364 = vmatpush.msra.mxu0 %v349
    %365 = vmatpush.msra.mxu0 %v346
    %366 = vmatpush.msra.mxu0 %v343
    %367 = vmatpush.msra.mxu0 %v340
    %368 = vmatpush.msra.mxu0 %v337
    %369 = vmatpush.msra.mxu0 %v334
    %370 = vmatpush.msra.mxu0 %v331
    %371 = vmatpush.msra.mxu0 %v328
    %372 = vmatpush.msra.mxu0 %v325
    %373 = vmatpush.msra.mxu0 %v322
    %374 = vmatpush.msra.mxu0 %v319
    %375 = vmatpush.msra.mxu0 %v316
    %376 = vmatpush.msra.mxu0 %v313
    %377 = vmatpush.msra.mxu0 %v310
    %378 = vmatpush.msra.mxu0 %v307
    %379 = vmatmul.f32.gmra.mxu0 %v303
    %v380 = vpop.f32.mrf.mxu0
    %v381 = vadd.f32 %v357, %v380
    %382 = vmatmul.f32.gmra.mxu0 %v304
    %v383 = vpop.f32.mrf.mxu0
    %v384 = vadd.f32 %v357, %v383
    %385 = vmatmul.f32.gmra.mxu0 %v305
    %v386 = vpop.f32.mrf.mxu0
    %v387 = vadd.f32 %v357, %v386
    %388 = vmatmul.f32.gmra.mxu0 %v306
    %v389 = vpop.f32.mrf.mxu0
    %v390 = vadd.f32 %v357, %v389
    %391 = vdwg.mxu0
    %392 = vmatpush.msra.mxu0 %v353
    %393 = vmatpush.msra.mxu0 %v350
    %394 = vmatpush.msra.mxu0 %v347
    %395 = vmatpush.msra.mxu0 %v344
    %396 = vmatpush.msra.mxu0 %v341
    %397 = vmatpush.msra.mxu0 %v338
    %398 = vmatpush.msra.mxu0 %v335
    %399 = vmatpush.msra.mxu0 %v332
    %400 = vmatpush.msra.mxu0 %v329
    %401 = vmatpush.msra.mxu0 %v326
    %402 = vmatpush.msra.mxu0 %v323
    %403 = vmatpush.msra.mxu0 %v320
    %404 = vmatpush.msra.mxu0 %v317
    %405 = vmatpush.msra.mxu0 %v314
    %406 = vmatpush.msra.mxu0 %v311
    %407 = vmatpush.msra.mxu0 %v308
    %408 = vmatmul.f32.gmra.mxu0 %v303
    %v409 = vpop.f32.mrf.mxu0
    %v410 = vadd.f32 %v358, %v409
    %411 = vmatmul.f32.gmra.mxu0 %v304
    %v412 = vpop.f32.mrf.mxu0
    %v413 = vadd.f32 %v358, %v412
    %414 = vmatmul.f32.gmra.mxu0 %v305
    %v415 = vpop.f32.mrf.mxu0
    %v416 = vadd.f32 %v358, %v415
    %417 = vmatmul.f32.gmra.mxu0 %v306
    %v418 = vpop.f32.mrf.mxu0
    %v419 = vadd.f32 %v358, %v418
    %420 = vdwg.mxu0
    %421 = vmatpush.msra.mxu0 %v354
    %422 = vmatpush.msra.mxu0 %v351
    %423 = vmatpush.msra.mxu0 %v348
    %424 = vmatpush.msra.mxu0 %v345
    %425 = vmatpush.msra.mxu0 %v342
    %426 = vmatpush.msra.mxu0 %v339
    %427 = vmatpush.msra.mxu0 %v336
    %428 = vmatpush.msra.mxu0 %v333
    %429 = vmatpush.msra.mxu0 %v330
    %430 = vmatpush.msra.mxu0 %v327
    %431 = vmatpush.msra.mxu0 %v324
    %432 = vmatpush.msra.mxu0 %v321
    %433 = vmatpush.msra.mxu0 %v318
    %434 = vmatpush.msra.mxu0 %v315
    %435 = vmatpush.msra.mxu0 %v312
    %436 = vmatpush.msra.mxu0 %v309
    %437 = vmatmul.f32.gmra.mxu0 %v303
    %v438 = vpop.f32.mrf.mxu0
    %v439 = vadd.f32 %v359, %v438
    %440 = vmatmul.f32.gmra.mxu0 %v304
    %v441 = vpop.f32.mrf.mxu0
    %v442 = vadd.f32 %v359, %v441
    %443 = vmatmul.f32.gmra.mxu0 %v305
    %v444 = vpop.f32.mrf.mxu0
    %v445 = vadd.f32 %v359, %v444
    %446 = vmatmul.f32.gmra.mxu0 %v306
    %v447 = vpop.f32.mrf.mxu0
    %v448 = vadd.f32 %v359, %v447
    %449 = vdwg.mxu0
    %v450 = vlaneseq
    %v451 = vshrl.u32 %v450, 7
    %v452 = vadd.s32 %v451, 8
    %v453 = vlaneseq
    %v454 = vand.u32 %v453, 127
    %v455 = vsub.s32 %v454, %v451
    %v456 = vsub.s32 %v454, %v452
    %vm457 = vcmp.lt.s32.totalorder %v455, 0
    %v458 = vsub.s32 0, %v455
    %v459 = vsel %vm457, %v458, %v455
    %vm460 = vcmp.lt.s32.totalorder %v456, 0
    %v461 = vsub.s32 0, %v456
    %v462 = vsel %vm460, %v461, %v456
    %v463 = vcvt.s32.f32 %v459
    %v464 = vcvt.s32.f32 %v462
    %v465 = vsub.f32 0.0, %v463
    %v466 = vsub.f32 0.0, %v464
    %v467 = vld [vmem:[#allocation9] sm:$0xff]
    %v468 = vld [vmem:[#allocation9 + $0x8] sm:$0xff]
    %s469 = sld [smem:[#allocation6]]
    %v470 = vstv %s469
    %v471 = vmul.f32 %v470, %v465
    %v472 = vmul.f32 %v470, %v466
    %vm473 = vcmask 261120
    %v475 = vsel %vm473, %v381, 0
    %v478 = vsel %vm473, %v384, 0
    %v481 = vsel %vm473, %v410, 0
    %v484 = vsel %vm473, %v413, 0
    %486 = vmatpush.xpose.msra.mxu0 0.0
    %487 = vmatpush.xpose.msra.mxu0 0.0
    %488 = vmatpush.xpose.msra.mxu0 0.0
    %489 = vmatpush.xpose.msra.mxu0 0.0
    %490 = vmatpush.xpose.msra.mxu0 0.0
    %491 = vmatpush.xpose.msra.mxu0 0.0
    %492 = vmatpush.xpose.msra.mxu0 0.0
    %493 = vmatpush.xpose.msra.mxu0 0.0
    %494 = vmatpush.xpose.msra.mxu0 0.0
    %495 = vmatpush.xpose.msra.mxu0 0.0
    %496 = vmatpush.xpose.msra.mxu0 0.0
    %497 = vmatpush.xpose.msra.mxu0 0.0
    %498 = vmatpush.xpose.msra.mxu0 0.0
    %499 = vmatpush.xpose.msra.mxu0 0.0
    %500 = vmatpush.xpose.msra.mxu0 %v484
    %501 = vmatpush.xpose.msra.mxu0 %v481
    %502 = vmatmul.f32.gmra.mxu0 %v475
    %v503 = vpop.f32.mrf.mxu0
    %v504 = vadd.f32 %v471, %v503
    %505 = vmatmul.f32.gmra.mxu0 %v478
    %v506 = vpop.f32.mrf.mxu0
    %v507 = vadd.f32 %v472, %v506
    %508 = vdwg.mxu0
    %s509 = sld [smem:[#allocation2]]
    %v510 = vstv %s509
    %v511 = vmul.f32 %v510, %v467
    %v512 = vmul.f32 %v510, %v468
    %v513 = vadd.f32 %v504, %v511
    %v514 = vadd.f32 %v507, %v512
    %vm515 = vcmask 130048
    %v516 = vsel %vm515, %v513, -inf
    %517 = vmax.xlane.f32.xlu0 %v516
    %v518 = vpop.xlane.xlu0 %517
    %v519 = vsel %vm515, %v514, -inf
    %520 = vmax.xlane.f32.xlu0 %v519
    %v521 = vpop.xlane.xlu0 %520
    %v522 = vsub.f32 %v513, %v518
    %v523 = vsub.f32 %v514, %v521
    %v524 = vmul.f32 %v522, 1.442695
    %v525 = vpow.pop %v524
    %v526 = vmul.f32 %v523, 1.442695
    %v527 = vpow.pop %v526
    %v528 = vsel %vm515, %v525, 0.0
    %529 = vadd.xlane.f32.xlu0 %v528
    %v530 = vpop.xlane.xlu0 %529
    %v531 = vsel %vm515, %v527, 0.0
    %532 = vadd.xlane.f32.xlu0 %v531
    %v533 = vpop.xlane.xlu0 %532
    %v534 = vrcp.pop %v530
    %v535 = vmul.f32 %v530, %v534
    %v536 = vsub.f32 1.0, %v535
    %v537 = vmul.f32 %v534, %v536
    %v538 = vadd.f32 %v534, %v537
    %vm539 = vweird.f32 %v530
    %vm540 = vweird.f32 %v534
    %vm541 = vmor %vm539, %vm540
    %v542 = vsel %vm541, %v534, %v538
    %v543 = vand.u32 2147483647, %v530
    %vm544 = vcmp.eq.f32.partialorder %v543, 8.507059e+37
    %v545 = vand.u32 %v530, 2147483648
    %v546 = vor.u32 1.1754944e-38, %v545
    %v547 = vsel %vm544, %v546, %v542
    %v548 = vrcp.pop %v533
    %v549 = vmul.f32 %v533, %v548
    %v550 = vsub.f32 1.0, %v549
    %v551 = vmul.f32 %v548, %v550
    %v552 = vadd.f32 %v548, %v551
    %vm553 = vweird.f32 %v533
    %vm554 = vweird.f32 %v548
    %vm555 = vmor %vm553, %vm554
    %v556 = vsel %vm555, %v548, %v552
    %v557 = vand.u32 2147483647, %v533
    %vm558 = vcmp.eq.f32.partialorder %v557, 8.507059e+37
    %v559 = vand.u32 %v533, 2147483648
    %v560 = vor.u32 1.1754944e-38, %v559
    %v561 = vsel %vm558, %v560, %v556
    %v562 = vmul.f32 %v525, %v547
    %v563 = vmul.f32 %v527, %v561
    %v565 = vsel %vm515, %v562, 0
    %v568 = vsel %vm515, %v563, 0
    %570 = vmatpush.msra.mxu0 0.0
    %571 = vmatpush.msra.mxu0 0.0
    %572 = vmatpush.msra.mxu0 0.0
    %573 = vmatpush.msra.mxu0 0.0
    %574 = vmatpush.msra.mxu0 0.0
    %575 = vmatpush.msra.mxu0 0.0
    %576 = vmatpush.msra.mxu0 0.0
    %577 = vmatpush.msra.mxu0 0.0
    %578 = vmatpush.msra.mxu0 0.0
    %579 = vmatpush.msra.mxu0 0.0
    %580 = vmatpush.msra.mxu0 0.0
    %581 = vmatpush.msra.mxu0 0.0
    %582 = vmatpush.msra.mxu0 0.0
    %583 = vmatpush.msra.mxu0 0.0
    %584 = vmatpush.msra.mxu0 %v442
    %585 = vmatpush.msra.mxu0 %v439
    %586 = vmatmul.f32.gmra.mxu0 %v565
    %v587 = vpop.f32.mrf.mxu0
    %v588 = vadd.f32 0.0, %v587
    %589 = vmatmul.f32.gmra.mxu0 %v568
    %v590 = vpop.f32.mrf.mxu0
    %v591 = vadd.f32 0.0, %v590
    %592 = vdwg.mxu0
    %s593 = sld [smem:[#allocation6 + $0x1]]
    %v594 = vstv %s593
    %v595 = vmul.f32 %v594, %v465
    %v596 = vmul.f32 %v594, %v466
    %597 = vrot.lane.b32.xlu0 %v381, 96
    %v598 = vpop.permute.xlu0 %597
    %599 = vrot.lane.b32.xlu0 %v384, 96
    %v600 = vpop.permute.xlu0 %599
    %601 = vrot.lane.b32.xlu0 %v410, 96
    %v602 = vpop.permute.xlu0 %601
    %603 = vrot.lane.b32.xlu0 %v413, 96
    %v604 = vpop.permute.xlu0 %603
    %v605 = vsel %vm473, %v598, 0
    %v607 = vsel %vm473, %v600, 0
    %v609 = vsel %vm473, %v602, 0
    %v611 = vsel %vm473, %v604, 0
    %613 = vmatpush.xpose.msra.mxu0 0.0
    %614 = vmatpush.xpose.msra.mxu0 0.0
    %615 = vmatpush.xpose.msra.mxu0 0.0
    %616 = vmatpush.xpose.msra.mxu0 0.0
    %617 = vmatpush.xpose.msra.mxu0 0.0
    %618 = vmatpush.xpose.msra.mxu0 0.0
    %619 = vmatpush.xpose.msra.mxu0 0.0
    %620 = vmatpush.xpose.msra.mxu0 0.0
    %621 = vmatpush.xpose.msra.mxu0 0.0
    %622 = vmatpush.xpose.msra.mxu0 0.0
    %623 = vmatpush.xpose.msra.mxu0 0.0
    %624 = vmatpush.xpose.msra.mxu0 0.0
    %625 = vmatpush.xpose.msra.mxu0 0.0
    %626 = vmatpush.xpose.msra.mxu0 0.0
    %627 = vmatpush.xpose.msra.mxu0 %v611
    %628 = vmatpush.xpose.msra.mxu0 %v609
    %629 = vmatmul.f32.gmra.mxu0 %v605
    %v630 = vpop.f32.mrf.mxu0
    %v631 = vadd.f32 %v595, %v630
    %632 = vmatmul.f32.gmra.mxu0 %v607
    %v633 = vpop.f32.mrf.mxu0
    %v634 = vadd.f32 %v596, %v633
    %635 = vdwg.mxu0
    %s636 = sld [smem:[#allocation2 + $0x1]]
    %v637 = vstv %s636
    %v638 = vmul.f32 %v637, %v467
    %v639 = vmul.f32 %v637, %v468
    %v640 = vadd.f32 %v631, %v638
    %v641 = vadd.f32 %v634, %v639
    %v642 = vsel %vm515, %v640, -inf
    %643 = vmax.xlane.f32.xlu0 %v642
    %v644 = vpop.xlane.xlu0 %643
    %v645 = vsel %vm515, %v641, -inf
    %646 = vmax.xlane.f32.xlu0 %v645
    %v647 = vpop.xlane.xlu0 %646
    %v648 = vsub.f32 %v640, %v644
    %v649 = vsub.f32 %v641, %v647
    %v650 = vmul.f32 %v648, 1.442695
    %v651 = vpow.pop %v650
    %v652 = vmul.f32 %v649, 1.442695
    %v653 = vpow.pop %v652
    %v654 = vsel %vm515, %v651, 0.0
    %655 = vadd.xlane.f32.xlu0 %v654
    %v656 = vpop.xlane.xlu0 %655
    %v657 = vsel %vm515, %v653, 0.0
    %658 = vadd.xlane.f32.xlu0 %v657
    %v659 = vpop.xlane.xlu0 %658
    %v660 = vrcp.pop %v656
    %v661 = vmul.f32 %v656, %v660
    %v662 = vsub.f32 1.0, %v661
    %v663 = vmul.f32 %v660, %v662
    %v664 = vadd.f32 %v660, %v663
    %vm665 = vweird.f32 %v656
    %vm666 = vweird.f32 %v660
    %vm667 = vmor %vm665, %vm666
    %v668 = vsel %vm667, %v660, %v664
    %v669 = vand.u32 2147483647, %v656
    %vm670 = vcmp.eq.f32.partialorder %v669, 8.507059e+37
    %v671 = vand.u32 %v656, 2147483648
    %v672 = vor.u32 1.1754944e-38, %v671
    %v673 = vsel %vm670, %v672, %v668
    %v674 = vrcp.pop %v659
    %v675 = vmul.f32 %v659, %v674
    %v676 = vsub.f32 1.0, %v675
    %v677 = vmul.f32 %v674, %v676
    %v678 = vadd.f32 %v674, %v677
    %vm679 = vweird.f32 %v659
    %vm680 = vweird.f32 %v674
    %vm681 = vmor %vm679, %vm680
    %v682 = vsel %vm681, %v674, %v678
    %v683 = vand.u32 2147483647, %v659
    %vm684 = vcmp.eq.f32.partialorder %v683, 8.507059e+37
    %v685 = vand.u32 %v659, 2147483648
    %v686 = vor.u32 1.1754944e-38, %v685
    %v687 = vsel %vm684, %v686, %v682
    %v688 = vmul.f32 %v651, %v673
    %v689 = vmul.f32 %v653, %v687
    %692 = vrot.lane.b32.xlu0 %v439, 96
    %v693 = vpop.permute.xlu0 %692
    %694 = vrot.lane.b32.xlu0 %v442, 96
    %v695 = vpop.permute.xlu0 %694
    %v699 = vsel %vm515, %v688, 0
    %v702 = vsel %vm515, %v689, 0
    %704 = vmatpush.msra.mxu0 0.0
    %705 = vmatpush.msra.mxu0 0.0
    %706 = vmatpush.msra.mxu0 0.0
    %707 = vmatpush.msra.mxu0 0.0
    %708 = vmatpush.msra.mxu0 0.0
    %709 = vmatpush.msra.mxu0 0.0
    %710 = vmatpush.msra.mxu0 0.0
    %711 = vmatpush.msra.mxu0 0.0
    %712 = vmatpush.msra.mxu0 0.0
    %713 = vmatpush.msra.mxu0 0.0
    %714 = vmatpush.msra.mxu0 0.0
    %715 = vmatpush.msra.mxu0 0.0
    %716 = vmatpush.msra.mxu0 0.0
    %717 = vmatpush.msra.mxu0 0.0
    %718 = vmatpush.msra.mxu0 %v695
    %719 = vmatpush.msra.mxu0 %v693
    %720 = vmatmul.f32.gmra.mxu0 %v699
    %v721 = vpop.f32.mrf.mxu0
    %v722 = vadd.f32 0.0, %v721
    %723 = vmatmul.f32.gmra.mxu0 %v702
    %v724 = vpop.f32.mrf.mxu0
    %v725 = vadd.f32 0.0, %v724
    %726 = vdwg.mxu0
    %s727 = sld [smem:[#allocation6 + $0x2]]
    %v728 = vstv %s727
    %v729 = vmul.f32 %v728, %v465
    %v730 = vmul.f32 %v728, %v466
    %731 = vrot.lane.b32.xlu0 %v381, 64
    %v732 = vpop.permute.xlu0 %731
    %733 = vrot.lane.b32.xlu0 %v384, 64
    %v734 = vpop.permute.xlu0 %733
    %735 = vrot.lane.b32.xlu0 %v410, 64
    %v736 = vpop.permute.xlu0 %735
    %737 = vrot.lane.b32.xlu0 %v413, 64
    %v738 = vpop.permute.xlu0 %737
    %v739 = vsel %vm473, %v732, 0
    %v741 = vsel %vm473, %v734, 0
    %v743 = vsel %vm473, %v736, 0
    %v745 = vsel %vm473, %v738, 0
    %747 = vmatpush.xpose.msra.mxu0 0.0
    %748 = vmatpush.xpose.msra.mxu0 0.0
    %749 = vmatpush.xpose.msra.mxu0 0.0
    %750 = vmatpush.xpose.msra.mxu0 0.0
    %751 = vmatpush.xpose.msra.mxu0 0.0
    %752 = vmatpush.xpose.msra.mxu0 0.0
    %753 = vmatpush.xpose.msra.mxu0 0.0
    %754 = vmatpush.xpose.msra.mxu0 0.0
    %755 = vmatpush.xpose.msra.mxu0 0.0
    %756 = vmatpush.xpose.msra.mxu0 0.0
    %757 = vmatpush.xpose.msra.mxu0 0.0
    %758 = vmatpush.xpose.msra.mxu0 0.0
    %759 = vmatpush.xpose.msra.mxu0 0.0
    %760 = vmatpush.xpose.msra.mxu0 0.0
    %761 = vmatpush.xpose.msra.mxu0 %v745
    %762 = vmatpush.xpose.msra.mxu0 %v743
    %763 = vmatmul.f32.gmra.mxu0 %v739
    %v764 = vpop.f32.mrf.mxu0
    %v765 = vadd.f32 %v729, %v764
    %766 = vmatmul.f32.gmra.mxu0 %v741
    %v767 = vpop.f32.mrf.mxu0
    %v768 = vadd.f32 %v730, %v767
    %769 = vdwg.mxu0
    %s770 = sld [smem:[#allocation2 + $0x2]]
    %v771 = vstv %s770
    %v772 = vmul.f32 %v771, %v467
    %v773 = vmul.f32 %v771, %v468
    %v774 = vadd.f32 %v765, %v772
    %v775 = vadd.f32 %v768, %v773
    %v776 = vsel %vm515, %v774, -inf
    %777 = vmax.xlane.f32.xlu0 %v776
    %v778 = vpop.xlane.xlu0 %777
    %v779 = vsel %vm515, %v775, -inf
    %780 = vmax.xlane.f32.xlu0 %v779
    %v781 = vpop.xlane.xlu0 %780
    %v782 = vsub.f32 %v774, %v778
    %v783 = vsub.f32 %v775, %v781
    %v784 = vmul.f32 %v782, 1.442695
    %v785 = vpow.pop %v784
    %v786 = vmul.f32 %v783, 1.442695
    %v787 = vpow.pop %v786
    %v788 = vsel %vm515, %v785, 0.0
    %789 = vadd.xlane.f32.xlu0 %v788
    %v790 = vpop.xlane.xlu0 %789
    %v791 = vsel %vm515, %v787, 0.0
    %792 = vadd.xlane.f32.xlu0 %v791
    %v793 = vpop.xlane.xlu0 %792
    %v794 = vrcp.pop %v790
    %v795 = vmul.f32 %v790, %v794
    %v796 = vsub.f32 1.0, %v795
    %v797 = vmul.f32 %v794, %v796
    %v798 = vadd.f32 %v794, %v797
    %vm799 = vweird.f32 %v790
    %vm800 = vweird.f32 %v794
    %vm801 = vmor %vm799, %vm800
    %v802 = vsel %vm801, %v794, %v798
    %v803 = vand.u32 2147483647, %v790
    %vm804 = vcmp.eq.f32.partialorder %v803, 8.507059e+37
    %v805 = vand.u32 %v790, 2147483648
    %v806 = vor.u32 1.1754944e-38, %v805
    %v807 = vsel %vm804, %v806, %v802
    %v808 = vrcp.pop %v793
    %v809 = vmul.f32 %v793, %v808
    %v810 = vsub.f32 1.0, %v809
    %v811 = vmul.f32 %v808, %v810
    %v812 = vadd.f32 %v808, %v811
    %vm813 = vweird.f32 %v793
    %vm814 = vweird.f32 %v808
    %vm815 = vmor %vm813, %vm814
    %v816 = vsel %vm815, %v808, %v812
    %v817 = vand.u32 2147483647, %v793
    %vm818 = vcmp.eq.f32.partialorder %v817, 8.507059e+37
    %v819 = vand.u32 %v793, 2147483648
    %v820 = vor.u32 1.1754944e-38, %v819
    %v821 = vsel %vm818, %v820, %v816
    %v822 = vmul.f32 %v785, %v807
    %v823 = vmul.f32 %v787, %v821
    %824 = vrot.lane.b32.xlu0 %v439, 64
    %v825 = vpop.permute.xlu0 %824
    %826 = vrot.lane.b32.xlu0 %v442, 64
    %v827 = vpop.permute.xlu0 %826
    %v831 = vsel %vm515, %v822, 0
    %v834 = vsel %vm515, %v823, 0
    %836 = vmatpush.msra.mxu0 0.0
    %837 = vmatpush.msra.mxu0 0.0
    %838 = vmatpush.msra.mxu0 0.0
    %839 = vmatpush.msra.mxu0 0.0
    %840 = vmatpush.msra.mxu0 0.0
    %841 = vmatpush.msra.mxu0 0.0
    %842 = vmatpush.msra.mxu0 0.0
    %843 = vmatpush.msra.mxu0 0.0
    %844 = vmatpush.msra.mxu0 0.0
    %845 = vmatpush.msra.mxu0 0.0
    %846 = vmatpush.msra.mxu0 0.0
    %847 = vmatpush.msra.mxu0 0.0
    %848 = vmatpush.msra.mxu0 0.0
    %849 = vmatpush.msra.mxu0 0.0
    %850 = vmatpush.msra.mxu0 %v827
    %851 = vmatpush.msra.mxu0 %v825
    %852 = vmatmul.f32.gmra.mxu0 %v831
    %v853 = vpop.f32.mrf.mxu0
    %v854 = vadd.f32 0.0, %v853
    %855 = vmatmul.f32.gmra.mxu0 %v834
    %v856 = vpop.f32.mrf.mxu0
    %v857 = vadd.f32 0.0, %v856
    %858 = vdwg.mxu0
    %s859 = sld [smem:[#allocation6 + $0x3]]
    %v860 = vstv %s859
    %v861 = vmul.f32 %v860, %v465
    %v862 = vmul.f32 %v860, %v466
    %863 = vrot.lane.b32.xlu0 %v381, 32
    %v864 = vpop.permute.xlu0 %863
    %865 = vrot.lane.b32.xlu0 %v384, 32
    %v866 = vpop.permute.xlu0 %865
    %867 = vrot.lane.b32.xlu0 %v410, 32
    %v868 = vpop.permute.xlu0 %867
    %869 = vrot.lane.b32.xlu0 %v413, 32
    %v870 = vpop.permute.xlu0 %869
    %v871 = vsel %vm473, %v864, 0
    %v873 = vsel %vm473, %v866, 0
    %v875 = vsel %vm473, %v868, 0
    %v877 = vsel %vm473, %v870, 0
    %879 = vmatpush.xpose.msra.mxu0 0.0
    %880 = vmatpush.xpose.msra.mxu0 0.0
    %881 = vmatpush.xpose.msra.mxu0 0.0
    %882 = vmatpush.xpose.msra.mxu0 0.0
    %883 = vmatpush.xpose.msra.mxu0 0.0
    %884 = vmatpush.xpose.msra.mxu0 0.0
    %885 = vmatpush.xpose.msra.mxu0 0.0
    %886 = vmatpush.xpose.msra.mxu0 0.0
    %887 = vmatpush.xpose.msra.mxu0 0.0
    %888 = vmatpush.xpose.msra.mxu0 0.0
    %889 = vmatpush.xpose.msra.mxu0 0.0
    %890 = vmatpush.xpose.msra.mxu0 0.0
    %891 = vmatpush.xpose.msra.mxu0 0.0
    %892 = vmatpush.xpose.msra.mxu0 0.0
    %893 = vmatpush.xpose.msra.mxu0 %v877
    %894 = vmatpush.xpose.msra.mxu0 %v875
    %895 = vmatmul.f32.gmra.mxu0 %v871
    %v896 = vpop.f32.mrf.mxu0
    %v897 = vadd.f32 %v861, %v896
    %898 = vmatmul.f32.gmra.mxu0 %v873
    %v899 = vpop.f32.mrf.mxu0
    %v900 = vadd.f32 %v862, %v899
    %901 = vdwg.mxu0
    %s902 = sld [smem:[#allocation2 + $0x3]]
    %v903 = vstv %s902
    %v904 = vmul.f32 %v903, %v467
    %v905 = vmul.f32 %v903, %v468
    %v906 = vadd.f32 %v897, %v904
    %v907 = vadd.f32 %v900, %v905
    %v908 = vsel %vm515, %v906, -inf
    %909 = vmax.xlane.f32.xlu0 %v908
    %v910 = vpop.xlane.xlu0 %909
    %v911 = vsel %vm515, %v907, -inf
    %912 = vmax.xlane.f32.xlu0 %v911
    %v913 = vpop.xlane.xlu0 %912
    %v914 = vsub.f32 %v906, %v910
    %v915 = vsub.f32 %v907, %v913
    %v916 = vmul.f32 %v914, 1.442695
    %v917 = vpow.pop %v916
    %v918 = vmul.f32 %v915, 1.442695
    %v919 = vpow.pop %v918
    %v920 = vsel %vm515, %v917, 0.0
    %921 = vadd.xlane.f32.xlu0 %v920
    %v922 = vpop.xlane.xlu0 %921
    %v923 = vsel %vm515, %v919, 0.0
    %924 = vadd.xlane.f32.xlu0 %v923
    %v925 = vpop.xlane.xlu0 %924
    %v926 = vrcp.pop %v922
    %v927 = vmul.f32 %v922, %v926
    %v928 = vsub.f32 1.0, %v927
    %v929 = vmul.f32 %v926, %v928
    %v930 = vadd.f32 %v926, %v929
    %vm931 = vweird.f32 %v922
    %vm932 = vweird.f32 %v926
    %vm933 = vmor %vm931, %vm932
    %v934 = vsel %vm933, %v926, %v930
    %v935 = vand.u32 2147483647, %v922
    %vm936 = vcmp.eq.f32.partialorder %v935, 8.507059e+37
    %v937 = vand.u32 %v922, 2147483648
    %v938 = vor.u32 1.1754944e-38, %v937
    %v939 = vsel %vm936, %v938, %v934
    %v940 = vrcp.pop %v925
    %v941 = vmul.f32 %v925, %v940
    %v942 = vsub.f32 1.0, %v941
    %v943 = vmul.f32 %v940, %v942
    %v944 = vadd.f32 %v940, %v943
    %vm945 = vweird.f32 %v925
    %vm946 = vweird.f32 %v940
    %vm947 = vmor %vm945, %vm946
    %v948 = vsel %vm947, %v940, %v944
    %v949 = vand.u32 2147483647, %v925
    %vm950 = vcmp.eq.f32.partialorder %v949, 8.507059e+37
    %v951 = vand.u32 %v925, 2147483648
    %v952 = vor.u32 1.1754944e-38, %v951
    %v953 = vsel %vm950, %v952, %v948
    %v954 = vmul.f32 %v917, %v939
    %v955 = vmul.f32 %v919, %v953
    %956 = vrot.lane.b32.xlu0 %v439, 32
    %v957 = vpop.permute.xlu0 %956
    %958 = vrot.lane.b32.xlu0 %v442, 32
    %v959 = vpop.permute.xlu0 %958
    %v963 = vsel %vm515, %v954, 0
    %v966 = vsel %vm515, %v955, 0
    %968 = vmatpush.msra.mxu0 0.0
    %969 = vmatpush.msra.mxu0 0.0
    %970 = vmatpush.msra.mxu0 0.0
    %971 = vmatpush.msra.mxu0 0.0
    %972 = vmatpush.msra.mxu0 0.0
    %973 = vmatpush.msra.mxu0 0.0
    %974 = vmatpush.msra.mxu0 0.0
    %975 = vmatpush.msra.mxu0 0.0
    %976 = vmatpush.msra.mxu0 0.0
    %977 = vmatpush.msra.mxu0 0.0
    %978 = vmatpush.msra.mxu0 0.0
    %979 = vmatpush.msra.mxu0 0.0
    %980 = vmatpush.msra.mxu0 0.0
    %981 = vmatpush.msra.mxu0 0.0
    %982 = vmatpush.msra.mxu0 %v959
    %983 = vmatpush.msra.mxu0 %v957
    %984 = vmatmul.f32.gmra.mxu0 %v963
    %v985 = vpop.f32.mrf.mxu0
    %v986 = vadd.f32 0.0, %v985
    %987 = vmatmul.f32.gmra.mxu0 %v966
    %v988 = vpop.f32.mrf.mxu0
    %v989 = vadd.f32 0.0, %v988
    %990 = vdwg.mxu0
    %993 = vrot.lane.b32.xlu0 %v722, 32
    %v994 = vpop.permute.xlu0 %993
    %995 = vrot.lane.b32.xlu0 %v725, 32
    %v996 = vpop.permute.xlu0 %995
    %1001 = vrot.lane.b32.xlu0 %v854, 64
    %v1002 = vpop.permute.xlu0 %1001
    %1003 = vrot.lane.b32.xlu0 %v857, 64
    %v1004 = vpop.permute.xlu0 %1003
    %1009 = vrot.lane.b32.xlu0 %v986, 96
    %v1010 = vpop.permute.xlu0 %1009
    %1011 = vrot.lane.b32.xlu0 %v989, 96
    %v1012 = vpop.permute.xlu0 %1011
    %v1015 = vsel %vm473, %v588, %v994
    %v1016 = vsel %vm473, %v591, %v996
    %vm1017 = vcmask 523264
    %v1018 = vsel %vm1017, %v1015, %v1002
    %v1019 = vsel %vm1017, %v1016, %v1004
    %vm1020 = vcmask 785408
    %v1021 = vsel %vm1020, %v1018, %v1010
    %v1022 = vsel %vm1020, %v1019, %v1012
    %s1023 = scalar_lea.vmem [#allocation9], 16
    %v1024 = vld [vmem:[%s1023] sm:$0xff]
    %v1025 = vld [vmem:[%s1023 + $0x8] sm:$0xff]
    %v1027 = vsel %vm473, %v387, 0
    %v1030 = vsel %vm473, %v390, 0
    %v1033 = vsel %vm473, %v416, 0
    %v1036 = vsel %vm473, %v419, 0
    %1038 = vmatpush.xpose.msra.mxu0 0.0
    %1039 = vmatpush.xpose.msra.mxu0 0.0
    %1040 = vmatpush.xpose.msra.mxu0 0.0
    %1041 = vmatpush.xpose.msra.mxu0 0.0
    %1042 = vmatpush.xpose.msra.mxu0 0.0
    %1043 = vmatpush.xpose.msra.mxu0 0.0
    %1044 = vmatpush.xpose.msra.mxu0 0.0
    %1045 = vmatpush.xpose.msra.mxu0 0.0
    %1046 = vmatpush.xpose.msra.mxu0 0.0
    %1047 = vmatpush.xpose.msra.mxu0 0.0
    %1048 = vmatpush.xpose.msra.mxu0 0.0
    %1049 = vmatpush.xpose.msra.mxu0 0.0
    %1050 = vmatpush.xpose.msra.mxu0 0.0
    %1051 = vmatpush.xpose.msra.mxu0 0.0
    %1052 = vmatpush.xpose.msra.mxu0 %v1036
    %1053 = vmatpush.xpose.msra.mxu0 %v1033
    %1054 = vmatmul.f32.gmra.mxu0 %v1027
    %v1055 = vpop.f32.mrf.mxu0
    %v1056 = vadd.f32 %v471, %v1055
    %1057 = vmatmul.f32.gmra.mxu0 %v1030
    %v1058 = vpop.f32.mrf.mxu0
    %v1059 = vadd.f32 %v472, %v1058
    %1060 = vdwg.mxu0
    %v1061 = vmul.f32 %v510, %v1024
    %v1062 = vmul.f32 %v510, %v1025
    %v1063 = vadd.f32 %v1056, %v1061
    %v1064 = vadd.f32 %v1059, %v1062
    %v1065 = vsel %vm515, %v1063, -inf
    %1066 = vmax.xlane.f32.xlu0 %v1065
    %v1067 = vpop.xlane.xlu0 %1066
    %v1068 = vsel %vm515, %v1064, -inf
    %1069 = vmax.xlane.f32.xlu0 %v1068
    %v1070 = vpop.xlane.xlu0 %1069
    %v1071 = vsub.f32 %v1063, %v1067
    %v1072 = vsub.f32 %v1064, %v1070
    %v1073 = vmul.f32 %v1071, 1.442695
    %v1074 = vpow.pop %v1073
    %v1075 = vmul.f32 %v1072, 1.442695
    %v1076 = vpow.pop %v1075
    %v1077 = vsel %vm515, %v1074, 0.0
    %1078 = vadd.xlane.f32.xlu0 %v1077
    %v1079 = vpop.xlane.xlu0 %1078
    %v1080 = vsel %vm515, %v1076, 0.0
    %1081 = vadd.xlane.f32.xlu0 %v1080
    %v1082 = vpop.xlane.xlu0 %1081
    %v1083 = vrcp.pop %v1079
    %v1084 = vmul.f32 %v1079, %v1083
    %v1085 = vsub.f32 1.0, %v1084
    %v1086 = vmul.f32 %v1083, %v1085
    %v1087 = vadd.f32 %v1083, %v1086
    %vm1088 = vweird.f32 %v1079
    %vm1089 = vweird.f32 %v1083
    %vm1090 = vmor %vm1088, %vm1089
    %v1091 = vsel %vm1090, %v1083, %v1087
    %v1092 = vand.u32 2147483647, %v1079
    %vm1093 = vcmp.eq.f32.partialorder %v1092, 8.507059e+37
    %v1094 = vand.u32 %v1079, 2147483648
    %v1095 = vor.u32 1.1754944e-38, %v1094
    %v1096 = vsel %vm1093, %v1095, %v1091
    %v1097 = vrcp.pop %v1082
    %v1098 = vmul.f32 %v1082, %v1097
    %v1099 = vsub.f32 1.0, %v1098
    %v1100 = vmul.f32 %v1097, %v1099
    %v1101 = vadd.f32 %v1097, %v1100
    %vm1102 = vweird.f32 %v1082
    %vm1103 = vweird.f32 %v1097
    %vm1104 = vmor %vm1102, %vm1103
    %v1105 = vsel %vm1104, %v1097, %v1101
    %v1106 = vand.u32 2147483647, %v1082
    %vm1107 = vcmp.eq.f32.partialorder %v1106, 8.507059e+37
    %v1108 = vand.u32 %v1082, 2147483648
    %v1109 = vor.u32 1.1754944e-38, %v1108
    %v1110 = vsel %vm1107, %v1109, %v1105
    %v1111 = vmul.f32 %v1074, %v1096
    %v1112 = vmul.f32 %v1076, %v1110
    %v1114 = vsel %vm515, %v1111, 0
    %v1117 = vsel %vm515, %v1112, 0
    %1119 = vmatpush.msra.mxu0 0.0
    %1120 = vmatpush.msra.mxu0 0.0
    %1121 = vmatpush.msra.mxu0 0.0
    %1122 = vmatpush.msra.mxu0 0.0
    %1123 = vmatpush.msra.mxu0 0.0
    %1124 = vmatpush.msra.mxu0 0.0
    %1125 = vmatpush.msra.mxu0 0.0
    %1126 = vmatpush.msra.mxu0 0.0
    %1127 = vmatpush.msra.mxu0 0.0
    %1128 = vmatpush.msra.mxu0 0.0
    %1129 = vmatpush.msra.mxu0 0.0
    %1130 = vmatpush.msra.mxu0 0.0
    %1131 = vmatpush.msra.mxu0 0.0
    %1132 = vmatpush.msra.mxu0 0.0
    %1133 = vmatpush.msra.mxu0 %v448
    %1134 = vmatpush.msra.mxu0 %v445
    %1135 = vmatmul.f32.gmra.mxu0 %v1114
    %v1136 = vpop.f32.mrf.mxu0
    %v1137 = vadd.f32 0.0, %v1136
    %1138 = vmatmul.f32.gmra.mxu0 %v1117
    %v1139 = vpop.f32.mrf.mxu0
    %v1140 = vadd.f32 0.0, %v1139
    %1141 = vdwg.mxu0
    %1142 = vrot.lane.b32.xlu0 %v387, 96
    %v1143 = vpop.permute.xlu0 %1142
    %1144 = vrot.lane.b32.xlu0 %v390, 96
    %v1145 = vpop.permute.xlu0 %1144
    %1146 = vrot.lane.b32.xlu0 %v416, 96
    %v1147 = vpop.permute.xlu0 %1146
    %1148 = vrot.lane.b32.xlu0 %v419, 96
    %v1149 = vpop.permute.xlu0 %1148
    %v1150 = vsel %vm473, %v1143, 0
    %v1152 = vsel %vm473, %v1145, 0
    %v1154 = vsel %vm473, %v1147, 0
    %v1156 = vsel %vm473, %v1149, 0
    %1158 = vmatpush.xpose.msra.mxu0 0.0
    %1159 = vmatpush.xpose.msra.mxu0 0.0
    %1160 = vmatpush.xpose.msra.mxu0 0.0
    %1161 = vmatpush.xpose.msra.mxu0 0.0
    %1162 = vmatpush.xpose.msra.mxu0 0.0
    %1163 = vmatpush.xpose.msra.mxu0 0.0
    %1164 = vmatpush.xpose.msra.mxu0 0.0
    %1165 = vmatpush.xpose.msra.mxu0 0.0
    %1166 = vmatpush.xpose.msra.mxu0 0.0
    %1167 = vmatpush.xpose.msra.mxu0 0.0
    %1168 = vmatpush.xpose.msra.mxu0 0.0
    %1169 = vmatpush.xpose.msra.mxu0 0.0
    %1170 = vmatpush.xpose.msra.mxu0 0.0
    %1171 = vmatpush.xpose.msra.mxu0 0.0
    %1172 = vmatpush.xpose.msra.mxu0 %v1156
    %1173 = vmatpush.xpose.msra.mxu0 %v1154
    %1174 = vmatmul.f32.gmra.mxu0 %v1150
    %v1175 = vpop.f32.mrf.mxu0
    %v1176 = vadd.f32 %v595, %v1175
    %1177 = vmatmul.f32.gmra.mxu0 %v1152
    %v1178 = vpop.f32.mrf.mxu0
    %v1179 = vadd.f32 %v596, %v1178
    %1180 = vdwg.mxu0
    %v1181 = vmul.f32 %v637, %v1024
    %v1182 = vmul.f32 %v637, %v1025
    %v1183 = vadd.f32 %v1176, %v1181
    %v1184 = vadd.f32 %v1179, %v1182
    %v1185 = vsel %vm515, %v1183, -inf
    %1186 = vmax.xlane.f32.xlu0 %v1185
    %v1187 = vpop.xlane.xlu0 %1186
    %v1188 = vsel %vm515, %v1184, -inf
    %1189 = vmax.xlane.f32.xlu0 %v1188
    %v1190 = vpop.xlane.xlu0 %1189
    %v1191 = vsub.f32 %v1183, %v1187
    %v1192 = vsub.f32 %v1184, %v1190
    %v1193 = vmul.f32 %v1191, 1.442695
    %v1194 = vpow.pop %v1193
    %v1195 = vmul.f32 %v1192, 1.442695
    %v1196 = vpow.pop %v1195
    %v1197 = vsel %vm515, %v1194, 0.0
    %1198 = vadd.xlane.f32.xlu0 %v1197
    %v1199 = vpop.xlane.xlu0 %1198
    %v1200 = vsel %vm515, %v1196, 0.0
    %1201 = vadd.xlane.f32.xlu0 %v1200
    %v1202 = vpop.xlane.xlu0 %1201
    %v1203 = vrcp.pop %v1199
    %v1204 = vmul.f32 %v1199, %v1203
    %v1205 = vsub.f32 1.0, %v1204
    %v1206 = vmul.f32 %v1203, %v1205
    %v1207 = vadd.f32 %v1203, %v1206
    %vm1208 = vweird.f32 %v1199
    %vm1209 = vweird.f32 %v1203
    %vm1210 = vmor %vm1208, %vm1209
    %v1211 = vsel %vm1210, %v1203, %v1207
    %v1212 = vand.u32 2147483647, %v1199
    %vm1213 = vcmp.eq.f32.partialorder %v1212, 8.507059e+37
    %v1214 = vand.u32 %v1199, 2147483648
    %v1215 = vor.u32 1.1754944e-38, %v1214
    %v1216 = vsel %vm1213, %v1215, %v1211
    %v1217 = vrcp.pop %v1202
    %v1218 = vmul.f32 %v1202, %v1217
    %v1219 = vsub.f32 1.0, %v1218
    %v1220 = vmul.f32 %v1217, %v1219
    %v1221 = vadd.f32 %v1217, %v1220
    %vm1222 = vweird.f32 %v1202
    %vm1223 = vweird.f32 %v1217
    %vm1224 = vmor %vm1222, %vm1223
    %v1225 = vsel %vm1224, %v1217, %v1221
    %v1226 = vand.u32 2147483647, %v1202
    %vm1227 = vcmp.eq.f32.partialorder %v1226, 8.507059e+37
    %v1228 = vand.u32 %v1202, 2147483648
    %v1229 = vor.u32 1.1754944e-38, %v1228
    %v1230 = vsel %vm1227, %v1229, %v1225
    %v1231 = vmul.f32 %v1194, %v1216
    %v1232 = vmul.f32 %v1196, %v1230
    %1235 = vrot.lane.b32.xlu0 %v445, 96
    %v1236 = vpop.permute.xlu0 %1235
    %1237 = vrot.lane.b32.xlu0 %v448, 96
    %v1238 = vpop.permute.xlu0 %1237
    %v1242 = vsel %vm515, %v1231, 0
    %v1245 = vsel %vm515, %v1232, 0
    %1247 = vmatpush.msra.mxu0 0.0
    %1248 = vmatpush.msra.mxu0 0.0
    %1249 = vmatpush.msra.mxu0 0.0
    %1250 = vmatpush.msra.mxu0 0.0
    %1251 = vmatpush.msra.mxu0 0.0
    %1252 = vmatpush.msra.mxu0 0.0
    %1253 = vmatpush.msra.mxu0 0.0
    %1254 = vmatpush.msra.mxu0 0.0
    %1255 = vmatpush.msra.mxu0 0.0
    %1256 = vmatpush.msra.mxu0 0.0
    %1257 = vmatpush.msra.mxu0 0.0
    %1258 = vmatpush.msra.mxu0 0.0
    %1259 = vmatpush.msra.mxu0 0.0
    %1260 = vmatpush.msra.mxu0 0.0
    %1261 = vmatpush.msra.mxu0 %v1238
    %1262 = vmatpush.msra.mxu0 %v1236
    %1263 = vmatmul.f32.gmra.mxu0 %v1242
    %v1264 = vpop.f32.mrf.mxu0
    %v1265 = vadd.f32 0.0, %v1264
    %1266 = vmatmul.f32.gmra.mxu0 %v1245
    %v1267 = vpop.f32.mrf.mxu0
    %v1268 = vadd.f32 0.0, %v1267
    %1269 = vdwg.mxu0
    %1270 = vrot.lane.b32.xlu0 %v387, 64
    %v1271 = vpop.permute.xlu0 %1270
    %1272 = vrot.lane.b32.xlu0 %v390, 64
    %v1273 = vpop.permute.xlu0 %1272
    %1274 = vrot.lane.b32.xlu0 %v416, 64
    %v1275 = vpop.permute.xlu0 %1274
    %1276 = vrot.lane.b32.xlu0 %v419, 64
    %v1277 = vpop.permute.xlu0 %1276
    %v1278 = vsel %vm473, %v1271, 0
    %v1280 = vsel %vm473, %v1273, 0
    %v1282 = vsel %vm473, %v1275, 0
    %v1284 = vsel %vm473, %v1277, 0
    %1286 = vmatpush.xpose.msra.mxu0 0.0
    %1287 = vmatpush.xpose.msra.mxu0 0.0
    %1288 = vmatpush.xpose.msra.mxu0 0.0
    %1289 = vmatpush.xpose.msra.mxu0 0.0
    %1290 = vmatpush.xpose.msra.mxu0 0.0
    %1291 = vmatpush.xpose.msra.mxu0 0.0
    %1292 = vmatpush.xpose.msra.mxu0 0.0
    %1293 = vmatpush.xpose.msra.mxu0 0.0
    %1294 = vmatpush.xpose.msra.mxu0 0.0
    %1295 = vmatpush.xpose.msra.mxu0 0.0
    %1296 = vmatpush.xpose.msra.mxu0 0.0
    %1297 = vmatpush.xpose.msra.mxu0 0.0
    %1298 = vmatpush.xpose.msra.mxu0 0.0
    %1299 = vmatpush.xpose.msra.mxu0 0.0
    %1300 = vmatpush.xpose.msra.mxu0 %v1284
    %1301 = vmatpush.xpose.msra.mxu0 %v1282
    %1302 = vmatmul.f32.gmra.mxu0 %v1278
    %v1303 = vpop.f32.mrf.mxu0
    %v1304 = vadd.f32 %v729, %v1303
    %1305 = vmatmul.f32.gmra.mxu0 %v1280
    %v1306 = vpop.f32.mrf.mxu0
    %v1307 = vadd.f32 %v730, %v1306
    %1308 = vdwg.mxu0
    %v1309 = vmul.f32 %v771, %v1024
    %v1310 = vmul.f32 %v771, %v1025
    %v1311 = vadd.f32 %v1304, %v1309
    %v1312 = vadd.f32 %v1307, %v1310
    %v1313 = vsel %vm515, %v1311, -inf
    %1314 = vmax.xlane.f32.xlu0 %v1313
    %v1315 = vpop.xlane.xlu0 %1314
    %v1316 = vsel %vm515, %v1312, -inf
    %1317 = vmax.xlane.f32.xlu0 %v1316
    %v1318 = vpop.xlane.xlu0 %1317
    %v1319 = vsub.f32 %v1311, %v1315
    %v1320 = vsub.f32 %v1312, %v1318
    %v1321 = vmul.f32 %v1319, 1.442695
    %v1322 = vpow.pop %v1321
    %v1323 = vmul.f32 %v1320, 1.442695
    %v1324 = vpow.pop %v1323
    %v1325 = vsel %vm515, %v1322, 0.0
    %1326 = vadd.xlane.f32.xlu0 %v1325
    %v1327 = vpop.xlane.xlu0 %1326
    %v1328 = vsel %vm515, %v1324, 0.0
    %1329 = vadd.xlane.f32.xlu0 %v1328
    %v1330 = vpop.xlane.xlu0 %1329
    %v1331 = vrcp.pop %v1327
    %v1332 = vmul.f32 %v1327, %v1331
    %v1333 = vsub.f32 1.0, %v1332
    %v1334 = vmul.f32 %v1331, %v1333
    %v1335 = vadd.f32 %v1331, %v1334
    %vm1336 = vweird.f32 %v1327
    %vm1337 = vweird.f32 %v1331
    %vm1338 = vmor %vm1336, %vm1337
    %v1339 = vsel %vm1338, %v1331, %v1335
    %v1340 = vand.u32 2147483647, %v1327
    %vm1341 = vcmp.eq.f32.partialorder %v1340, 8.507059e+37
    %v1342 = vand.u32 %v1327, 2147483648
    %v1343 = vor.u32 1.1754944e-38, %v1342
    %v1344 = vsel %vm1341, %v1343, %v1339
    %v1345 = vrcp.pop %v1330
    %v1346 = vmul.f32 %v1330, %v1345
    %v1347 = vsub.f32 1.0, %v1346
    %v1348 = vmul.f32 %v1345, %v1347
    %v1349 = vadd.f32 %v1345, %v1348
    %vm1350 = vweird.f32 %v1330
    %vm1351 = vweird.f32 %v1345
    %vm1352 = vmor %vm1350, %vm1351
    %v1353 = vsel %vm1352, %v1345, %v1349
    %v1354 = vand.u32 2147483647, %v1330
    %vm1355 = vcmp.eq.f32.partialorder %v1354, 8.507059e+37
    %v1356 = vand.u32 %v1330, 2147483648
    %v1357 = vor.u32 1.1754944e-38, %v1356
    %v1358 = vsel %vm1355, %v1357, %v1353
    %v1359 = vmul.f32 %v1322, %v1344
    %v1360 = vmul.f32 %v1324, %v1358
    %1361 = vrot.lane.b32.xlu0 %v445, 64
    %v1362 = vpop.permute.xlu0 %1361
    %1363 = vrot.lane.b32.xlu0 %v448, 64
    %v1364 = vpop.permute.xlu0 %1363
    %v1368 = vsel %vm515, %v1359, 0
    %v1371 = vsel %vm515, %v1360, 0
    %1373 = vmatpush.msra.mxu0 0.0
    %1374 = vmatpush.msra.mxu0 0.0
    %1375 = vmatpush.msra.mxu0 0.0
    %1376 = vmatpush.msra.mxu0 0.0
    %1377 = vmatpush.msra.mxu0 0.0
    %1378 = vmatpush.msra.mxu0 0.0
    %1379 = vmatpush.msra.mxu0 0.0
    %1380 = vmatpush.msra.mxu0 0.0
    %1381 = vmatpush.msra.mxu0 0.0
    %1382 = vmatpush.msra.mxu0 0.0
    %1383 = vmatpush.msra.mxu0 0.0
    %1384 = vmatpush.msra.mxu0 0.0
    %1385 = vmatpush.msra.mxu0 0.0
    %1386 = vmatpush.msra.mxu0 0.0
    %1387 = vmatpush.msra.mxu0 %v1364
    %1388 = vmatpush.msra.mxu0 %v1362
    %1389 = vmatmul.f32.gmra.mxu0 %v1368
    %v1390 = vpop.f32.mrf.mxu0
    %v1391 = vadd.f32 0.0, %v1390
    %1392 = vmatmul.f32.gmra.mxu0 %v1371
    %v1393 = vpop.f32.mrf.mxu0
    %v1394 = vadd.f32 0.0, %v1393
    %1395 = vdwg.mxu0
    %1396 = vrot.lane.b32.xlu0 %v387, 32
    %v1397 = vpop.permute.xlu0 %1396
    %1398 = vrot.lane.b32.xlu0 %v390, 32
    %v1399 = vpop.permute.xlu0 %1398
    %1400 = vrot.lane.b32.xlu0 %v416, 32
    %v1401 = vpop.permute.xlu0 %1400
    %1402 = vrot.lane.b32.xlu0 %v419, 32
    %v1403 = vpop.permute.xlu0 %1402
    %v1404 = vsel %vm473, %v1397, 0
    %v1406 = vsel %vm473, %v1399, 0
    %v1408 = vsel %vm473, %v1401, 0
    %v1410 = vsel %vm473, %v1403, 0
    %1412 = vmatpush.xpose.msra.mxu0 0.0
    %1413 = vmatpush.xpose.msra.mxu0 0.0
    %1414 = vmatpush.xpose.msra.mxu0 0.0
    %1415 = vmatpush.xpose.msra.mxu0 0.0
    %1416 = vmatpush.xpose.msra.mxu0 0.0
    %1417 = vmatpush.xpose.msra.mxu0 0.0
    %1418 = vmatpush.xpose.msra.mxu0 0.0
    %1419 = vmatpush.xpose.msra.mxu0 0.0
    %1420 = vmatpush.xpose.msra.mxu0 0.0
    %1421 = vmatpush.xpose.msra.mxu0 0.0
    %1422 = vmatpush.xpose.msra.mxu0 0.0
    %1423 = vmatpush.xpose.msra.mxu0 0.0
    %1424 = vmatpush.xpose.msra.mxu0 0.0
    %1425 = vmatpush.xpose.msra.mxu0 0.0
    %1426 = vmatpush.xpose.msra.mxu0 %v1410
    %1427 = vmatpush.xpose.msra.mxu0 %v1408
    %1428 = vmatmul.f32.gmra.mxu0 %v1404
    %v1429 = vpop.f32.mrf.mxu0
    %v1430 = vadd.f32 %v861, %v1429
    %1431 = vmatmul.f32.gmra.mxu0 %v1406
    %v1432 = vpop.f32.mrf.mxu0
    %v1433 = vadd.f32 %v862, %v1432
    %1434 = vdwg.mxu0
    %v1435 = vmul.f32 %v903, %v1024
    %v1436 = vmul.f32 %v903, %v1025
    %v1437 = vadd.f32 %v1430, %v1435
    %v1438 = vadd.f32 %v1433, %v1436
    %v1439 = vsel %vm515, %v1437, -inf
    %1440 = vmax.xlane.f32.xlu0 %v1439
    %v1441 = vpop.xlane.xlu0 %1440
    %v1442 = vsel %vm515, %v1438, -inf
    %1443 = vmax.xlane.f32.xlu0 %v1442
    %v1444 = vpop.xlane.xlu0 %1443
    %v1445 = vsub.f32 %v1437, %v1441
    %v1446 = vsub.f32 %v1438, %v1444
    %v1447 = vmul.f32 %v1445, 1.442695
    %v1448 = vpow.pop %v1447
    %v1449 = vmul.f32 %v1446, 1.442695
    %v1450 = vpow.pop %v1449
    %v1451 = vsel %vm515, %v1448, 0.0
    %1452 = vadd.xlane.f32.xlu0 %v1451
    %v1453 = vpop.xlane.xlu0 %1452
    %v1454 = vsel %vm515, %v1450, 0.0
    %1455 = vadd.xlane.f32.xlu0 %v1454
    %v1456 = vpop.xlane.xlu0 %1455
    %v1457 = vrcp.pop %v1453
    %v1458 = vmul.f32 %v1453, %v1457
    %v1459 = vsub.f32 1.0, %v1458
    %v1460 = vmul.f32 %v1457, %v1459
    %v1461 = vadd.f32 %v1457, %v1460
    %vm1462 = vweird.f32 %v1453
    %vm1463 = vweird.f32 %v1457
    %vm1464 = vmor %vm1462, %vm1463
    %v1465 = vsel %vm1464, %v1457, %v1461
    %v1466 = vand.u32 2147483647, %v1453
    %vm1467 = vcmp.eq.f32.partialorder %v1466, 8.507059e+37
    %v1468 = vand.u32 %v1453, 2147483648
    %v1469 = vor.u32 1.1754944e-38, %v1468
    %v1470 = vsel %vm1467, %v1469, %v1465
    %v1471 = vrcp.pop %v1456
    %v1472 = vmul.f32 %v1456, %v1471
    %v1473 = vsub.f32 1.0, %v1472
    %v1474 = vmul.f32 %v1471, %v1473
    %v1475 = vadd.f32 %v1471, %v1474
    %vm1476 = vweird.f32 %v1456
    %vm1477 = vweird.f32 %v1471
    %vm1478 = vmor %vm1476, %vm1477
    %v1479 = vsel %vm1478, %v1471, %v1475
    %v1480 = vand.u32 2147483647, %v1456
    %vm1481 = vcmp.eq.f32.partialorder %v1480, 8.507059e+37
    %v1482 = vand.u32 %v1456, 2147483648
    %v1483 = vor.u32 1.1754944e-38, %v1482
    %v1484 = vsel %vm1481, %v1483, %v1479
    %v1485 = vmul.f32 %v1448, %v1470
    %v1486 = vmul.f32 %v1450, %v1484
    %1487 = vrot.lane.b32.xlu0 %v445, 32
    %v1488 = vpop.permute.xlu0 %1487
    %1489 = vrot.lane.b32.xlu0 %v448, 32
    %v1490 = vpop.permute.xlu0 %1489
    %v1494 = vsel %vm515, %v1485, 0
    %v1497 = vsel %vm515, %v1486, 0
    %1499 = vmatpush.msra.mxu0 0.0
    %1500 = vmatpush.msra.mxu0 0.0
    %1501 = vmatpush.msra.mxu0 0.0
    %1502 = vmatpush.msra.mxu0 0.0
    %1503 = vmatpush.msra.mxu0 0.0
    %1504 = vmatpush.msra.mxu0 0.0
    %1505 = vmatpush.msra.mxu0 0.0
    %1506 = vmatpush.msra.mxu0 0.0
    %1507 = vmatpush.msra.mxu0 0.0
    %1508 = vmatpush.msra.mxu0 0.0
    %1509 = vmatpush.msra.mxu0 0.0
    %1510 = vmatpush.msra.mxu0 0.0
    %1511 = vmatpush.msra.mxu0 0.0
    %1512 = vmatpush.msra.mxu0 0.0
    %1513 = vmatpush.msra.mxu0 %v1490
    %1514 = vmatpush.msra.mxu0 %v1488
    %1515 = vmatmul.f32.gmra.mxu0 %v1494
    %v1516 = vpop.f32.mrf.mxu0
    %v1517 = vadd.f32 0.0, %v1516
    %1518 = vmatmul.f32.gmra.mxu0 %v1497
    %v1519 = vpop.f32.mrf.mxu0
    %v1520 = vadd.f32 0.0, %v1519
    %1521 = vdwg.mxu0
    %1524 = vrot.lane.b32.xlu0 %v1265, 32
    %v1525 = vpop.permute.xlu0 %1524
    %1526 = vrot.lane.b32.xlu0 %v1268, 32
    %v1527 = vpop.permute.xlu0 %1526
    %1532 = vrot.lane.b32.xlu0 %v1391, 64
    %v1533 = vpop.permute.xlu0 %1532
    %1534 = vrot.lane.b32.xlu0 %v1394, 64
    %v1535 = vpop.permute.xlu0 %1534
    %1540 = vrot.lane.b32.xlu0 %v1517, 96
    %v1541 = vpop.permute.xlu0 %1540
    %1542 = vrot.lane.b32.xlu0 %v1520, 96
    %v1543 = vpop.permute.xlu0 %1542
    %v1546 = vsel %vm473, %v1137, %v1525
    %v1547 = vsel %vm473, %v1140, %v1527
    %v1548 = vsel %vm1017, %v1546, %v1533
    %v1549 = vsel %vm1017, %v1547, %v1535
    %v1550 = vsel %vm1020, %v1548, %v1541
    %v1551 = vsel %vm1020, %v1549, %v1543
    %v1552 = vld [vmem:[#allocation15] sm:$0xff]
    %v1553 = vld [vmem:[#allocation15 + $0x8] sm:$0xff]
    %v1554 = vld [vmem:[#allocation15 + $0x10] sm:$0xff]
    %v1555 = vld [vmem:[#allocation15 + $0x18] sm:$0xff]
    %v1556 = vld [vmem:[#allocation15 + $0x20] sm:$0xff]
    %v1557 = vld [vmem:[#allocation15 + $0x28] sm:$0xff]
    %v1558 = vld [vmem:[#allocation15 + $0x30] sm:$0xff]
    %v1559 = vld [vmem:[#allocation15 + $0x38] sm:$0xff]
    %v1560 = vld [vmem:[#allocation15 + $0x40] sm:$0xff]
    %v1561 = vld [vmem:[#allocation15 + $0x48] sm:$0xff]
    %v1562 = vld [vmem:[#allocation15 + $0x50] sm:$0xff]
    %v1563 = vld [vmem:[#allocation15 + $0x58] sm:$0xff]
    %v1564 = vld [vmem:[#allocation15 + $0x60] sm:$0xff]
    %v1565 = vld [vmem:[#allocation15 + $0x68] sm:$0xff]
    %v1566 = vld [vmem:[#allocation15 + $0x70] sm:$0xff]
    %v1567 = vld [vmem:[#allocation15 + $0x78] sm:$0xff]
    %v1568 = vld [vmem:[%s9] sm:$0x1]
    %v1570 = vperm.slane %v1568, 0
    %1572 = vmatpush.msra.mxu0 %v1567
    %1573 = vmatpush.msra.mxu0 %v1566
    %1574 = vmatpush.msra.mxu0 %v1565
    %1575 = vmatpush.msra.mxu0 %v1564
    %1576 = vmatpush.msra.mxu0 %v1563
    %1577 = vmatpush.msra.mxu0 %v1562
    %1578 = vmatpush.msra.mxu0 %v1561
    %1579 = vmatpush.msra.mxu0 %v1560
    %1580 = vmatpush.msra.mxu0 %v1559
    %1581 = vmatpush.msra.mxu0 %v1558
    %1582 = vmatpush.msra.mxu0 %v1557
    %1583 = vmatpush.msra.mxu0 %v1556
    %1584 = vmatpush.msra.mxu0 %v1555
    %1585 = vmatpush.msra.mxu0 %v1554
    %1586 = vmatpush.msra.mxu0 %v1553
    %1587 = vmatpush.msra.mxu0 %v1552
    %1588 = vmatmul.f32.gmra.mxu0 %v1021
    %v1589 = vpop.f32.mrf.mxu0
    %v1590 = vadd.f32 %v1570, %v1589
    %1591 = vmatmul.f32.gmra.mxu0 %v1022
    %v1592 = vpop.f32.mrf.mxu0
    %v1593 = vadd.f32 %v1570, %v1592
    %1594 = vmatmul.f32.gmra.mxu0 %v1550
    %v1595 = vpop.f32.mrf.mxu0
    %v1596 = vadd.f32 %v1570, %v1595
    %1597 = vmatmul.f32.gmra.mxu0 %v1551
    %v1598 = vpop.f32.mrf.mxu0
    %v1599 = vadd.f32 %v1570, %v1598
    %1600 = vdwg.mxu0
    %v1601 = vadd.f32 %v200, %v1590
    %v1602 = vadd.f32 %v201, %v1593
    %v1603 = vadd.f32 %v202, %v1596
    %v1604 = vadd.f32 %v203, %v1599
    %v1605 = vld [vmem:[%s10] sm:$0x1]
    %v1606 = vld [vmem:[%s11] sm:$0x1]
    %1607 = vadd.xlane.f32.xlu0 %v1601
    %v1608 = vpop.xlane.xlu0 %1607
    %1609 = vadd.xlane.f32.xlu0 %v1602
    %v1610 = vpop.xlane.xlu0 %1609
    %1611 = vadd.xlane.f32.xlu0 %v1603
    %v1612 = vpop.xlane.xlu0 %1611
    %1613 = vadd.xlane.f32.xlu0 %v1604
    %v1614 = vpop.xlane.xlu0 %1613
    %v1615 = vmul.f32 %v1608, %v220
    %v1616 = vmul.f32 %v1610, %v220
    %v1617 = vmul.f32 %v1612, %v220
    %v1618 = vmul.f32 %v1614, %v220
    %v1619 = vsub.f32 %v1601, %v1615
    %v1620 = vsub.f32 %v1602, %v1616
    %v1621 = vsub.f32 %v1603, %v1617
    %v1622 = vsub.f32 %v1604, %v1618
    %v1623 = vmul.f32 %v1619, %v1619
    %v1624 = vmul.f32 %v1620, %v1620
    %v1625 = vmul.f32 %v1621, %v1621
    %v1626 = vmul.f32 %v1622, %v1622
    %1627 = vadd.xlane.f32.xlu0 %v1623
    %v1628 = vpop.xlane.xlu0 %1627
    %1629 = vadd.xlane.f32.xlu0 %v1624
    %v1630 = vpop.xlane.xlu0 %1629
    %1631 = vadd.xlane.f32.xlu0 %v1625
    %v1632 = vpop.xlane.xlu0 %1631
    %1633 = vadd.xlane.f32.xlu0 %v1626
    %v1634 = vpop.xlane.xlu0 %1633
    %v1635 = vmul.f32 %v1628, %v220
    %v1636 = vmul.f32 %v1630, %v220
    %v1637 = vmul.f32 %v1632, %v220
    %v1638 = vmul.f32 %v1634, %v220
    %v1639 = vadd.f32 %v1635, 1e-05
    %v1640 = vadd.f32 %v1636, 1e-05
    %v1641 = vadd.f32 %v1637, 1e-05
    %v1642 = vadd.f32 %v1638, 1e-05
    %v1643 = vrsqrt.pop %v1639
    %v1644 = vmul.f32 %v1643, %v1639
    %v1645 = vmul.f32 %v1644, %v1643
    %v1646 = vmul.f32 0.5, %v1645
    %v1647 = vsub.f32 1.5, %v1646
    %v1648 = vmul.f32 %v1643, %v1647
    %vm1649 = vweird.f32 %v1639
    %vm1650 = vweird.f32 %v1643
    %vm1651 = vmor %vm1649, %vm1650
    %v1652 = vsel %vm1651, %v1643, %v1648
    %v1653 = vrsqrt.pop %v1640
    %v1654 = vmul.f32 %v1653, %v1640
    %v1655 = vmul.f32 %v1654, %v1653
    %v1656 = vmul.f32 0.5, %v1655
    %v1657 = vsub.f32 1.5, %v1656
    %v1658 = vmul.f32 %v1653, %v1657
    %vm1659 = vweird.f32 %v1640
    %vm1660 = vweird.f32 %v1653
    %vm1661 = vmor %vm1659, %vm1660
    %v1662 = vsel %vm1661, %v1653, %v1658
    %v1663 = vrsqrt.pop %v1641
    %v1664 = vmul.f32 %v1663, %v1641
    %v1665 = vmul.f32 %v1664, %v1663
    %v1666 = vmul.f32 0.5, %v1665
    %v1667 = vsub.f32 1.5, %v1666
    %v1668 = vmul.f32 %v1663, %v1667
    %vm1669 = vweird.f32 %v1641
    %vm1670 = vweird.f32 %v1663
    %vm1671 = vmor %vm1669, %vm1670
    %v1672 = vsel %vm1671, %v1663, %v1668
    %v1673 = vrsqrt.pop %v1642
    %v1674 = vmul.f32 %v1673, %v1642
    %v1675 = vmul.f32 %v1674, %v1673
    %v1676 = vmul.f32 0.5, %v1675
    %v1677 = vsub.f32 1.5, %v1676
    %v1678 = vmul.f32 %v1673, %v1677
    %vm1679 = vweird.f32 %v1642
    %vm1680 = vweird.f32 %v1673
    %vm1681 = vmor %vm1679, %vm1680
    %v1682 = vsel %vm1681, %v1673, %v1678
    %v1683 = vmul.f32 %v1619, %v1652
    %v1684 = vmul.f32 %v1620, %v1662
    %v1685 = vmul.f32 %v1621, %v1672
    %v1686 = vmul.f32 %v1622, %v1682
    %v1688 = vperm.slane %v1605, 0
    %v1690 = vmul.f32 %v1683, %v1688
    %v1691 = vmul.f32 %v1684, %v1688
    %v1692 = vmul.f32 %v1685, %v1688
    %v1693 = vmul.f32 %v1686, %v1688
    %v1695 = vperm.slane %v1606, 0
    %v1697 = vadd.f32 %v1690, %v1695
    %v1698 = vadd.f32 %v1691, %v1695
    %v1699 = vadd.f32 %v1692, %v1695
    %v1700 = vadd.f32 %v1693, %v1695
    %v1701 = vld [vmem:[#allocation17] sm:$0xff]
    %v1702 = vld [vmem:[#allocation17 + $0x8] sm:$0xff]
    %v1703 = vld [vmem:[#allocation17 + $0x10] sm:$0xff]
    %v1704 = vld [vmem:[#allocation17 + $0x18] sm:$0xff]
    %v1705 = vld [vmem:[#allocation17 + $0x20] sm:$0xff]
    %v1706 = vld [vmem:[#allocation17 + $0x28] sm:$0xff]
    %v1707 = vld [vmem:[#allocation17 + $0x30] sm:$0xff]
    %v1708 = vld [vmem:[#allocation17 + $0x38] sm:$0xff]
    %v1709 = vld [vmem:[#allocation17 + $0x40] sm:$0xff]
    %v1710 = vld [vmem:[#allocation17 + $0x48] sm:$0xff]
    %v1711 = vld [vmem:[#allocation17 + $0x50] sm:$0xff]
    %v1712 = vld [vmem:[#allocation17 + $0x58] sm:$0xff]
    %v1713 = vld [vmem:[#allocation17 + $0x60] sm:$0xff]
    %v1714 = vld [vmem:[#allocation17 + $0x68] sm:$0xff]
    %v1715 = vld [vmem:[#allocation17 + $0x70] sm:$0xff]
    %v1716 = vld [vmem:[#allocation17 + $0x78] sm:$0xff]
    %v1717 = vld [vmem:[#allocation17 + $0x80] sm:$0xff]
    %v1718 = vld [vmem:[#allocation17 + $0x88] sm:$0xff]
    %v1719 = vld [vmem:[#allocation17 + $0x90] sm:$0xff]
    %v1720 = vld [vmem:[#allocation17 + $0x98] sm:$0xff]
    %v1721 = vld [vmem:[#allocation17 + $0xa0] sm:$0xff]
    %v1722 = vld [vmem:[#allocation17 + $0xa8] sm:$0xff]
    %v1723 = vld [vmem:[#allocation17 + $0xb0] sm:$0xff]
    %v1724 = vld [vmem:[#allocation17 + $0xb8] sm:$0xff]
    %v1725 = vld [vmem:[#allocation17 + $0xc0] sm:$0xff]
    %v1726 = vld [vmem:[#allocation17 + $0xc8] sm:$0xff]
    %v1727 = vld [vmem:[#allocation17 + $0xd0] sm:$0xff]
    %v1728 = vld [vmem:[#allocation17 + $0xd8] sm:$0xff]
    %v1729 = vld [vmem:[#allocation17 + $0xe0] sm:$0xff]
    %v1730 = vld [vmem:[#allocation17 + $0xe8] sm:$0xff]
    %v1731 = vld [vmem:[#allocation17 + $0xf0] sm:$0xff]
    %v1732 = vld [vmem:[#allocation17 + $0xf8] sm:$0xff]
    %v1733 = vld [vmem:[#allocation17 + $0x100] sm:$0xff]
    %v1734 = vld [vmem:[#allocation17 + $0x108] sm:$0xff]
    %v1735 = vld [vmem:[#allocation17 + $0x110] sm:$0xff]
    %v1736 = vld [vmem:[#allocation17 + $0x118] sm:$0xff]
    %v1737 = vld [vmem:[#allocation17 + $0x120] sm:$0xff]
    %v1738 = vld [vmem:[#allocation17 + $0x128] sm:$0xff]
    %v1739 = vld [vmem:[#allocation17 + $0x130] sm:$0xff]
    %v1740 = vld [vmem:[#allocation17 + $0x138] sm:$0xff]
    %v1741 = vld [vmem:[#allocation17 + $0x140] sm:$0xff]
    %v1742 = vld [vmem:[#allocation17 + $0x148] sm:$0xff]
    %v1743 = vld [vmem:[#allocation17 + $0x150] sm:$0xff]
    %v1744 = vld [vmem:[#allocation17 + $0x158] sm:$0xff]
    %v1745 = vld [vmem:[#allocation17 + $0x160] sm:$0xff]
    %v1746 = vld [vmem:[#allocation17 + $0x168] sm:$0xff]
    %v1747 = vld [vmem:[#allocation17 + $0x170] sm:$0xff]
    %v1748 = vld [vmem:[#allocation17 + $0x178] sm:$0xff]
    %v1749 = vld [vmem:[#allocation17 + $0x180] sm:$0xff]
    %v1750 = vld [vmem:[#allocation17 + $0x188] sm:$0xff]
    %v1751 = vld [vmem:[#allocation17 + $0x190] sm:$0xff]
    %v1752 = vld [vmem:[#allocation17 + $0x198] sm:$0xff]
    %v1753 = vld [vmem:[#allocation17 + $0x1a0] sm:$0xff]
    %v1754 = vld [vmem:[#allocation17 + $0x1a8] sm:$0xff]
    %v1755 = vld [vmem:[#allocation17 + $0x1b0] sm:$0xff]
    %v1756 = vld [vmem:[#allocation17 + $0x1b8] sm:$0xff]
    %v1757 = vld [vmem:[#allocation17 + $0x1c0] sm:$0xff]
    %v1758 = vld [vmem:[#allocation17 + $0x1c8] sm:$0xff]
    %v1759 = vld [vmem:[#allocation17 + $0x1d0] sm:$0xff]
    %v1760 = vld [vmem:[#allocation17 + $0x1d8] sm:$0xff]
    %v1761 = vld [vmem:[#allocation17 + $0x1e0] sm:$0xff]
    %v1762 = vld [vmem:[#allocation17 + $0x1e8] sm:$0xff]
    %v1763 = vld [vmem:[#allocation17 + $0x1f0] sm:$0xff]
    %v1764 = vld [vmem:[#allocation17 + $0x1f8] sm:$0xff]
    %v1765 = vld [vmem:[%s13] sm:$0xf]
    %v1767 = vperm.slane %v1765, 0
    %v1768 = vperm.slane %v1765, 1
    %v1769 = vperm.slane %v1765, 2
    %v1770 = vperm.slane %v1765, 3
    %1775 = vmatpush.msra.mxu0 %v1761
    %1776 = vmatpush.msra.mxu0 %v1757
    %1777 = vmatpush.msra.mxu0 %v1753
    %1778 = vmatpush.msra.mxu0 %v1749
    %1779 = vmatpush.msra.mxu0 %v1745
    %1780 = vmatpush.msra.mxu0 %v1741
    %1781 = vmatpush.msra.mxu0 %v1737
    %1782 = vmatpush.msra.mxu0 %v1733
    %1783 = vmatpush.msra.mxu0 %v1729
    %1784 = vmatpush.msra.mxu0 %v1725
    %1785 = vmatpush.msra.mxu0 %v1721
    %1786 = vmatpush.msra.mxu0 %v1717
    %1787 = vmatpush.msra.mxu0 %v1713
    %1788 = vmatpush.msra.mxu0 %v1709
    %1789 = vmatpush.msra.mxu0 %v1705
    %1790 = vmatpush.msra.mxu0 %v1701
    %1791 = vmatmul.f32.gmra.mxu0 %v1697
    %v1792 = vpop.f32.mrf.mxu0
    %v1793 = vadd.f32 %v1767, %v1792
    %1794 = vmatmul.f32.gmra.mxu0 %v1698
    %v1795 = vpop.f32.mrf.mxu0
    %v1796 = vadd.f32 %v1767, %v1795
    %1797 = vmatmul.f32.gmra.mxu0 %v1699
    %v1798 = vpop.f32.mrf.mxu0
    %v1799 = vadd.f32 %v1767, %v1798
    %1800 = vmatmul.f32.gmra.mxu0 %v1700
    %v1801 = vpop.f32.mrf.mxu0
    %v1802 = vadd.f32 %v1767, %v1801
    %1803 = vdwg.mxu0
    %1804 = vmatpush.msra.mxu0 %v1762
    %1805 = vmatpush.msra.mxu0 %v1758
    %1806 = vmatpush.msra.mxu0 %v1754
    %1807 = vmatpush.msra.mxu0 %v1750
    %1808 = vmatpush.msra.mxu0 %v1746
    %1809 = vmatpush.msra.mxu0 %v1742
    %1810 = vmatpush.msra.mxu0 %v1738
    %1811 = vmatpush.msra.mxu0 %v1734
    %1812 = vmatpush.msra.mxu0 %v1730
    %1813 = vmatpush.msra.mxu0 %v1726
    %1814 = vmatpush.msra.mxu0 %v1722
    %1815 = vmatpush.msra.mxu0 %v1718
    %1816 = vmatpush.msra.mxu0 %v1714
    %1817 = vmatpush.msra.mxu0 %v1710
    %1818 = vmatpush.msra.mxu0 %v1706
    %1819 = vmatpush.msra.mxu0 %v1702
    %1820 = vmatmul.f32.gmra.mxu0 %v1697
    %v1821 = vpop.f32.mrf.mxu0
    %v1822 = vadd.f32 %v1768, %v1821
    %1823 = vmatmul.f32.gmra.mxu0 %v1698
    %v1824 = vpop.f32.mrf.mxu0
    %v1825 = vadd.f32 %v1768, %v1824
    %1826 = vmatmul.f32.gmra.mxu0 %v1699
    %v1827 = vpop.f32.mrf.mxu0
    %v1828 = vadd.f32 %v1768, %v1827
    %1829 = vmatmul.f32.gmra.mxu0 %v1700
    %v1830 = vpop.f32.mrf.mxu0
    %v1831 = vadd.f32 %v1768, %v1830
    %1832 = vdwg.mxu0
    %1833 = vmatpush.msra.mxu0 %v1763
    %1834 = vmatpush.msra.mxu0 %v1759
    %1835 = vmatpush.msra.mxu0 %v1755
    %1836 = vmatpush.msra.mxu0 %v1751
    %1837 = vmatpush.msra.mxu0 %v1747
    %1838 = vmatpush.msra.mxu0 %v1743
    %1839 = vmatpush.msra.mxu0 %v1739
    %1840 = vmatpush.msra.mxu0 %v1735
    %1841 = vmatpush.msra.mxu0 %v1731
    %1842 = vmatpush.msra.mxu0 %v1727
    %1843 = vmatpush.msra.mxu0 %v1723
    %1844 = vmatpush.msra.mxu0 %v1719
    %1845 = vmatpush.msra.mxu0 %v1715
    %1846 = vmatpush.msra.mxu0 %v1711
    %1847 = vmatpush.msra.mxu0 %v1707
    %1848 = vmatpush.msra.mxu0 %v1703
    %1849 = vmatmul.f32.gmra.mxu0 %v1697
    %v1850 = vpop.f32.mrf.mxu0
    %v1851 = vadd.f32 %v1769, %v1850
    %1852 = vmatmul.f32.gmra.mxu0 %v1698
    %v1853 = vpop.f32.mrf.mxu0
    %v1854 = vadd.f32 %v1769, %v1853
    %1855 = vmatmul.f32.gmra.mxu0 %v1699
    %v1856 = vpop.f32.mrf.mxu0
    %v1857 = vadd.f32 %v1769, %v1856
    %1858 = vmatmul.f32.gmra.mxu0 %v1700
    %v1859 = vpop.f32.mrf.mxu0
    %v1860 = vadd.f32 %v1769, %v1859
    %1861 = vdwg.mxu0
    %1862 = vmatpush.msra.mxu0 %v1764
    %1863 = vmatpush.msra.mxu0 %v1760
    %1864 = vmatpush.msra.mxu0 %v1756
    %1865 = vmatpush.msra.mxu0 %v1752
    %1866 = vmatpush.msra.mxu0 %v1748
    %1867 = vmatpush.msra.mxu0 %v1744
    %1868 = vmatpush.msra.mxu0 %v1740
    %1869 = vmatpush.msra.mxu0 %v1736
    %1870 = vmatpush.msra.mxu0 %v1732
    %1871 = vmatpush.msra.mxu0 %v1728
    %1872 = vmatpush.msra.mxu0 %v1724
    %1873 = vmatpush.msra.mxu0 %v1720
    %1874 = vmatpush.msra.mxu0 %v1716
    %1875 = vmatpush.msra.mxu0 %v1712
    %1876 = vmatpush.msra.mxu0 %v1708
    %1877 = vmatpush.msra.mxu0 %v1704
    %1878 = vmatmul.f32.gmra.mxu0 %v1697
    %v1879 = vpop.f32.mrf.mxu0
    %v1880 = vadd.f32 %v1770, %v1879
    %1881 = vmatmul.f32.gmra.mxu0 %v1698
    %v1882 = vpop.f32.mrf.mxu0
    %v1883 = vadd.f32 %v1770, %v1882
    %1884 = vmatmul.f32.gmra.mxu0 %v1699
    %v1885 = vpop.f32.mrf.mxu0
    %v1886 = vadd.f32 %v1770, %v1885
    %1887 = vmatmul.f32.gmra.mxu0 %v1700
    %v1888 = vpop.f32.mrf.mxu0
    %v1889 = vadd.f32 %v1770, %v1888
    %1890 = vdwg.mxu0
    %v1891 = vmul.f32 %v1793, 0.5
    %v1892 = vmul.f32 %v1822, 0.5
    %v1893 = vmul.f32 %v1851, 0.5
    %v1894 = vmul.f32 %v1880, 0.5
    %v1895 = vmul.f32 %v1796, 0.5
    %v1896 = vmul.f32 %v1825, 0.5
    %v1897 = vmul.f32 %v1854, 0.5
    %v1898 = vmul.f32 %v1883, 0.5
    %v1899 = vmul.f32 %v1799, 0.5
    %v1900 = vmul.f32 %v1828, 0.5
    %v1901 = vmul.f32 %v1857, 0.5
    %v1902 = vmul.f32 %v1886, 0.5
    %v1903 = vmul.f32 %v1802, 0.5
    %v1904 = vmul.f32 %v1831, 0.5
    %v1905 = vmul.f32 %v1860, 0.5
    %v1906 = vmul.f32 %v1889, 0.5
    %v1907 = vmul.f32 %v1793, 0.70710677
    %v1908 = vmul.f32 %v1822, 0.70710677
    %v1909 = vmul.f32 %v1851, 0.70710677
    %v1910 = vmul.f32 %v1880, 0.70710677
    %v1911 = vmul.f32 %v1796, 0.70710677
    %v1912 = vmul.f32 %v1825, 0.70710677
    %v1913 = vmul.f32 %v1854, 0.70710677
    %v1914 = vmul.f32 %v1883, 0.70710677
    %v1915 = vmul.f32 %v1799, 0.70710677
    %v1916 = vmul.f32 %v1828, 0.70710677
    %v1917 = vmul.f32 %v1857, 0.70710677
    %v1918 = vmul.f32 %v1886, 0.70710677
    %v1919 = vmul.f32 %v1802, 0.70710677
    %v1920 = vmul.f32 %v1831, 0.70710677
    %v1921 = vmul.f32 %v1860, 0.70710677
    %v1922 = vmul.f32 %v1889, 0.70710677
    %v1923 = vmax.f32 %v1907, -3.832507
    %v1924 = vmax.f32 %v1908, -3.832507
    %v1925 = vmax.f32 %v1909, -3.832507
    %v1926 = vmax.f32 %v1910, -3.832507
    %v1927 = vmax.f32 %v1911, -3.832507
    %v1928 = vmax.f32 %v1912, -3.832507
    %v1929 = vmax.f32 %v1913, -3.832507
    %v1930 = vmax.f32 %v1914, -3.832507
    %v1931 = vmax.f32 %v1915, -3.832507
    %v1932 = vmax.f32 %v1916, -3.832507
    %v1933 = vmax.f32 %v1917, -3.832507
    %v1934 = vmax.f32 %v1918, -3.832507
    %v1935 = vmax.f32 %v1919, -3.832507
    %v1936 = vmax.f32 %v1920, -3.832507
    %v1937 = vmax.f32 %v1921, -3.832507
    %v1938 = vmax.f32 %v1922, -3.832507
    %v1939 = vmin.f32 %v1923, 3.832507
    %v1940 = vmin.f32 %v1924, 3.832507
    %v1941 = vmin.f32 %v1925, 3.832507
    %v1942 = vmin.f32 %v1926, 3.832507
    %v1943 = vmin.f32 %v1927, 3.832507
    %v1944 = vmin.f32 %v1928, 3.832507
    %v1945 = vmin.f32 %v1929, 3.832507
    %v1946 = vmin.f32 %v1930, 3.832507
    %v1947 = vmin.f32 %v1931, 3.832507
    %v1948 = vmin.f32 %v1932, 3.832507
    %v1949 = vmin.f32 %v1933, 3.832507
    %v1950 = vmin.f32 %v1934, 3.832507
    %v1951 = vmin.f32 %v1935, 3.832507
    %v1952 = vmin.f32 %v1936, 3.832507
    %v1953 = vmin.f32 %v1937, 3.832507
    %v1954 = vmin.f32 %v1938, 3.832507
    %v1955 = vmul.f32 %v1939, %v1939
    %v1956 = vmul.f32 %v1940, %v1940
    %v1957 = vmul.f32 %v1941, %v1941
    %v1958 = vmul.f32 %v1942, %v1942
    %v1959 = vmul.f32 %v1943, %v1943
    %v1960 = vmul.f32 %v1944, %v1944
    %v1961 = vmul.f32 %v1945, %v1945
    %v1962 = vmul.f32 %v1946, %v1946
    %v1963 = vmul.f32 %v1947, %v1947
    %v1964 = vmul.f32 %v1948, %v1948
    %v1965 = vmul.f32 %v1949, %v1949
    %v1966 = vmul.f32 %v1950, %v1950
    %v1967 = vmul.f32 %v1951, %v1951
    %v1968 = vmul.f32 %v1952, %v1952
    %v1969 = vmul.f32 %v1953, %v1953
    %v1970 = vmul.f32 %v1954, %v1954
    %v1971 = vmul.f32 %v1955, -2.7261424e-10
    %v1972 = vmul.f32 %v1956, -2.7261424e-10
    %v1973 = vmul.f32 %v1957, -2.7261424e-10
    %v1974 = vmul.f32 %v1958, -2.7261424e-10
    %v1975 = vmul.f32 %v1959, -2.7261424e-10
    %v1976 = vmul.f32 %v1960, -2.7261424e-10
    %v1977 = vmul.f32 %v1961, -2.7261424e-10
    %v1978 = vmul.f32 %v1962, -2.7261424e-10
    %v1979 = vmul.f32 %v1963, -2.7261424e-10
    %v1980 = vmul.f32 %v1964, -2.7261424e-10
    %v1981 = vmul.f32 %v1965, -2.7261424e-10
    %v1982 = vmul.f32 %v1966, -2.7261424e-10
    %v1983 = vmul.f32 %v1967, -2.7261424e-10
    %v1984 = vmul.f32 %v1968, -2.7261424e-10
    %v1985 = vmul.f32 %v1969, -2.7261424e-10
    %v1986 = vmul.f32 %v1970, -2.7261424e-10
    %v1987 = vadd.f32 %v1971, 2.7706815e-08
    %v1988 = vadd.f32 %v1972, 2.7706815e-08
    %v1989 = vadd.f32 %v1973, 2.7706815e-08
    %v1990 = vadd.f32 %v1974, 2.7706815e-08
    %v1991 = vadd.f32 %v1975, 2.7706815e-08
    %v1992 = vadd.f32 %v1976, 2.7706815e-08
    %v1993 = vadd.f32 %v1977, 2.7706815e-08
    %v1994 = vadd.f32 %v1978, 2.7706815e-08
    %v1995 = vadd.f32 %v1979, 2.7706815e-08
    %v1996 = vadd.f32 %v1980, 2.7706815e-08
    %v1997 = vadd.f32 %v1981, 2.7706815e-08
    %v1998 = vadd.f32 %v1982, 2.7706815e-08
    %v1999 = vadd.f32 %v1983, 2.7706815e-08
    %v2000 = vadd.f32 %v1984, 2.7706815e-08
    %v2001 = vadd.f32 %v1985, 2.7706815e-08
    %v2002 = vadd.f32 %v1986, 2.7706815e-08
    %v2003 = vmul.f32 %v1987, %v1955
    %v2004 = vmul.f32 %v1988, %v1956
    %v2005 = vmul.f32 %v1989, %v1957
    %v2006 = vmul.f32 %v1990, %v1958
    %v2007 = vmul.f32 %v1991, %v1959
    %v2008 = vmul.f32 %v1992, %v1960
    %v2009 = vmul.f32 %v1993, %v1961
    %v2010 = vmul.f32 %v1994, %v1962
    %v2011 = vmul.f32 %v1995, %v1963
    %v2012 = vmul.f32 %v1996, %v1964
    %v2013 = vmul.f32 %v1997, %v1965
    %v2014 = vmul.f32 %v1998, %v1966
    %v2015 = vmul.f32 %v1999, %v1967
    %v2016 = vmul.f32 %v2000, %v1968
    %v2017 = vmul.f32 %v2001, %v1969
    %v2018 = vmul.f32 %v2002, %v1970
    %v2019 = vadd.f32 %v2003, -2.101024e-06
    %v2020 = vadd.f32 %v2004, -2.101024e-06
    %v2021 = vadd.f32 %v2005, -2.101024e-06
    %v2022 = vadd.f32 %v2006, -2.101024e-06
    %v2023 = vadd.f32 %v2007, -2.101024e-06
    %v2024 = vadd.f32 %v2008, -2.101024e-06
    %v2025 = vadd.f32 %v2009, -2.101024e-06
    %v2026 = vadd.f32 %v2010, -2.101024e-06
    %v2027 = vadd.f32 %v2011, -2.101024e-06
    %v2028 = vadd.f32 %v2012, -2.101024e-06
    %v2029 = vadd.f32 %v2013, -2.101024e-06
    %v2030 = vadd.f32 %v2014, -2.101024e-06
    %v2031 = vadd.f32 %v2015, -2.101024e-06
    %v2032 = vadd.f32 %v2016, -2.101024e-06
    %v2033 = vadd.f32 %v2017, -2.101024e-06
    %v2034 = vadd.f32 %v2018, -2.101024e-06
    %v2035 = vmul.f32 %v2019, %v1955
    %v2036 = vmul.f32 %v2020, %v1956
    %v2037 = vmul.f32 %v2021, %v1957
    %v2038 = vmul.f32 %v2022, %v1958
    %v2039 = vmul.f32 %v2023, %v1959
    %v2040 = vmul.f32 %v2024, %v1960
    %v2041 = vmul.f32 %v2025, %v1961
    %v2042 = vmul.f32 %v2026, %v1962
    %v2043 = vmul.f32 %v2027, %v1963
    %v2044 = vmul.f32 %v2028, %v1964
    %v2045 = vmul.f32 %v2029, %v1965
    %v2046 = vmul.f32 %v2030, %v1966
    %v2047 = vmul.f32 %v2031, %v1967
    %v2048 = vmul.f32 %v2032, %v1968
    %v2049 = vmul.f32 %v2033, %v1969
    %v2050 = vmul.f32 %v2034, %v1970
    %v2051 = vadd.f32 %v2035, -5.6925062e-05
    %v2052 = vadd.f32 %v2036, -5.6925062e-05
    %v2053 = vadd.f32 %v2037, -5.6925062e-05
    %v2054 = vadd.f32 %v2038, -5.6925062e-05
    %v2055 = vadd.f32 %v2039, -5.6925062e-05
    %v2056 = vadd.f32 %v2040, -5.6925062e-05
    %v2057 = vadd.f32 %v2041, -5.6925062e-05
    %v2058 = vadd.f32 %v2042, -5.6925062e-05
    %v2059 = vadd.f32 %v2043, -5.6925062e-05
    %v2060 = vadd.f32 %v2044, -5.6925062e-05
    %v2061 = vadd.f32 %v2045, -5.6925062e-05
    %v2062 = vadd.f32 %v2046, -5.6925062e-05
    %v2063 = vadd.f32 %v2047, -5.6925062e-05
    %v2064 = vadd.f32 %v2048, -5.6925062e-05
    %v2065 = vadd.f32 %v2049, -5.6925062e-05
    %v2066 = vadd.f32 %v2050, -5.6925062e-05
    %v2067 = vmul.f32 %v2051, %v1955
    %v2068 = vmul.f32 %v2052, %v1956
    %v2069 = vmul.f32 %v2053, %v1957
    %v2070 = vmul.f32 %v2054, %v1958
    %v2071 = vmul.f32 %v2055, %v1959
    %v2072 = vmul.f32 %v2056, %v1960
    %v2073 = vmul.f32 %v2057, %v1961
    %v2074 = vmul.f32 %v2058, %v1962
    %v2075 = vmul.f32 %v2059, %v1963
    %v2076 = vmul.f32 %v2060, %v1964
    %v2077 = vmul.f32 %v2061, %v1965
    %v2078 = vmul.f32 %v2062, %v1966
    %v2079 = vmul.f32 %v2063, %v1967
    %v2080 = vmul.f32 %v2064, %v1968
    %v2081 = vmul.f32 %v2065, %v1969
    %v2082 = vmul.f32 %v2066, %v1970
    %v2083 = vadd.f32 %v2067, -0.00073499064
    %v2084 = vadd.f32 %v2068, -0.00073499064
    %v2085 = vadd.f32 %v2069, -0.00073499064
    %v2086 = vadd.f32 %v2070, -0.00073499064
    %v2087 = vadd.f32 %v2071, -0.00073499064
    %v2088 = vadd.f32 %v2072, -0.00073499064
    %v2089 = vadd.f32 %v2073, -0.00073499064
    %v2090 = vadd.f32 %v2074, -0.00073499064
    %v2091 = vadd.f32 %v2075, -0.00073499064
    %v2092 = vadd.f32 %v2076, -0.00073499064
    %v2093 = vadd.f32 %v2077, -0.00073499064
    %v2094 = vadd.f32 %v2078, -0.00073499064
    %v2095 = vadd.f32 %v2079, -0.00073499064
    %v2096 = vadd.f32 %v2080, -0.00073499064
    %v2097 = vadd.f32 %v2081, -0.00073499064
    %v2098 = vadd.f32 %v2082, -0.00073499064
    %v2099 = vmul.f32 %v2083, %v1955
    %v2100 = vmul.f32 %v2084, %v1956
    %v2101 = vmul.f32 %v2085, %v1957
    %v2102 = vmul.f32 %v2086, %v1958
    %v2103 = vmul.f32 %v2087, %v1959
    %v2104 = vmul.f32 %v2088, %v1960
    %v2105 = vmul.f32 %v2089, %v1961
    %v2106 = vmul.f32 %v2090, %v1962
    %v2107 = vmul.f32 %v2091, %v1963
    %v2108 = vmul.f32 %v2092, %v1964
    %v2109 = vmul.f32 %v2093, %v1965
    %v2110 = vmul.f32 %v2094, %v1966
    %v2111 = vmul.f32 %v2095, %v1967
    %v2112 = vmul.f32 %v2096, %v1968
    %v2113 = vmul.f32 %v2097, %v1969
    %v2114 = vmul.f32 %v2098, %v1970
    %v2115 = vadd.f32 %v2099, -0.0029546
    %v2116 = vadd.f32 %v2100, -0.0029546
    %v2117 = vadd.f32 %v2101, -0.0029546
    %v2118 = vadd.f32 %v2102, -0.0029546
    %v2119 = vadd.f32 %v2103, -0.0029546
    %v2120 = vadd.f32 %v2104, -0.0029546
    %v2121 = vadd.f32 %v2105, -0.0029546
    %v2122 = vadd.f32 %v2106, -0.0029546
    %v2123 = vadd.f32 %v2107, -0.0029546
    %v2124 = vadd.f32 %v2108, -0.0029546
    %v2125 = vadd.f32 %v2109, -0.0029546
    %v2126 = vadd.f32 %v2110, -0.0029546
    %v2127 = vadd.f32 %v2111, -0.0029546
    %v2128 = vadd.f32 %v2112, -0.0029546
    %v2129 = vadd.f32 %v2113, -0.0029546
    %v2130 = vadd.f32 %v2114, -0.0029546
    %v2131 = vmul.f32 %v2115, %v1955
    %v2132 = vmul.f32 %v2116, %v1956
    %v2133 = vmul.f32 %v2117, %v1957
    %v2134 = vmul.f32 %v2118, %v1958
    %v2135 = vmul.f32 %v2119, %v1959
    %v2136 = vmul.f32 %v2120, %v1960
    %v2137 = vmul.f32 %v2121, %v1961
    %v2138 = vmul.f32 %v2122, %v1962
    %v2139 = vmul.f32 %v2123, %v1963
    %v2140 = vmul.f32 %v2124, %v1964
    %v2141 = vmul.f32 %v2125, %v1965
    %v2142 = vmul.f32 %v2126, %v1966
    %v2143 = vmul.f32 %v2127, %v1967
    %v2144 = vmul.f32 %v2128, %v1968
    %v2145 = vmul.f32 %v2129, %v1969
    %v2146 = vmul.f32 %v2130, %v1970
    %v2147 = vadd.f32 %v2131, -0.016096033
    %v2148 = vadd.f32 %v2132, -0.016096033
    %v2149 = vadd.f32 %v2133, -0.016096033
    %v2150 = vadd.f32 %v2134, -0.016096033
    %v2151 = vadd.f32 %v2135, -0.016096033
    %v2152 = vadd.f32 %v2136, -0.016096033
    %v2153 = vadd.f32 %v2137, -0.016096033
    %v2154 = vadd.f32 %v2138, -0.016096033
    %v2155 = vadd.f32 %v2139, -0.016096033
    %v2156 = vadd.f32 %v2140, -0.016096033
    %v2157 = vadd.f32 %v2141, -0.016096033
    %v2158 = vadd.f32 %v2142, -0.016096033
    %v2159 = vadd.f32 %v2143, -0.016096033
    %v2160 = vadd.f32 %v2144, -0.016096033
    %v2161 = vadd.f32 %v2145, -0.016096033
    %v2162 = vadd.f32 %v2146, -0.016096033
    %v2163 = vmul.f32 %v2147, %v1939
    %v2164 = vmul.f32 %v2148, %v1940
    %v2165 = vmul.f32 %v2149, %v1941
    %v2166 = vmul.f32 %v2150, %v1942
    %v2167 = vmul.f32 %v2151, %v1943
    %v2168 = vmul.f32 %v2152, %v1944
    %v2169 = vmul.f32 %v2153, %v1945
    %v2170 = vmul.f32 %v2154, %v1946
    %v2171 = vmul.f32 %v2155, %v1947
    %v2172 = vmul.f32 %v2156, %v1948
    %v2173 = vmul.f32 %v2157, %v1949
    %v2174 = vmul.f32 %v2158, %v1950
    %v2175 = vmul.f32 %v2159, %v1951
    %v2176 = vmul.f32 %v2160, %v1952
    %v2177 = vmul.f32 %v2161, %v1953
    %v2178 = vmul.f32 %v2162, %v1954
    %v2179 = vmul.f32 %v1955, -1.45660715e-05
    %v2180 = vmul.f32 %v1956, -1.45660715e-05
    %v2181 = vmul.f32 %v1957, -1.45660715e-05
    %v2182 = vmul.f32 %v1958, -1.45660715e-05
    %v2183 = vmul.f32 %v1959, -1.45660715e-05
    %v2184 = vmul.f32 %v1960, -1.45660715e-05
    %v2185 = vmul.f32 %v1961, -1.45660715e-05
    %v2186 = vmul.f32 %v1962, -1.45660715e-05
    %v2187 = vmul.f32 %v1963, -1.45660715e-05
    %v2188 = vmul.f32 %v1964, -1.45660715e-05
    %v2189 = vmul.f32 %v1965, -1.45660715e-05
    %v2190 = vmul.f32 %v1966, -1.45660715e-05
    %v2191 = vmul.f32 %v1967, -1.45660715e-05
    %v2192 = vmul.f32 %v1968, -1.45660715e-05
    %v2193 = vmul.f32 %v1969, -1.45660715e-05
    %v2194 = vmul.f32 %v1970, -1.45660715e-05
    %v2195 = vadd.f32 %v2179, -0.00021337405
    %v2196 = vadd.f32 %v2180, -0.00021337405
    %v2197 = vadd.f32 %v2181, -0.00021337405
    %v2198 = vadd.f32 %v2182, -0.00021337405
    %v2199 = vadd.f32 %v2183, -0.00021337405
    %v2200 = vadd.f32 %v2184, -0.00021337405
    %v2201 = vadd.f32 %v2185, -0.00021337405
    %v2202 = vadd.f32 %v2186, -0.00021337405
    %v2203 = vadd.f32 %v2187, -0.00021337405
    %v2204 = vadd.f32 %v2188, -0.00021337405
    %v2205 = vadd.f32 %v2189, -0.00021337405
    %v2206 = vadd.f32 %v2190, -0.00021337405
    %v2207 = vadd.f32 %v2191, -0.00021337405
    %v2208 = vadd.f32 %v2192, -0.00021337405
    %v2209 = vadd.f32 %v2193, -0.00021337405
    %v2210 = vadd.f32 %v2194, -0.00021337405
    %v2211 = vmul.f32 %v2195, %v1955
    %v2212 = vmul.f32 %v2196, %v1956
    %v2213 = vmul.f32 %v2197, %v1957
    %v2214 = vmul.f32 %v2198, %v1958
    %v2215 = vmul.f32 %v2199, %v1959
    %v2216 = vmul.f32 %v2200, %v1960
    %v2217 = vmul.f32 %v2201, %v1961
    %v2218 = vmul.f32 %v2202, %v1962
    %v2219 = vmul.f32 %v2203, %v1963
    %v2220 = vmul.f32 %v2204, %v1964
    %v2221 = vmul.f32 %v2205, %v1965
    %v2222 = vmul.f32 %v2206, %v1966
    %v2223 = vmul.f32 %v2207, %v1967
    %v2224 = vmul.f32 %v2208, %v1968
    %v2225 = vmul.f32 %v2209, %v1969
    %v2226 = vmul.f32 %v2210, %v1970
    %v2227 = vadd.f32 %v2211, -0.001682827
    %v2228 = vadd.f32 %v2212, -0.001682827
    %v2229 = vadd.f32 %v2213, -0.001682827
    %v2230 = vadd.f32 %v2214, -0.001682827
    %v2231 = vadd.f32 %v2215, -0.001682827
    %v2232 = vadd.f32 %v2216, -0.001682827
    %v2233 = vadd.f32 %v2217, -0.001682827
    %v2234 = vadd.f32 %v2218, -0.001682827
    %v2235 = vadd.f32 %v2219, -0.001682827
    %v2236 = vadd.f32 %v2220, -0.001682827
    %v2237 = vadd.f32 %v2221, -0.001682827
    %v2238 = vadd.f32 %v2222, -0.001682827
    %v2239 = vadd.f32 %v2223, -0.001682827
    %v2240 = vadd.f32 %v2224, -0.001682827
    %v2241 = vadd.f32 %v2225, -0.001682827
    %v2242 = vadd.f32 %v2226, -0.001682827
    %v2243 = vmul.f32 %v2227, %v1955
    %v2244 = vmul.f32 %v2228, %v1956
    %v2245 = vmul.f32 %v2229, %v1957
    %v2246 = vmul.f32 %v2230, %v1958
    %v2247 = vmul.f32 %v2231, %v1959
    %v2248 = vmul.f32 %v2232, %v1960
    %v2249 = vmul.f32 %v2233, %v1961
    %v2250 = vmul.f32 %v2234, %v1962
    %v2251 = vmul.f32 %v2235, %v1963
    %v2252 = vmul.f32 %v2236, %v1964
    %v2253 = vmul.f32 %v2237, %v1965
    %v2254 = vmul.f32 %v2238, %v1966
    %v2255 = vmul.f32 %v2239, %v1967
    %v2256 = vmul.f32 %v2240, %v1968
    %v2257 = vmul.f32 %v2241, %v1969
    %v2258 = vmul.f32 %v2242, %v1970
    %v2259 = vadd.f32 %v2243, -0.0073733293
    %v2260 = vadd.f32 %v2244, -0.0073733293
    %v2261 = vadd.f32 %v2245, -0.0073733293
    %v2262 = vadd.f32 %v2246, -0.0073733293
    %v2263 = vadd.f32 %v2247, -0.0073733293
    %v2264 = vadd.f32 %v2248, -0.0073733293
    %v2265 = vadd.f32 %v2249, -0.0073733293
    %v2266 = vadd.f32 %v2250, -0.0073733293
    %v2267 = vadd.f32 %v2251, -0.0073733293
    %v2268 = vadd.f32 %v2252, -0.0073733293
    %v2269 = vadd.f32 %v2253, -0.0073733293
    %v2270 = vadd.f32 %v2254, -0.0073733293
    %v2271 = vadd.f32 %v2255, -0.0073733293
    %v2272 = vadd.f32 %v2256, -0.0073733293
    %v2273 = vadd.f32 %v2257, -0.0073733293
    %v2274 = vadd.f32 %v2258, -0.0073733293
    %v2275 = vmul.f32 %v2259, %v1955
    %v2276 = vmul.f32 %v2260, %v1956
    %v2277 = vmul.f32 %v2261, %v1957
    %v2278 = vmul.f32 %v2262, %v1958
    %v2279 = vmul.f32 %v2263, %v1959
    %v2280 = vmul.f32 %v2264, %v1960
    %v2281 = vmul.f32 %v2265, %v1961
    %v2282 = vmul.f32 %v2266, %v1962
    %v2283 = vmul.f32 %v2267, %v1963
    %v2284 = vmul.f32 %v2268, %v1964
    %v2285 = vmul.f32 %v2269, %v1965
    %v2286 = vmul.f32 %v2270, %v1966
    %v2287 = vmul.f32 %v2271, %v1967
    %v2288 = vmul.f32 %v2272, %v1968
    %v2289 = vmul.f32 %v2273, %v1969
    %v2290 = vmul.f32 %v2274, %v1970
    %v2291 = vadd.f32 %v2275, -0.014264739
    %v2292 = vadd.f32 %v2276, -0.014264739
    %v2293 = vadd.f32 %v2277, -0.014264739
    %v2294 = vadd.f32 %v2278, -0.014264739
    %v2295 = vadd.f32 %v2279, -0.014264739
    %v2296 = vadd.f32 %v2280, -0.014264739
    %v2297 = vadd.f32 %v2281, -0.014264739
    %v2298 = vadd.f32 %v2282, -0.014264739
    %v2299 = vadd.f32 %v2283, -0.014264739
    %v2300 = vadd.f32 %v2284, -0.014264739
    %v2301 = vadd.f32 %v2285, -0.014264739
    %v2302 = vadd.f32 %v2286, -0.014264739
    %v2303 = vadd.f32 %v2287, -0.014264739
    %v2304 = vadd.f32 %v2288, -0.014264739
    %v2305 = vadd.f32 %v2289, -0.014264739
    %v2306 = vadd.f32 %v2290, -0.014264739
    %v2307 = vrcp.pop %v2291
    %v2308 = vmul.f32 %v2291, %v2307
    %v2309 = vsub.f32 1.0, %v2308
    %v2310 = vmul.f32 %v2307, %v2309
    %v2311 = vadd.f32 %v2307, %v2310
    %vm2312 = vweird.f32 %v2291
    %vm2313 = vweird.f32 %v2307
    %vm2314 = vmor %vm2312, %vm2313
    %v2315 = vsel %vm2314, %v2307, %v2311
    %v2316 = vand.u32 2147483647, %v2291
    %vm2317 = vcmp.eq.f32.partialorder %v2316, 8.507059e+37
    %v2318 = vand.u32 %v2291, 2147483648
    %v2319 = vor.u32 1.1754944e-38, %v2318
    %v2320 = vsel %vm2317, %v2319, %v2315
    %v2321 = vrcp.pop %v2292
    %v2322 = vmul.f32 %v2292, %v2321
    %v2323 = vsub.f32 1.0, %v2322
    %v2324 = vmul.f32 %v2321, %v2323
    %v2325 = vadd.f32 %v2321, %v2324
    %vm2326 = vweird.f32 %v2292
    %vm2327 = vweird.f32 %v2321
    %vm2328 = vmor %vm2326, %vm2327
    %v2329 = vsel %vm2328, %v2321, %v2325
    %v2330 = vand.u32 2147483647, %v2292
    %vm2331 = vcmp.eq.f32.partialorder %v2330, 8.507059e+37
    %v2332 = vand.u32 %v2292, 2147483648
    %v2333 = vor.u32 1.1754944e-38, %v2332
    %v2334 = vsel %vm2331, %v2333, %v2329
    %v2335 = vrcp.pop %v2293
    %v2336 = vmul.f32 %v2293, %v2335
    %v2337 = vsub.f32 1.0, %v2336
    %v2338 = vmul.f32 %v2335, %v2337
    %v2339 = vadd.f32 %v2335, %v2338
    %vm2340 = vweird.f32 %v2293
    %vm2341 = vweird.f32 %v2335
    %vm2342 = vmor %vm2340, %vm2341
    %v2343 = vsel %vm2342, %v2335, %v2339
    %v2344 = vand.u32 2147483647, %v2293
    %vm2345 = vcmp.eq.f32.partialorder %v2344, 8.507059e+37
    %v2346 = vand.u32 %v2293, 2147483648
    %v2347 = vor.u32 1.1754944e-38, %v2346
    %v2348 = vsel %vm2345, %v2347, %v2343
    %v2349 = vrcp.pop %v2294
    %v2350 = vmul.f32 %v2294, %v2349
    %v2351 = vsub.f32 1.0, %v2350
    %v2352 = vmul.f32 %v2349, %v2351
    %v2353 = vadd.f32 %v2349, %v2352
    %vm2354 = vweird.f32 %v2294
    %vm2355 = vweird.f32 %v2349
    %vm2356 = vmor %vm2354, %vm2355
    %v2357 = vsel %vm2356, %v2349, %v2353
    %v2358 = vand.u32 2147483647, %v2294
    %vm2359 = vcmp.eq.f32.partialorder %v2358, 8.507059e+37
    %v2360 = vand.u32 %v2294, 2147483648
    %v2361 = vor.u32 1.1754944e-38, %v2360
    %v2362 = vsel %vm2359, %v2361, %v2357
    %v2363 = vrcp.pop %v2295
    %v2364 = vmul.f32 %v2295, %v2363
    %v2365 = vsub.f32 1.0, %v2364
    %v2366 = vmul.f32 %v2363, %v2365
    %v2367 = vadd.f32 %v2363, %v2366
    %vm2368 = vweird.f32 %v2295
    %vm2369 = vweird.f32 %v2363
    %vm2370 = vmor %vm2368, %vm2369
    %v2371 = vsel %vm2370, %v2363, %v2367
    %v2372 = vand.u32 2147483647, %v2295
    %vm2373 = vcmp.eq.f32.partialorder %v2372, 8.507059e+37
    %v2374 = vand.u32 %v2295, 2147483648
    %v2375 = vor.u32 1.1754944e-38, %v2374
    %v2376 = vsel %vm2373, %v2375, %v2371
    %v2377 = vrcp.pop %v2296
    %v2378 = vmul.f32 %v2296, %v2377
    %v2379 = vsub.f32 1.0, %v2378
    %v2380 = vmul.f32 %v2377, %v2379
    %v2381 = vadd.f32 %v2377, %v2380
    %vm2382 = vweird.f32 %v2296
    %vm2383 = vweird.f32 %v2377
    %vm2384 = vmor %vm2382, %vm2383
    %v2385 = vsel %vm2384, %v2377, %v2381
    %v2386 = vand.u32 2147483647, %v2296
    %vm2387 = vcmp.eq.f32.partialorder %v2386, 8.507059e+37
    %v2388 = vand.u32 %v2296, 2147483648
    %v2389 = vor.u32 1.1754944e-38, %v2388
    %v2390 = vsel %vm2387, %v2389, %v2385
    %v2391 = vrcp.pop %v2297
    %v2392 = vmul.f32 %v2297, %v2391
    %v2393 = vsub.f32 1.0, %v2392
    %v2394 = vmul.f32 %v2391, %v2393
    %v2395 = vadd.f32 %v2391, %v2394
    %vm2396 = vweird.f32 %v2297
    %vm2397 = vweird.f32 %v2391
    %vm2398 = vmor %vm2396, %vm2397
    %v2399 = vsel %vm2398, %v2391, %v2395
    %v2400 = vand.u32 2147483647, %v2297
    %vm2401 = vcmp.eq.f32.partialorder %v2400, 8.507059e+37
    %v2402 = vand.u32 %v2297, 2147483648
    %v2403 = vor.u32 1.1754944e-38, %v2402
    %v2404 = vsel %vm2401, %v2403, %v2399
    %v2405 = vrcp.pop %v2298
    %v2406 = vmul.f32 %v2298, %v2405
    %v2407 = vsub.f32 1.0, %v2406
    %v2408 = vmul.f32 %v2405, %v2407
    %v2409 = vadd.f32 %v2405, %v2408
    %vm2410 = vweird.f32 %v2298
    %vm2411 = vweird.f32 %v2405
    %vm2412 = vmor %vm2410, %vm2411
    %v2413 = vsel %vm2412, %v2405, %v2409
    %v2414 = vand.u32 2147483647, %v2298
    %vm2415 = vcmp.eq.f32.partialorder %v2414, 8.507059e+37
    %v2416 = vand.u32 %v2298, 2147483648
    %v2417 = vor.u32 1.1754944e-38, %v2416
    %v2418 = vsel %vm2415, %v2417, %v2413
    %v2419 = vrcp.pop %v2299
    %v2420 = vmul.f32 %v2299, %v2419
    %v2421 = vsub.f32 1.0, %v2420
    %v2422 = vmul.f32 %v2419, %v2421
    %v2423 = vadd.f32 %v2419, %v2422
    %vm2424 = vweird.f32 %v2299
    %vm2425 = vweird.f32 %v2419
    %vm2426 = vmor %vm2424, %vm2425
    %v2427 = vsel %vm2426, %v2419, %v2423
    %v2428 = vand.u32 2147483647, %v2299
    %vm2429 = vcmp.eq.f32.partialorder %v2428, 8.507059e+37
    %v2430 = vand.u32 %v2299, 2147483648
    %v2431 = vor.u32 1.1754944e-38, %v2430
    %v2432 = vsel %vm2429, %v2431, %v2427
    %v2433 = vrcp.pop %v2300
    %v2434 = vmul.f32 %v2300, %v2433
    %v2435 = vsub.f32 1.0, %v2434
    %v2436 = vmul.f32 %v2433, %v2435
    %v2437 = vadd.f32 %v2433, %v2436
    %vm2438 = vweird.f32 %v2300
    %vm2439 = vweird.f32 %v2433
    %vm2440 = vmor %vm2438, %vm2439
    %v2441 = vsel %vm2440, %v2433, %v2437
    %v2442 = vand.u32 2147483647, %v2300
    %vm2443 = vcmp.eq.f32.partialorder %v2442, 8.507059e+37
    %v2444 = vand.u32 %v2300, 2147483648
    %v2445 = vor.u32 1.1754944e-38, %v2444
    %v2446 = vsel %vm2443, %v2445, %v2441
    %v2447 = vrcp.pop %v2301
    %v2448 = vmul.f32 %v2301, %v2447
    %v2449 = vsub.f32 1.0, %v2448
    %v2450 = vmul.f32 %v2447, %v2449
    %v2451 = vadd.f32 %v2447, %v2450
    %vm2452 = vweird.f32 %v2301
    %vm2453 = vweird.f32 %v2447
    %vm2454 = vmor %vm2452, %vm2453
    %v2455 = vsel %vm2454, %v2447, %v2451
    %v2456 = vand.u32 2147483647, %v2301
    %vm2457 = vcmp.eq.f32.partialorder %v2456, 8.507059e+37
    %v2458 = vand.u32 %v2301, 2147483648
    %v2459 = vor.u32 1.1754944e-38, %v2458
    %v2460 = vsel %vm2457, %v2459, %v2455
    %v2461 = vrcp.pop %v2302
    %v2462 = vmul.f32 %v2302, %v2461
    %v2463 = vsub.f32 1.0, %v2462
    %v2464 = vmul.f32 %v2461, %v2463
    %v2465 = vadd.f32 %v2461, %v2464
    %vm2466 = vweird.f32 %v2302
    %vm2467 = vweird.f32 %v2461
    %vm2468 = vmor %vm2466, %vm2467
    %v2469 = vsel %vm2468, %v2461, %v2465
    %v2470 = vand.u32 2147483647, %v2302
    %vm2471 = vcmp.eq.f32.partialorder %v2470, 8.507059e+37
    %v2472 = vand.u32 %v2302, 2147483648
    %v2473 = vor.u32 1.1754944e-38, %v2472
    %v2474 = vsel %vm2471, %v2473, %v2469
    %v2475 = vrcp.pop %v2303
    %v2476 = vmul.f32 %v2303, %v2475
    %v2477 = vsub.f32 1.0, %v2476
    %v2478 = vmul.f32 %v2475, %v2477
    %v2479 = vadd.f32 %v2475, %v2478
    %vm2480 = vweird.f32 %v2303
    %vm2481 = vweird.f32 %v2475
    %vm2482 = vmor %vm2480, %vm2481
    %v2483 = vsel %vm2482, %v2475, %v2479
    %v2484 = vand.u32 2147483647, %v2303
    %vm2485 = vcmp.eq.f32.partialorder %v2484, 8.507059e+37
    %v2486 = vand.u32 %v2303, 2147483648
    %v2487 = vor.u32 1.1754944e-38, %v2486
    %v2488 = vsel %vm2485, %v2487, %v2483
    %v2489 = vrcp.pop %v2304
    %v2490 = vmul.f32 %v2304, %v2489
    %v2491 = vsub.f32 1.0, %v2490
    %v2492 = vmul.f32 %v2489, %v2491
    %v2493 = vadd.f32 %v2489, %v2492
    %vm2494 = vweird.f32 %v2304
    %vm2495 = vweird.f32 %v2489
    %vm2496 = vmor %vm2494, %vm2495
    %v2497 = vsel %vm2496, %v2489, %v2493
    %v2498 = vand.u32 2147483647, %v2304
    %vm2499 = vcmp.eq.f32.partialorder %v2498, 8.507059e+37
    %v2500 = vand.u32 %v2304, 2147483648
    %v2501 = vor.u32 1.1754944e-38, %v2500
    %v2502 = vsel %vm2499, %v2501, %v2497
    %v2503 = vrcp.pop %v2305
    %v2504 = vmul.f32 %v2305, %v2503
    %v2505 = vsub.f32 1.0, %v2504
    %v2506 = vmul.f32 %v2503, %v2505
    %v2507 = vadd.f32 %v2503, %v2506
    %vm2508 = vweird.f32 %v2305
    %vm2509 = vweird.f32 %v2503
    %vm2510 = vmor %vm2508, %vm2509
    %v2511 = vsel %vm2510, %v2503, %v2507
    %v2512 = vand.u32 2147483647, %v2305
    %vm2513 = vcmp.eq.f32.partialorder %v2512, 8.507059e+37
    %v2514 = vand.u32 %v2305, 2147483648
    %v2515 = vor.u32 1.1754944e-38, %v2514
    %v2516 = vsel %vm2513, %v2515, %v2511
    %v2517 = vrcp.pop %v2306
    %v2518 = vmul.f32 %v2306, %v2517
    %v2519 = vsub.f32 1.0, %v2518
    %v2520 = vmul.f32 %v2517, %v2519
    %v2521 = vadd.f32 %v2517, %v2520
    %vm2522 = vweird.f32 %v2306
    %vm2523 = vweird.f32 %v2517
    %vm2524 = vmor %vm2522, %vm2523
    %v2525 = vsel %vm2524, %v2517, %v2521
    %v2526 = vand.u32 2147483647, %v2306
    %vm2527 = vcmp.eq.f32.partialorder %v2526, 8.507059e+37
    %v2528 = vand.u32 %v2306, 2147483648
    %v2529 = vor.u32 1.1754944e-38, %v2528
    %v2530 = vsel %vm2527, %v2529, %v2525
    %v2531 = vmul.f32 %v2163, %v2320
    %v2532 = vmul.f32 %v2164, %v2334
    %v2533 = vmul.f32 %v2165, %v2348
    %v2534 = vmul.f32 %v2166, %v2362
    %v2535 = vmul.f32 %v2167, %v2376
    %v2536 = vmul.f32 %v2168, %v2390
    %v2537 = vmul.f32 %v2169, %v2404
    %v2538 = vmul.f32 %v2170, %v2418
    %v2539 = vmul.f32 %v2171, %v2432
    %v2540 = vmul.f32 %v2172, %v2446
    %v2541 = vmul.f32 %v2173, %v2460
    %v2542 = vmul.f32 %v2174, %v2474
    %v2543 = vmul.f32 %v2175, %v2488
    %v2544 = vmul.f32 %v2176, %v2502
    %v2545 = vmul.f32 %v2177, %v2516
    %v2546 = vmul.f32 %v2178, %v2530
    %v2547 = vadd.f32 %v2531, 1.0
    %v2548 = vadd.f32 %v2532, 1.0
    %v2549 = vadd.f32 %v2533, 1.0
    %v2550 = vadd.f32 %v2534, 1.0
    %v2551 = vadd.f32 %v2535, 1.0
    %v2552 = vadd.f32 %v2536, 1.0
    %v2553 = vadd.f32 %v2537, 1.0
    %v2554 = vadd.f32 %v2538, 1.0
    %v2555 = vadd.f32 %v2539, 1.0
    %v2556 = vadd.f32 %v2540, 1.0
    %v2557 = vadd.f32 %v2541, 1.0
    %v2558 = vadd.f32 %v2542, 1.0
    %v2559 = vadd.f32 %v2543, 1.0
    %v2560 = vadd.f32 %v2544, 1.0
    %v2561 = vadd.f32 %v2545, 1.0
    %v2562 = vadd.f32 %v2546, 1.0
    %v2563 = vmul.f32 %v1891, %v2547
    %v2564 = vmul.f32 %v1892, %v2548
    %v2565 = vmul.f32 %v1893, %v2549
    %v2566 = vmul.f32 %v1894, %v2550
    %v2567 = vmul.f32 %v1895, %v2551
    %v2568 = vmul.f32 %v1896, %v2552
    %v2569 = vmul.f32 %v1897, %v2553
    %v2570 = vmul.f32 %v1898, %v2554
    %v2571 = vmul.f32 %v1899, %v2555
    %v2572 = vmul.f32 %v1900, %v2556
    %v2573 = vmul.f32 %v1901, %v2557
    %v2574 = vmul.f32 %v1902, %v2558
    %v2575 = vmul.f32 %v1903, %v2559
    %v2576 = vmul.f32 %v1904, %v2560
    %v2577 = vmul.f32 %v1905, %v2561
    %v2578 = vmul.f32 %v1906, %v2562
    %v2579 = vld [vmem:[#allocation18] sm:$0xff]
    %v2580 = vld [vmem:[#allocation18 + $0x8] sm:$0xff]
    %v2581 = vld [vmem:[#allocation18 + $0x10] sm:$0xff]
    %v2582 = vld [vmem:[#allocation18 + $0x18] sm:$0xff]
    %v2583 = vld [vmem:[#allocation18 + $0x20] sm:$0xff]
    %v2584 = vld [vmem:[#allocation18 + $0x28] sm:$0xff]
    %v2585 = vld [vmem:[#allocation18 + $0x30] sm:$0xff]
    %v2586 = vld [vmem:[#allocation18 + $0x38] sm:$0xff]
    %v2587 = vld [vmem:[#allocation18 + $0x40] sm:$0xff]
    %v2588 = vld [vmem:[#allocation18 + $0x48] sm:$0xff]
    %v2589 = vld [vmem:[#allocation18 + $0x50] sm:$0xff]
    %v2590 = vld [vmem:[#allocation18 + $0x58] sm:$0xff]
    %v2591 = vld [vmem:[#allocation18 + $0x60] sm:$0xff]
    %v2592 = vld [vmem:[#allocation18 + $0x68] sm:$0xff]
    %v2593 = vld [vmem:[#allocation18 + $0x70] sm:$0xff]
    %v2594 = vld [vmem:[#allocation18 + $0x78] sm:$0xff]
    %v2595 = vld [vmem:[#allocation18 + $0x80] sm:$0xff]
    %v2596 = vld [vmem:[#allocation18 + $0x88] sm:$0xff]
    %v2597 = vld [vmem:[#allocation18 + $0x90] sm:$0xff]
    %v2598 = vld [vmem:[#allocation18 + $0x98] sm:$0xff]
    %v2599 = vld [vmem:[#allocation18 + $0xa0] sm:$0xff]
    %v2600 = vld [vmem:[#allocation18 + $0xa8] sm:$0xff]
    %v2601 = vld [vmem:[#allocation18 + $0xb0] sm:$0xff]
    %v2602 = vld [vmem:[#allocation18 + $0xb8] sm:$0xff]
    %v2603 = vld [vmem:[#allocation18 + $0xc0] sm:$0xff]
    %v2604 = vld [vmem:[#allocation18 + $0xc8] sm:$0xff]
    %v2605 = vld [vmem:[#allocation18 + $0xd0] sm:$0xff]
    %v2606 = vld [vmem:[#allocation18 + $0xd8] sm:$0xff]
    %v2607 = vld [vmem:[#allocation18 + $0xe0] sm:$0xff]
    %v2608 = vld [vmem:[#allocation18 + $0xe8] sm:$0xff]
    %v2609 = vld [vmem:[#allocation18 + $0xf0] sm:$0xff]
    %v2610 = vld [vmem:[#allocation18 + $0xf8] sm:$0xff]
    %v2611 = vld [vmem:[#allocation18 + $0x100] sm:$0xff]
    %v2612 = vld [vmem:[#allocation18 + $0x108] sm:$0xff]
    %v2613 = vld [vmem:[#allocation18 + $0x110] sm:$0xff]
    %v2614 = vld [vmem:[#allocation18 + $0x118] sm:$0xff]
    %v2615 = vld [vmem:[#allocation18 + $0x120] sm:$0xff]
    %v2616 = vld [vmem:[#allocation18 + $0x128] sm:$0xff]
    %v2617 = vld [vmem:[#allocation18 + $0x130] sm:$0xff]
    %v2618 = vld [vmem:[#allocation18 + $0x138] sm:$0xff]
    %v2619 = vld [vmem:[#allocation18 + $0x140] sm:$0xff]
    %v2620 = vld [vmem:[#allocation18 + $0x148] sm:$0xff]
    %v2621 = vld [vmem:[#allocation18 + $0x150] sm:$0xff]
    %v2622 = vld [vmem:[#allocation18 + $0x158] sm:$0xff]
    %v2623 = vld [vmem:[#allocation18 + $0x160] sm:$0xff]
    %v2624 = vld [vmem:[#allocation18 + $0x168] sm:$0xff]
    %v2625 = vld [vmem:[#allocation18 + $0x170] sm:$0xff]
    %v2626 = vld [vmem:[#allocation18 + $0x178] sm:$0xff]
    %v2627 = vld [vmem:[#allocation18 + $0x180] sm:$0xff]
    %v2628 = vld [vmem:[#allocation18 + $0x188] sm:$0xff]
    %v2629 = vld [vmem:[#allocation18 + $0x190] sm:$0xff]
    %v2630 = vld [vmem:[#allocation18 + $0x198] sm:$0xff]
    %v2631 = vld [vmem:[#allocation18 + $0x1a0] sm:$0xff]
    %v2632 = vld [vmem:[#allocation18 + $0x1a8] sm:$0xff]
    %v2633 = vld [vmem:[#allocation18 + $0x1b0] sm:$0xff]
    %v2634 = vld [vmem:[#allocation18 + $0x1b8] sm:$0xff]
    %v2635 = vld [vmem:[#allocation18 + $0x1c0] sm:$0xff]
    %v2636 = vld [vmem:[#allocation18 + $0x1c8] sm:$0xff]
    %v2637 = vld [vmem:[#allocation18 + $0x1d0] sm:$0xff]
    %v2638 = vld [vmem:[#allocation18 + $0x1d8] sm:$0xff]
    %v2639 = vld [vmem:[#allocation18 + $0x1e0] sm:$0xff]
    %v2640 = vld [vmem:[#allocation18 + $0x1e8] sm:$0xff]
    %v2641 = vld [vmem:[#allocation18 + $0x1f0] sm:$0xff]
    %v2642 = vld [vmem:[#allocation18 + $0x1f8] sm:$0xff]
    %v2643 = vld [vmem:[%s15] sm:$0x1]
    %v2645 = vperm.slane %v2643, 0
    %2647 = vmatpush.msra.mxu0 %v2594
    %2648 = vmatpush.msra.mxu0 %v2593
    %2649 = vmatpush.msra.mxu0 %v2592
    %2650 = vmatpush.msra.mxu0 %v2591
    %2651 = vmatpush.msra.mxu0 %v2590
    %2652 = vmatpush.msra.mxu0 %v2589
    %2653 = vmatpush.msra.mxu0 %v2588
    %2654 = vmatpush.msra.mxu0 %v2587
    %2655 = vmatpush.msra.mxu0 %v2586
    %2656 = vmatpush.msra.mxu0 %v2585
    %2657 = vmatpush.msra.mxu0 %v2584
    %2658 = vmatpush.msra.mxu0 %v2583
    %2659 = vmatpush.msra.mxu0 %v2582
    %2660 = vmatpush.msra.mxu0 %v2581
    %2661 = vmatpush.msra.mxu0 %v2580
    %2662 = vmatpush.msra.mxu0 %v2579
    %2663 = vmatmul.f32.gmra.mxu0 %v2563
    %v2664 = vpop.f32.mrf.mxu0
    %v2665 = vadd.f32 %v2645, %v2664
    %2666 = vmatmul.f32.gmra.mxu0 %v2567
    %v2667 = vpop.f32.mrf.mxu0
    %v2668 = vadd.f32 %v2645, %v2667
    %2669 = vmatmul.f32.gmra.mxu0 %v2571
    %v2670 = vpop.f32.mrf.mxu0
    %v2671 = vadd.f32 %v2645, %v2670
    %2672 = vmatmul.f32.gmra.mxu0 %v2575
    %v2673 = vpop.f32.mrf.mxu0
    %v2674 = vadd.f32 %v2645, %v2673
    %2675 = vdwg.mxu0
    %2676 = vmatpush.msra.mxu0 %v2610
    %2677 = vmatpush.msra.mxu0 %v2609
    %2678 = vmatpush.msra.mxu0 %v2608
    %2679 = vmatpush.msra.mxu0 %v2607
    %2680 = vmatpush.msra.mxu0 %v2606
    %2681 = vmatpush.msra.mxu0 %v2605
    %2682 = vmatpush.msra.mxu0 %v2604
    %2683 = vmatpush.msra.mxu0 %v2603
    %2684 = vmatpush.msra.mxu0 %v2602
    %2685 = vmatpush.msra.mxu0 %v2601
    %2686 = vmatpush.msra.mxu0 %v2600
    %2687 = vmatpush.msra.mxu0 %v2599
    %2688 = vmatpush.msra.mxu0 %v2598
    %2689 = vmatpush.msra.mxu0 %v2597
    %2690 = vmatpush.msra.mxu0 %v2596
    %2691 = vmatpush.msra.mxu0 %v2595
    %2692 = vmatmul.f32.gmra.mxu0 %v2564
    %v2693 = vpop.f32.mrf.mxu0
    %v2694 = vadd.f32 %v2665, %v2693
    %2695 = vmatmul.f32.gmra.mxu0 %v2568
    %v2696 = vpop.f32.mrf.mxu0
    %v2697 = vadd.f32 %v2668, %v2696
    %2698 = vmatmul.f32.gmra.mxu0 %v2572
    %v2699 = vpop.f32.mrf.mxu0
    %v2700 = vadd.f32 %v2671, %v2699
    %2701 = vmatmul.f32.gmra.mxu0 %v2576
    %v2702 = vpop.f32.mrf.mxu0
    %v2703 = vadd.f32 %v2674, %v2702
    %2704 = vdwg.mxu0
    %2705 = vmatpush.msra.mxu0 %v2626
    %2706 = vmatpush.msra.mxu0 %v2625
    %2707 = vmatpush.msra.mxu0 %v2624
    %2708 = vmatpush.msra.mxu0 %v2623
    %2709 = vmatpush.msra.mxu0 %v2622
    %2710 = vmatpush.msra.mxu0 %v2621
    %2711 = vmatpush.msra.mxu0 %v2620
    %2712 = vmatpush.msra.mxu0 %v2619
    %2713 = vmatpush.msra.mxu0 %v2618
    %2714 = vmatpush.msra.mxu0 %v2617
    %2715 = vmatpush.msra.mxu0 %v2616
    %2716 = vmatpush.msra.mxu0 %v2615
    %2717 = vmatpush.msra.mxu0 %v2614
    %2718 = vmatpush.msra.mxu0 %v2613
    %2719 = vmatpush.msra.mxu0 %v2612
    %2720 = vmatpush.msra.mxu0 %v2611
    %2721 = vmatmul.f32.gmra.mxu0 %v2565
    %v2722 = vpop.f32.mrf.mxu0
    %v2723 = vadd.f32 %v2694, %v2722
    %2724 = vmatmul.f32.gmra.mxu0 %v2569
    %v2725 = vpop.f32.mrf.mxu0
    %v2726 = vadd.f32 %v2697, %v2725
    %2727 = vmatmul.f32.gmra.mxu0 %v2573
    %v2728 = vpop.f32.mrf.mxu0
    %v2729 = vadd.f32 %v2700, %v2728
    %2730 = vmatmul.f32.gmra.mxu0 %v2577
    %v2731 = vpop.f32.mrf.mxu0
    %v2732 = vadd.f32 %v2703, %v2731
    %2733 = vdwg.mxu0
    %2734 = vmatpush.msra.mxu0 %v2642
    %2735 = vmatpush.msra.mxu0 %v2641
    %2736 = vmatpush.msra.mxu0 %v2640
    %2737 = vmatpush.msra.mxu0 %v2639
    %2738 = vmatpush.msra.mxu0 %v2638
    %2739 = vmatpush.msra.mxu0 %v2637
    %2740 = vmatpush.msra.mxu0 %v2636
    %2741 = vmatpush.msra.mxu0 %v2635
    %2742 = vmatpush.msra.mxu0 %v2634
    %2743 = vmatpush.msra.mxu0 %v2633
    %2744 = vmatpush.msra.mxu0 %v2632
    %2745 = vmatpush.msra.mxu0 %v2631
    %2746 = vmatpush.msra.mxu0 %v2630
    %2747 = vmatpush.msra.mxu0 %v2629
    %2748 = vmatpush.msra.mxu0 %v2628
    %2749 = vmatpush.msra.mxu0 %v2627
    %2750 = vmatmul.f32.gmra.mxu0 %v2566
    %v2751 = vpop.f32.mrf.mxu0
    %v2752 = vadd.f32 %v2723, %v2751
    %2753 = vmatmul.f32.gmra.mxu0 %v2570
    %v2754 = vpop.f32.mrf.mxu0
    %v2755 = vadd.f32 %v2726, %v2754
    %2756 = vmatmul.f32.gmra.mxu0 %v2574
    %v2757 = vpop.f32.mrf.mxu0
    %v2758 = vadd.f32 %v2729, %v2757
    %2759 = vmatmul.f32.gmra.mxu0 %v2578
    %v2760 = vpop.f32.mrf.mxu0
    %v2761 = vadd.f32 %v2732, %v2760
    %2762 = vdwg.mxu0
    %v2763 = vadd.f32 %v1601, %v2752
    %v2764 = vadd.f32 %v1602, %v2755
    %v2765 = vadd.f32 %v1603, %v2758
    %v2766 = vadd.f32 %v1604, %v2761
    %2767 = vst [vmem:[#allocation20] sm:$0xff] %v2763
    %2768 = vst [vmem:[#allocation20 + $0x8] sm:$0xff] %v2764
    %2769 = vst [vmem:[#allocation20 + $0x10] sm:$0xff] %v2765
    %2770 = vst [vmem:[#allocation20 + $0x18] sm:$0xff] %v2766
    // Predicated region
    $region106: #{tpu_custom_call.1} parent=1 // pred_check
      _
    $region107: #{tpu_custom_call.1} parent=1 // pred_check_branch
      %2772 = sbr.rel (0) target = $region109
    $region108: #{tpu_custom_call.1} parent=1 // pred_region
      %2774 = vsyncadd [#allocation4], 0
      %s2775 = sshll.u32 [#allocation20], 4
      %s2776 = int_to_ptr.vmem [resolvable:$true] %s2775
      %s2777 = sshll.u32 %s16, 4
      %s2778 = int_to_ptr.hbm [resolvable:$true] %s2777
      %2783 = dma.vmem_to_hbm [thread:$0]  %s2776, 512, %s2778, [#allocation4], 128, 128, 8
    $region109: #{tpu_custom_call.1} parent=1 // pred_fallthru
      _
    // Predicated region
    $region110: #{tpu_custom_call.1} parent=1 // pred_check
      _
    $region111: #{tpu_custom_call.1} parent=1 // pred_check_branch
      %2785 = sbr.rel (0) target = $region113
    $region112: #{tpu_custom_call.1} parent=1 // pred_region
      %2787 = dma.done [#allocation4], 512
    $region113: #{tpu_custom_call.1} parent=1 // pred_fallthru
      _
    %2788 = vsyncpa [#allocation3], 1
    %2789 = vsyncpa [#allocation10], 1
    %2790 = vsyncpa [#allocation13], 1
    %2791 = vsyncpa [#allocation16], 1
    %2792 = vsyncpa [#allocation19], 1
    %2793 = vsyncpa [#allocation4], 1
    %2794 = vsyncpa [#allocation5], 1
    %2795 = vsyncpa [#allocation7], 1

</llo_original>
